<compile_context>
chip_gen: v6e
topology: v6e:2x2x1
jax: 0.10.0
libtpu: 0.0.40
codegen_flags: <defaults>
</compile_context>

<pallas_src>
import math
import numpy as np
import jax
import jax.numpy as jnp
from jax.experimental import pallas as pl
from jax.experimental.pallas import tpu as pltpu

# ------------------------- model hyper-parameters (small) -------------------
D_MODEL = 32          # d_model
N_HEAD = 4            # nhead
D_HEAD = D_MODEL // N_HEAD
DIM_FF = 64           # dim_feedforward
D_OUT = 16            # d_out
NUM_LAYERS = 2        # num_layers
VOCAB = 50            # source_size
VOCAB_PAD = 56        # vocab padded to a multiple of 8 sublanes
PAD_TOKEN = 0         # src_pad_token
LN_EPS = 1e-5         # layer_norm_eps
OUT_PAD = 128         # lane-dense padded output width


# ------------------------------ shared helpers -------------------------------
def _layer_norm(x, gamma, beta, eps=LN_EPS):
    mean = jnp.mean(x, axis=-1, keepdims=True)
    var = jnp.mean(jnp.square(x - mean), axis=-1, keepdims=True)
    return (x - mean) * jax.lax.rsqrt(var + eps) * gamma + beta


def positional_encoding(seq_len, d_model):
    position = np.arange(seq_len, dtype=np.float32)[:, None]
    div_term = np.exp(np.arange(0, d_model, 2, dtype=np.float32)
                      * (-math.log(10000.0) / d_model))
    pe = np.zeros((seq_len, d_model), np.float32)
    pe[:, 0::2] = np.sin(position * div_term)
    pe[:, 1::2] = np.cos(position * div_term)
    return jnp.asarray(pe)


# --------------------------- parameter packing --------------------------------
# Pack the 12 tiny per-layer params into one (L, 8, 128) slab (1 DMA instead of
# 12), fold the attention scale into Wq/bq, fold sqrt(d_model) into the embedding
# table, pad the vocab axis to 8 sublanes and the output head to 128 lanes.
VEC_ROWS = ("bqkv", "bo", "b1", "b2", "ln1g", "ln1b", "ln2g", "ln2b")


def _pad_row(v, width=128):
    v = jnp.reshape(v, (-1,)).astype(jnp.float32)
    return jnp.pad(v, (0, width - v.shape[0]))


def pack_params(emb, layers, final):
    inv = 1.0 / math.sqrt(D_HEAD)
    wqkv_l, wo_l, w1_l, w2_l, vec_l = [], [], [], [], []
    for lp in layers:
        # fold 1/sqrt(d_head) into the Q columns/bias (no in-kernel scale mul)
        wqkv = jnp.concatenate([lp["wqkv"][:, :D_MODEL] * inv,
                                lp["wqkv"][:, D_MODEL:]], axis=1)
        bqkv = jnp.concatenate([lp["bqkv"][:, :D_MODEL] * inv,
                                lp["bqkv"][:, D_MODEL:]], axis=1)
        wqkv_l.append(wqkv)
        wo_l.append(lp["wo"])
        w1_l.append(lp["w1"])
        w2_l.append(lp["w2"])
        rows = dict(bqkv=bqkv, bo=lp["bo"], b1=lp["b1"], b2=lp["b2"],
                    ln1g=lp["ln1g"], ln1b=lp["ln1b"],
                    ln2g=lp["ln2g"], ln2b=lp["ln2b"])
        vec_l.append(jnp.stack([_pad_row(rows[k]) for k in VEC_ROWS], axis=0))
    # fold sqrt(d_model) into the embedding table; pad vocab rows to VOCAB_PAD
    emb_scaled = emb.astype(jnp.float32) * math.sqrt(D_MODEL)
    emb_padded = jnp.pad(emb_scaled, ((0, VOCAB_PAD - VOCAB), (0, 0)))
    return dict(
        emb=emb_padded,                                               # (56, D)
        wqkv=jnp.stack(wqkv_l), wo=jnp.stack(wo_l),
        w1=jnp.stack(w1_l), w2=jnp.stack(w2_l),
        vecs=jnp.stack(vec_l),                                        # (L, 8, 128)
        wout=jnp.pad(final["wout"], ((0, 0), (0, OUT_PAD - D_OUT))),  # (D, 128)
        fvecs=jnp.stack([_pad_row(final["lng"]), _pad_row(final["lnb"]),
                         _pad_row(final["bout"])], axis=0),           # (3, 128)
    )


# --------------------------- fused Pallas kernel -------------------------------
def build_kernel(seq_len, b_tile):
    nt = b_tile * seq_len
    bh = N_HEAD * b_tile     # head-major, batch-minor leading batch axis

    def kernel(tok_ref, bias_ref, pe_ref, emb_ref,
               wqkv_ref, wo_ref, w1_ref, w2_ref, vecs_ref,
               wout_ref, fvec_ref, out_ref):
        # ---- fused prologue: embedding gather (one-hot matmul) + PE add ----
        # sqrt(d_model) is already folded into emb_ref at pack time.
        tok = tok_ref[...].reshape(nt, 1)                        # int32 (nt, 1)
        vocab_ids = jax.lax.broadcasted_iota(jnp.int32, (nt, VOCAB_PAD), 1)
        onehot = (vocab_ids == tok).astype(jnp.float32)          # (nt, 56)
        x = jnp.dot(onehot, emb_ref[...], preferred_element_type=jnp.float32)
        x = (x.reshape(b_tile, seq_len, D_MODEL)
             + pe_ref[...][None, :, :]).reshape(nt, D_MODEL)     # broadcast PE
        # TODO(synk): dropout (p=0.1) omitted -- eval-mode identity.

        # key-padding bias, broadcast over heads ONCE (hoisted out of layer loop)
        bias_b = bias_ref[...].reshape(b_tile, 1, seq_len)       # (b, 1, T)
        bias_hb = jnp.concatenate([bias_b] * N_HEAD, axis=0)     # (H*b, 1, T)

        for l in range(NUM_LAYERS):                              # static layer loop
            vecs = vecs_ref[l]                                   # (8, 128) slab
            bqkv = vecs[0:1, 0:3 * D_MODEL]
            bo = vecs[1:2, 0:D_MODEL]
            b1 = vecs[2:3, 0:DIM_FF]
            b2 = vecs[3:4, 0:D_MODEL]
            ln1g = vecs[4:5, 0:D_MODEL]
            ln1b = vecs[5:6, 0:D_MODEL]
            ln2g = vecs[6:7, 0:D_MODEL]
            ln2b = vecs[7:8, 0:D_MODEL]

            # QKV projection on the whole (b_tile*T, D) folded row block.
            qkv = jnp.dot(x, wqkv_ref[l],
                          preferred_element_type=jnp.float32) + bqkv   # (nt, 3D)
            qkv3 = qkv.reshape(b_tile, seq_len, 3 * D_MODEL)

            # Head split: (H*b, T, Dh), head-major / batch-minor ordering.
            qh = jnp.concatenate(
                [qkv3[:, :, h * D_HEAD:(h + 1) * D_HEAD]
                 for h in range(N_HEAD)], axis=0)
            kh = jnp.concatenate(
                [qkv3[:, :, D_MODEL + h * D_HEAD:D_MODEL + (h + 1) * D_HEAD]
                 for h in range(N_HEAD)], axis=0)
            vh = jnp.concatenate(
                [qkv3[:, :, 2 * D_MODEL + h * D_HEAD:2 * D_MODEL + (h + 1) * D_HEAD]
                 for h in range(N_HEAD)], axis=0)

            # One batched einsum pair over all heads and batches.
            # (1/sqrt(d_head) already folded into Wq.)
            s = jnp.einsum('nqd,nkd->nqk', qh, kh,
                           preferred_element_type=jnp.float32)   # (H*b, T, T)
            s = s + bias_hb                                      # key-pad bias
            s = s - jnp.max(s, axis=-1, keepdims=True)
            p = jnp.exp(s)
            p = p * pl.reciprocal(jnp.sum(p, axis=-1, keepdims=True),
                                  approx=True)
            ctx = jnp.einsum('nqk,nkd->nqd', p, vh,
                             preferred_element_type=jnp.float32)  # (H*b, T, Dh)

            # Merge heads back: 4 leading-dim slices + one lane concat.
            attn = jnp.concatenate(
                [ctx[h * b_tile:(h + 1) * b_tile] for h in range(N_HEAD)],
                axis=-1).reshape(nt, D_MODEL)
            attn = jnp.dot(attn, wo_ref[l],
                           preferred_element_type=jnp.float32) + bo

            # post-norm residual block 1 (self-attention)
            x = _layer_norm(x + attn, ln1g, ln1b)
            # feed-forward (relu), post-norm residual block 2
            ff = jnp.maximum(
                jnp.dot(x, w1_ref[l], preferred_element_type=jnp.float32) + b1,
                0.0)
            ff = jnp.dot(ff, w2_ref[l], preferred_element_type=jnp.float32) + b2
            x = _layer_norm(x + ff, ln2g, ln2b)

        # ---- final LayerNorm + mean pooling + output head (lane-dense) ----
        lng = fvec_ref[0:1, 0:D_MODEL]
        lnb = fvec_ref[1:2, 0:D_MODEL]
        bout = fvec_ref[2:3, :]                                  # (1, 128) padded
        x = _layer_norm(x, lng, lnb)                             # (nt, D)
        pooled = jnp.mean(x.reshape(b_tile, seq_len, D_MODEL), axis=1)  # (b, D)
        out = jnp.dot(pooled, wout_ref[...],
                      preferred_element_type=jnp.float32) + bout  # (b_tile, 128)
        out_ref[...] = out[:, None, :]

    return kernel


# --------------------------------- full forward -------------------------------
def encoder_network_forward(tokens, packed):
    n, t = tokens.shape
    # Threshold-based batch split: single grid step on tiny problems (v5e/v6e:
    # the grid is a serial loop; splitting only costs per-step overhead), 2-way
    # "parallel" split only when each half has >= 64 folded rows (v7x 2 TCs).
    num_tiles = 2 if (n % 2 == 0 and (n // 2) * t >= 64) else 1
    b_tile = n // num_tiles

    tok3 = tokens.astype(jnp.int32).reshape(n, t, 1)
    pad_bias = jnp.where(tokens == PAD_TOKEN, -1e9, 0.0).astype(jnp.float32)
    bias3 = pad_bias.reshape(n, 1, t)
    pe = positional_encoding(t, D_MODEL)                          # (T, D), no tile

    L = NUM_LAYERS
    kernel = build_kernel(t, b_tile)
    out = pl.pallas_call(
        kernel,
        out_shape=jax.ShapeDtypeStruct((n, 1, OUT_PAD), jnp.float32),
        grid=(num_tiles,),
        in_specs=[
            pl.BlockSpec((b_tile, t, 1), lambda b: (b, 0, 0)),        # tokens
            pl.BlockSpec((b_tile, 1, t), lambda b: (b, 0, 0)),        # pad bias
            pl.BlockSpec((t, D_MODEL), lambda b: (0, 0)),             # PE (shared)
            pl.BlockSpec((VOCAB_PAD, D_MODEL), lambda b: (0, 0)),     # embedding
            pl.BlockSpec((L, D_MODEL, 3 * D_MODEL), lambda b: (0, 0, 0)),
            pl.BlockSpec((L, D_MODEL, D_MODEL), lambda b: (0, 0, 0)),
            pl.BlockSpec((L, D_MODEL, DIM_FF), lambda b: (0, 0, 0)),
            pl.BlockSpec((L, DIM_FF, D_MODEL), lambda b: (0, 0, 0)),
            pl.BlockSpec((L, 8, 128), lambda b: (0, 0, 0)),           # vec slab
            pl.BlockSpec((D_MODEL, OUT_PAD), lambda b: (0, 0)),       # head W (padded)
            pl.BlockSpec((3, 128), lambda b: (0, 0)),                 # final vec slab
        ],
        out_specs=pl.BlockSpec((b_tile, 1, OUT_PAD), lambda b: (b, 0, 0)),
        compiler_params=pltpu.CompilerParams(dimension_semantics=("parallel",)),
    )(tok3, bias3, pe, packed["emb"], packed["wqkv"], packed["wo"],
      packed["w1"], packed["w2"], packed["vecs"], packed["wout"], packed["fvecs"])
    return out[:, 0, :D_OUT]


# ------------------------------ pure-JAX reference ----------------------------
def _ref_layer(x, pad_bias, lp):
    n, t, d = x.shape
    qkv = x @ lp["wqkv"] + lp["bqkv"]
    q, k, v = jnp.split(qkv, 3, axis=-1)
    sh = lambda a: a.reshape(n, t, N_HEAD, D_HEAD).transpose(0, 2, 1, 3)
    q, k, v = map(sh, (q, k, v))
    s = jnp.einsum('bhqd,bhkd->bhqk', q, k,
                   precision=jax.lax.Precision.HIGHEST) / math.sqrt(D_HEAD)
    s = s + pad_bias[:, None, None, :]
    p = jax.nn.softmax(s, axis=-1)
    o = jnp.einsum('bhqk,bhkd->bhqd', p, v, precision=jax.lax.Precision.HIGHEST)
    o = o.transpose(0, 2, 1, 3).reshape(n, t, d)
    o = o @ lp["wo"] + lp["bo"]
    x1 = _layer_norm(x + o, lp["ln1g"], lp["ln1b"])
    ff = jax.nn.relu(x1 @ lp["w1"] + lp["b1"]) @ lp["w2"] + lp["b2"]
    return _layer_norm(x1 + ff, lp["ln2g"], lp["ln2b"])


def reference_forward(tokens, emb, layers, final):
    n, t = tokens.shape
    x = emb[tokens] * math.sqrt(D_MODEL)
    x = x + positional_encoding(t, D_MODEL)[None]
    pad_bias = jnp.where(tokens == PAD_TOKEN, -1e9, 0.0).astype(jnp.float32)
    for lp in layers:
        x = _ref_layer(x, pad_bias, lp)
    x = _layer_norm(x, final["lng"], final["lnb"])
    pooled = jnp.mean(x, axis=1)   # NOTE: unmasked mean pooler (matches pinned spec)
    return pooled @ final["wout"] + final["bout"]


# ---------------------------- deterministic parameters ------------------------
def make_params(key):
    keys = jax.random.split(key, 2 + NUM_LAYERS)

    def lin(kk, fan_in, fan_out):
        lim = 1.0 / math.sqrt(fan_in)
        return jax.random.uniform(kk, (fan_in, fan_out), jnp.float32, -lim, lim)

    def bias(kk, dim):
        return 0.02 * jax.random.normal(kk, (1, dim), jnp.float32)

    emb = 0.1 * jax.random.normal(keys[0], (VOCAB, D_MODEL), jnp.float32)

    layers = []
    for li in range(NUM_LAYERS):
        k = jax.random.split(keys[1 + li], 8)
        layers.append(dict(
            wqkv=lin(k[0], D_MODEL, 3 * D_MODEL), bqkv=bias(k[1], 3 * D_MODEL),
            wo=lin(k[2], D_MODEL, D_MODEL),       bo=bias(k[3], D_MODEL),
            ln1g=jnp.ones((1, D_MODEL), jnp.float32),
            ln1b=jnp.zeros((1, D_MODEL), jnp.float32),
            w1=lin(k[4], D_MODEL, DIM_FF),        b1=bias(k[5], DIM_FF),
            w2=lin(k[6], DIM_FF, D_MODEL),        b2=bias(k[7], D_MODEL),
            ln2g=jnp.ones((1, D_MODEL), jnp.float32),
            ln2b=jnp.zeros((1, D_MODEL), jnp.float32),
        ))

    kf = jax.random.split(keys[1 + NUM_LAYERS], 2)
    final = dict(
        lng=jnp.ones((1, D_MODEL), jnp.float32),
        lnb=jnp.zeros((1, D_MODEL), jnp.float32),
        wout=lin(kf[0], D_MODEL, D_OUT),
        bout=bias(kf[1], D_OUT),
    )
    return emb, layers, final


# --------------------------------------- main --------------------------------
if __name__ == "__main__":
    key = jax.random.PRNGKey(0)
    kp, kt = jax.random.split(key)
    emb, layers, final = make_params(kp)

    N, T = 2, 8
    tokens = jax.random.randint(kt, (N, T), 1, VOCAB, dtype=jnp.int32)
    # introduce some padding (never a fully-padded row)
    tokens = tokens.at[1, -2:].set(PAD_TOKEN)

    packed = pack_params(emb, layers, final)
    fwd = jax.jit(lambda tok: encoder_network_forward(tok, packed))
    out = jax.block_until_ready(fwd(tokens))

    ref = reference_forward(tokens, emb, layers, final)
    assert out.shape == (N, D_OUT), out.shape
    np.testing.assert_allclose(np.asarray(out), np.asarray(ref),
                               atol=2e-2, rtol=2e-2)
    print("KERNEL_OK")
</pallas_src>

<mosaic_0001>
module attributes {stable_mosaic.version = 11 : i64} {
  func.func @kernel(%arg0: i32, %arg1: memref<2x8x1xi32, #tpu.memory_space<vmem>>, %arg2: memref<2x1x8xf32, #tpu.memory_space<vmem>>, %arg3: memref<8x32xf32, #tpu.memory_space<vmem>>, %arg4: memref<56x32xf32, #tpu.memory_space<vmem>>, %arg5: memref<2x32x96xf32, #tpu.memory_space<vmem>>, %arg6: memref<2x32x32xf32, #tpu.memory_space<vmem>>, %arg7: memref<2x32x64xf32, #tpu.memory_space<vmem>>, %arg8: memref<2x64x32xf32, #tpu.memory_space<vmem>>, %arg9: memref<2x8x128xf32, #tpu.memory_space<vmem>>, %arg10: memref<32x128xf32, #tpu.memory_space<vmem>>, %arg11: memref<3x128xf32, #tpu.memory_space<vmem>>, %arg12: memref<2x1x128xf32, #tpu.memory_space<vmem>>) attributes {dimension_semantics = [#tpu.dimension_semantics<parallel>], iteration_bounds = array<i64: 1>, scalar_prefetch = 0 : i64, scratch_operands = 0 : i64, tpu.core_type = #tpu.core_type<tc>, window_params = [{transform_indices = @transform_0, window_bounds = array<i64: 2, 8, 1>}, {transform_indices = @transform_1, window_bounds = array<i64: 2, 1, 8>}, {pipeline_mode = #tpu.pipeline_mode<synchronous>, transform_indices = @transform_2, window_bounds = array<i64: 8, 32>}, {pipeline_mode = #tpu.pipeline_mode<synchronous>, transform_indices = @transform_3, window_bounds = array<i64: 56, 32>}, {pipeline_mode = #tpu.pipeline_mode<synchronous>, transform_indices = @transform_4, window_bounds = array<i64: 2, 32, 96>}, {pipeline_mode = #tpu.pipeline_mode<synchronous>, transform_indices = @transform_5, window_bounds = array<i64: 2, 32, 32>}, {pipeline_mode = #tpu.pipeline_mode<synchronous>, transform_indices = @transform_6, window_bounds = array<i64: 2, 32, 64>}, {pipeline_mode = #tpu.pipeline_mode<synchronous>, transform_indices = @transform_7, window_bounds = array<i64: 2, 64, 32>}, {pipeline_mode = #tpu.pipeline_mode<synchronous>, transform_indices = @transform_8, window_bounds = array<i64: 2, 8, 128>}, {pipeline_mode = #tpu.pipeline_mode<synchronous>, transform_indices = @transform_9, window_bounds = array<i64: 32, 128>}, {pipeline_mode = #tpu.pipeline_mode<synchronous>, transform_indices = @transform_10, window_bounds = array<i64: 3, 128>}, {transform_indices = @transform_11, window_bounds = array<i64: 2, 1, 128>}]} {
    %c0 = arith.constant 0 : index
    %c0_0 = arith.constant 0 : index
    %c0_1 = arith.constant 0 : index
    %0 = vector.load %arg1[%c0, %c0_0, %c0_1] : memref<2x8x1xi32, #tpu.memory_space<vmem>>, vector<2x8x1xi32>
    %1 = vector.shape_cast %0 : vector<2x8x1xi32> to vector<16x1xi32>
    %2 = tpu.iota {dimensions = array<i32: 1>} : vector<16x56xi32>
    %3 = vector.broadcast %1 : vector<16x1xi32> to vector<16x56xi32>
    %4 = arith.cmpi eq, %2, %3 : vector<16x56xi32>
    %5 = arith.extui %4 : vector<16x56xi1> to vector<16x56xi32>
    %6 = arith.sitofp %5 : vector<16x56xi32> to vector<16x56xf32>
    %c0_2 = arith.constant 0 : index
    %c0_3 = arith.constant 0 : index
    %7 = vector.load %arg4[%c0_2, %c0_3] : memref<56x32xf32, #tpu.memory_space<vmem>>, vector<56x32xf32>
    %cst = arith.constant dense<0.000000e+00> : vector<16x32xf32>
    %8 = tpu.matmul %6, %7, %cst {dimension_numbers = #tpu.dot_dimension_numbers<[1], [0], [0], [1], [0, 0, 1, 1], [], []>} : vector<16x56xf32>, vector<56x32xf32>, vector<16x32xf32> -> vector<16x32xf32>
    %9 = vector.shape_cast %8 : vector<16x32xf32> to vector<2x8x32xf32>
    %c0_4 = arith.constant 0 : index
    %c0_5 = arith.constant 0 : index
    %10 = vector.load %arg3[%c0_4, %c0_5] : memref<8x32xf32, #tpu.memory_space<vmem>>, vector<8x32xf32>
    %11 = vector.shape_cast %10 : vector<8x32xf32> to vector<1x8x32xf32>
    %12 = vector.broadcast %11 : vector<1x8x32xf32> to vector<2x8x32xf32>
    %13 = arith.addf %9, %12 : vector<2x8x32xf32>
    %14 = vector.shape_cast %13 : vector<2x8x32xf32> to vector<16x32xf32>
    %c0_6 = arith.constant 0 : index
    %c0_7 = arith.constant 0 : index
    %c0_8 = arith.constant 0 : index
    %15 = vector.load %arg2[%c0_6, %c0_7, %c0_8] : memref<2x1x8xf32, #tpu.memory_space<vmem>>, vector<2x1x8xf32>
    %16 = tpu.concatenate %15, %15, %15, %15 in 0 : vector<2x1x8xf32>, vector<2x1x8xf32>, vector<2x1x8xf32>, vector<2x1x8xf32> -> vector<8x1x8xf32>
    %c0_9 = arith.constant 0 : index
    %c0_10 = arith.constant 0 : index
    %c0_11 = arith.constant 0 : index
    %17 = vector.load %arg9[%c0_9, %c0_10, %c0_11] : memref<2x8x128xf32, #tpu.memory_space<vmem>>, vector<1x8x128xf32>
    %18 = vector.shape_cast %17 : vector<1x8x128xf32> to vector<8x128xf32>
    %19 = vector.extract_strided_slice %18 {offsets = [0, 0], sizes = [1, 96], strides = [1, 1]} : vector<8x128xf32> to vector<1x96xf32>
    %20 = vector.extract_strided_slice %18 {offsets = [1, 0], sizes = [1, 32], strides = [1, 1]} : vector<8x128xf32> to vector<1x32xf32>
    %21 = vector.extract_strided_slice %18 {offsets = [2, 0], sizes = [1, 64], strides = [1, 1]} : vector<8x128xf32> to vector<1x64xf32>
    %22 = vector.extract_strided_slice %18 {offsets = [3, 0], sizes = [1, 32], strides = [1, 1]} : vector<8x128xf32> to vector<1x32xf32>
    %23 = vector.extract_strided_slice %18 {offsets = [4, 0], sizes = [1, 32], strides = [1, 1]} : vector<8x128xf32> to vector<1x32xf32>
    %24 = vector.extract_strided_slice %18 {offsets = [5, 0], sizes = [1, 32], strides = [1, 1]} : vector<8x128xf32> to vector<1x32xf32>
    %25 = vector.extract_strided_slice %18 {offsets = [6, 0], sizes = [1, 32], strides = [1, 1]} : vector<8x128xf32> to vector<1x32xf32>
    %26 = vector.extract_strided_slice %18 {offsets = [7, 0], sizes = [1, 32], strides = [1, 1]} : vector<8x128xf32> to vector<1x32xf32>
    %c0_12 = arith.constant 0 : index
    %c0_13 = arith.constant 0 : index
    %c0_14 = arith.constant 0 : index
    %27 = vector.load %arg5[%c0_12, %c0_13, %c0_14] : memref<2x32x96xf32, #tpu.memory_space<vmem>>, vector<1x32x96xf32>
    %28 = vector.shape_cast %27 : vector<1x32x96xf32> to vector<32x96xf32>
    %cst_15 = arith.constant dense<0.000000e+00> : vector<16x96xf32>
    %29 = tpu.matmul %14, %28, %cst_15 {dimension_numbers = #tpu.dot_dimension_numbers<[1], [0], [0], [1], [0, 0, 1, 1], [], []>} : vector<16x32xf32>, vector<32x96xf32>, vector<16x96xf32> -> vector<16x96xf32>
    %30 = vector.broadcast %19 : vector<1x96xf32> to vector<16x96xf32>
    %31 = arith.addf %29, %30 : vector<16x96xf32>
    %32 = vector.shape_cast %31 : vector<16x96xf32> to vector<2x8x96xf32>
    %33 = vector.extract_strided_slice %32 {offsets = [0, 0, 0], sizes = [2, 8, 8], strides = [1, 1, 1]} : vector<2x8x96xf32> to vector<2x8x8xf32>
    %34 = vector.extract_strided_slice %32 {offsets = [0, 0, 8], sizes = [2, 8, 8], strides = [1, 1, 1]} : vector<2x8x96xf32> to vector<2x8x8xf32>
    %35 = vector.extract_strided_slice %32 {offsets = [0, 0, 16], sizes = [2, 8, 8], strides = [1, 1, 1]} : vector<2x8x96xf32> to vector<2x8x8xf32>
    %36 = vector.extract_strided_slice %32 {offsets = [0, 0, 24], sizes = [2, 8, 8], strides = [1, 1, 1]} : vector<2x8x96xf32> to vector<2x8x8xf32>
    %37 = tpu.concatenate %33, %34, %35, %36 in 0 : vector<2x8x8xf32>, vector<2x8x8xf32>, vector<2x8x8xf32>, vector<2x8x8xf32> -> vector<8x8x8xf32>
    %38 = vector.extract_strided_slice %32 {offsets = [0, 0, 32], sizes = [2, 8, 8], strides = [1, 1, 1]} : vector<2x8x96xf32> to vector<2x8x8xf32>
    %39 = vector.extract_strided_slice %32 {offsets = [0, 0, 40], sizes = [2, 8, 8], strides = [1, 1, 1]} : vector<2x8x96xf32> to vector<2x8x8xf32>
    %40 = vector.extract_strided_slice %32 {offsets = [0, 0, 48], sizes = [2, 8, 8], strides = [1, 1, 1]} : vector<2x8x96xf32> to vector<2x8x8xf32>
    %41 = vector.extract_strided_slice %32 {offsets = [0, 0, 56], sizes = [2, 8, 8], strides = [1, 1, 1]} : vector<2x8x96xf32> to vector<2x8x8xf32>
    %42 = tpu.concatenate %38, %39, %40, %41 in 0 : vector<2x8x8xf32>, vector<2x8x8xf32>, vector<2x8x8xf32>, vector<2x8x8xf32> -> vector<8x8x8xf32>
    %43 = vector.extract_strided_slice %32 {offsets = [0, 0, 64], sizes = [2, 8, 8], strides = [1, 1, 1]} : vector<2x8x96xf32> to vector<2x8x8xf32>
    %44 = vector.extract_strided_slice %32 {offsets = [0, 0, 72], sizes = [2, 8, 8], strides = [1, 1, 1]} : vector<2x8x96xf32> to vector<2x8x8xf32>
    %45 = vector.extract_strided_slice %32 {offsets = [0, 0, 80], sizes = [2, 8, 8], strides = [1, 1, 1]} : vector<2x8x96xf32> to vector<2x8x8xf32>
    %46 = vector.extract_strided_slice %32 {offsets = [0, 0, 88], sizes = [2, 8, 8], strides = [1, 1, 1]} : vector<2x8x96xf32> to vector<2x8x8xf32>
    %47 = tpu.concatenate %43, %44, %45, %46 in 0 : vector<2x8x8xf32>, vector<2x8x8xf32>, vector<2x8x8xf32>, vector<2x8x8xf32> -> vector<8x8x8xf32>
    "tpu.trace_start"() <{level = 10 : i32, message = "nqd,nkd->nqk"}> : () -> ()
    %cst_16 = arith.constant dense<0.000000e+00> : vector<8x8x8xf32>
    %48 = tpu.matmul %37, %42, %cst_16 {dimension_numbers = #tpu.dot_dimension_numbers<[2], [2], [1], [1], [0, 0, 0, 1, 1, 1], [0], [0]>} : vector<8x8x8xf32>, vector<8x8x8xf32>, vector<8x8x8xf32> -> vector<8x8x8xf32>
    "tpu.trace_stop"() : () -> ()
    %49 = vector.broadcast %16 : vector<8x1x8xf32> to vector<8x8x8xf32>
    %50 = arith.addf %48, %49 : vector<8x8x8xf32>
    %cst_17 = arith.constant dense<0xFF800000> : vector<8x8xf32>
    %51 = vector.multi_reduction <maximumf>, %50, %cst_17 [2] : vector<8x8x8xf32> to vector<8x8xf32>
    %52 = vector.shape_cast %51 : vector<8x8xf32> to vector<8x8x1xf32>
    %53 = vector.broadcast %52 : vector<8x8x1xf32> to vector<8x8x8xf32>
    %54 = arith.subf %50, %53 : vector<8x8x8xf32>
    %55 = math.exp %54 : vector<8x8x8xf32>
    %cst_18 = arith.constant dense<0.000000e+00> : vector<8x8xf32>
    %56 = vector.multi_reduction <add>, %55, %cst_18 [2] : vector<8x8x8xf32> to vector<8x8xf32>
    %57 = vector.shape_cast %56 : vector<8x8xf32> to vector<8x8x1xf32>
    %58 = tpu.reciprocal %57 {approx = true} : vector<8x8x1xf32> -> vector<8x8x1xf32>
    %59 = vector.broadcast %58 : vector<8x8x1xf32> to vector<8x8x8xf32>
    %60 = arith.mulf %55, %59 : vector<8x8x8xf32>
    "tpu.trace_start"() <{level = 10 : i32, message = "nqk,nkd->nqd"}> : () -> ()
    %cst_19 = arith.constant dense<0.000000e+00> : vector<8x8x8xf32>
    %61 = tpu.matmul %60, %47, %cst_19 {dimension_numbers = #tpu.dot_dimension_numbers<[2], [1], [1], [2], [0, 0, 0, 1, 1, 2], [0], [0]>} : vector<8x8x8xf32>, vector<8x8x8xf32>, vector<8x8x8xf32> -> vector<8x8x8xf32>
    "tpu.trace_stop"() : () -> ()
    %62 = vector.extract_strided_slice %61 {offsets = [0, 0, 0], sizes = [2, 8, 8], strides = [1, 1, 1]} : vector<8x8x8xf32> to vector<2x8x8xf32>
    %63 = vector.extract_strided_slice %61 {offsets = [2, 0, 0], sizes = [2, 8, 8], strides = [1, 1, 1]} : vector<8x8x8xf32> to vector<2x8x8xf32>
    %64 = vector.extract_strided_slice %61 {offsets = [4, 0, 0], sizes = [2, 8, 8], strides = [1, 1, 1]} : vector<8x8x8xf32> to vector<2x8x8xf32>
    %65 = vector.extract_strided_slice %61 {offsets = [6, 0, 0], sizes = [2, 8, 8], strides = [1, 1, 1]} : vector<8x8x8xf32> to vector<2x8x8xf32>
    %66 = tpu.concatenate %62, %63, %64, %65 in 2 : vector<2x8x8xf32>, vector<2x8x8xf32>, vector<2x8x8xf32>, vector<2x8x8xf32> -> vector<2x8x32xf32>
    %67 = vector.shape_cast %66 : vector<2x8x32xf32> to vector<16x32xf32>
    %c0_20 = arith.constant 0 : index
    %c0_21 = arith.constant 0 : index
    %c0_22 = arith.constant 0 : index
    %68 = vector.load %arg6[%c0_20, %c0_21, %c0_22] : memref<2x32x32xf32, #tpu.memory_space<vmem>>, vector<1x32x32xf32>
    %69 = vector.shape_cast %68 : vector<1x32x32xf32> to vector<32x32xf32>
    %cst_23 = arith.constant dense<0.000000e+00> : vector<16x32xf32>
    %70 = tpu.matmul %67, %69, %cst_23 {dimension_numbers = #tpu.dot_dimension_numbers<[1], [0], [0], [1], [0, 0, 1, 1], [], []>} : vector<16x32xf32>, vector<32x32xf32>, vector<16x32xf32> -> vector<16x32xf32>
    %71 = vector.broadcast %20 : vector<1x32xf32> to vector<16x32xf32>
    %72 = arith.addf %70, %71 : vector<16x32xf32>
    %73 = arith.addf %14, %72 : vector<16x32xf32>
    %cst_24 = arith.constant dense<0.000000e+00> : vector<16xf32>
    %74 = vector.multi_reduction <add>, %73, %cst_24 [1] : vector<16x32xf32> to vector<16xf32>
    %75 = vector.shape_cast %74 : vector<16xf32> to vector<16x1xf32>
    %cst_25 = arith.constant 3.200000e+01 : f32
    %76 = vector.broadcast %cst_25 : f32 to vector<16x1xf32>
    %77 = arith.divf %75, %76 : vector<16x1xf32>
    %78 = vector.broadcast %77 : vector<16x1xf32> to vector<16x32xf32>
    %79 = arith.subf %73, %78 : vector<16x32xf32>
    %80 = arith.mulf %79, %79 : vector<16x32xf32>
    %cst_26 = arith.constant dense<0.000000e+00> : vector<16xf32>
    %81 = vector.multi_reduction <add>, %80, %cst_26 [1] : vector<16x32xf32> to vector<16xf32>
    %82 = vector.shape_cast %81 : vector<16xf32> to vector<16x1xf32>
    %cst_27 = arith.constant 3.200000e+01 : f32
    %83 = vector.broadcast %cst_27 : f32 to vector<16x1xf32>
    %84 = arith.divf %82, %83 : vector<16x1xf32>
    %85 = vector.broadcast %77 : vector<16x1xf32> to vector<16x32xf32>
    %86 = arith.subf %73, %85 : vector<16x32xf32>
    %cst_28 = arith.constant 9.99999974E-6 : f32
    %87 = vector.broadcast %cst_28 : f32 to vector<16x1xf32>
    %88 = arith.addf %84, %87 : vector<16x1xf32>
    %89 = math.rsqrt %88 : vector<16x1xf32>
    %90 = vector.broadcast %89 : vector<16x1xf32> to vector<16x32xf32>
    %91 = arith.mulf %86, %90 : vector<16x32xf32>
    %92 = vector.broadcast %23 : vector<1x32xf32> to vector<16x32xf32>
    %93 = arith.mulf %91, %92 : vector<16x32xf32>
    %94 = vector.broadcast %24 : vector<1x32xf32> to vector<16x32xf32>
    %95 = arith.addf %93, %94 : vector<16x32xf32>
    %c0_29 = arith.constant 0 : index
    %c0_30 = arith.constant 0 : index
    %c0_31 = arith.constant 0 : index
    %96 = vector.load %arg7[%c0_29, %c0_30, %c0_31] : memref<2x32x64xf32, #tpu.memory_space<vmem>>, vector<1x32x64xf32>
    %97 = vector.shape_cast %96 : vector<1x32x64xf32> to vector<32x64xf32>
    %cst_32 = arith.constant dense<0.000000e+00> : vector<16x64xf32>
    %98 = tpu.matmul %95, %97, %cst_32 {dimension_numbers = #tpu.dot_dimension_numbers<[1], [0], [0], [1], [0, 0, 1, 1], [], []>} : vector<16x32xf32>, vector<32x64xf32>, vector<16x64xf32> -> vector<16x64xf32>
    %99 = vector.broadcast %21 : vector<1x64xf32> to vector<16x64xf32>
    %100 = arith.addf %98, %99 : vector<16x64xf32>
    %cst_33 = arith.constant 0.000000e+00 : f32
    %101 = vector.broadcast %cst_33 : f32 to vector<16x64xf32>
    %102 = arith.maximumf %100, %101 : vector<16x64xf32>
    %c0_34 = arith.constant 0 : index
    %c0_35 = arith.constant 0 : index
    %c0_36 = arith.constant 0 : index
    %103 = vector.load %arg8[%c0_34, %c0_35, %c0_36] : memref<2x64x32xf32, #tpu.memory_space<vmem>>, vector<1x64x32xf32>
    %104 = vector.shape_cast %103 : vector<1x64x32xf32> to vector<64x32xf32>
    %cst_37 = arith.constant dense<0.000000e+00> : vector<16x32xf32>
    %105 = tpu.matmul %102, %104, %cst_37 {dimension_numbers = #tpu.dot_dimension_numbers<[1], [0], [0], [1], [0, 0, 1, 1], [], []>} : vector<16x64xf32>, vector<64x32xf32>, vector<16x32xf32> -> vector<16x32xf32>
    %106 = vector.broadcast %22 : vector<1x32xf32> to vector<16x32xf32>
    %107 = arith.addf %105, %106 : vector<16x32xf32>
    %108 = arith.addf %95, %107 : vector<16x32xf32>
    %cst_38 = arith.constant dense<0.000000e+00> : vector<16xf32>
    %109 = vector.multi_reduction <add>, %108, %cst_38 [1] : vector<16x32xf32> to vector<16xf32>
    %110 = vector.shape_cast %109 : vector<16xf32> to vector<16x1xf32>
    %cst_39 = arith.constant 3.200000e+01 : f32
    %111 = vector.broadcast %cst_39 : f32 to vector<16x1xf32>
    %112 = arith.divf %110, %111 : vector<16x1xf32>
    %113 = vector.broadcast %112 : vector<16x1xf32> to vector<16x32xf32>
    %114 = arith.subf %108, %113 : vector<16x32xf32>
    %115 = arith.mulf %114, %114 : vector<16x32xf32>
    %cst_40 = arith.constant dense<0.000000e+00> : vector<16xf32>
    %116 = vector.multi_reduction <add>, %115, %cst_40 [1] : vector<16x32xf32> to vector<16xf32>
    %117 = vector.shape_cast %116 : vector<16xf32> to vector<16x1xf32>
    %cst_41 = arith.constant 3.200000e+01 : f32
    %118 = vector.broadcast %cst_41 : f32 to vector<16x1xf32>
    %119 = arith.divf %117, %118 : vector<16x1xf32>
    %120 = vector.broadcast %112 : vector<16x1xf32> to vector<16x32xf32>
    %121 = arith.subf %108, %120 : vector<16x32xf32>
    %cst_42 = arith.constant 9.99999974E-6 : f32
    %122 = vector.broadcast %cst_42 : f32 to vector<16x1xf32>
    %123 = arith.addf %119, %122 : vector<16x1xf32>
    %124 = math.rsqrt %123 : vector<16x1xf32>
    %125 = vector.broadcast %124 : vector<16x1xf32> to vector<16x32xf32>
    %126 = arith.mulf %121, %125 : vector<16x32xf32>
    %127 = vector.broadcast %25 : vector<1x32xf32> to vector<16x32xf32>
    %128 = arith.mulf %126, %127 : vector<16x32xf32>
    %129 = vector.broadcast %26 : vector<1x32xf32> to vector<16x32xf32>
    %130 = arith.addf %128, %129 : vector<16x32xf32>
    %c1 = arith.constant 1 : index
    %c0_43 = arith.constant 0 : index
    %c0_44 = arith.constant 0 : index
    %131 = vector.load %arg9[%c1, %c0_43, %c0_44] : memref<2x8x128xf32, #tpu.memory_space<vmem>>, vector<1x8x128xf32>
    %132 = vector.shape_cast %131 : vector<1x8x128xf32> to vector<8x128xf32>
    %133 = vector.extract_strided_slice %132 {offsets = [0, 0], sizes = [1, 96], strides = [1, 1]} : vector<8x128xf32> to vector<1x96xf32>
    %134 = vector.extract_strided_slice %132 {offsets = [1, 0], sizes = [1, 32], strides = [1, 1]} : vector<8x128xf32> to vector<1x32xf32>
    %135 = vector.extract_strided_slice %132 {offsets = [2, 0], sizes = [1, 64], strides = [1, 1]} : vector<8x128xf32> to vector<1x64xf32>
    %136 = vector.extract_strided_slice %132 {offsets = [3, 0], sizes = [1, 32], strides = [1, 1]} : vector<8x128xf32> to vector<1x32xf32>
    %137 = vector.extract_strided_slice %132 {offsets = [4, 0], sizes = [1, 32], strides = [1, 1]} : vector<8x128xf32> to vector<1x32xf32>
    %138 = vector.extract_strided_slice %132 {offsets = [5, 0], sizes = [1, 32], strides = [1, 1]} : vector<8x128xf32> to vector<1x32xf32>
    %139 = vector.extract_strided_slice %132 {offsets = [6, 0], sizes = [1, 32], strides = [1, 1]} : vector<8x128xf32> to vector<1x32xf32>
    %140 = vector.extract_strided_slice %132 {offsets = [7, 0], sizes = [1, 32], strides = [1, 1]} : vector<8x128xf32> to vector<1x32xf32>
    %c1_45 = arith.constant 1 : index
    %c0_46 = arith.constant 0 : index
    %c0_47 = arith.constant 0 : index
    %141 = vector.load %arg5[%c1_45, %c0_46, %c0_47] : memref<2x32x96xf32, #tpu.memory_space<vmem>>, vector<1x32x96xf32>
    %142 = vector.shape_cast %141 : vector<1x32x96xf32> to vector<32x96xf32>
    %cst_48 = arith.constant dense<0.000000e+00> : vector<16x96xf32>
    %143 = tpu.matmul %130, %142, %cst_48 {dimension_numbers = #tpu.dot_dimension_numbers<[1], [0], [0], [1], [0, 0, 1, 1], [], []>} : vector<16x32xf32>, vector<32x96xf32>, vector<16x96xf32> -> vector<16x96xf32>
    %144 = vector.broadcast %133 : vector<1x96xf32> to vector<16x96xf32>
    %145 = arith.addf %143, %144 : vector<16x96xf32>
    %146 = vector.shape_cast %145 : vector<16x96xf32> to vector<2x8x96xf32>
    %147 = vector.extract_strided_slice %146 {offsets = [0, 0, 0], sizes = [2, 8, 8], strides = [1, 1, 1]} : vector<2x8x96xf32> to vector<2x8x8xf32>
    %148 = vector.extract_strided_slice %146 {offsets = [0, 0, 8], sizes = [2, 8, 8], strides = [1, 1, 1]} : vector<2x8x96xf32> to vector<2x8x8xf32>
    %149 = vector.extract_strided_slice %146 {offsets = [0, 0, 16], sizes = [2, 8, 8], strides = [1, 1, 1]} : vector<2x8x96xf32> to vector<2x8x8xf32>
    %150 = vector.extract_strided_slice %146 {offsets = [0, 0, 24], sizes = [2, 8, 8], strides = [1, 1, 1]} : vector<2x8x96xf32> to vector<2x8x8xf32>
    %151 = tpu.concatenate %147, %148, %149, %150 in 0 : vector<2x8x8xf32>, vector<2x8x8xf32>, vector<2x8x8xf32>, vector<2x8x8xf32> -> vector<8x8x8xf32>
    %152 = vector.extract_strided_slice %146 {offsets = [0, 0, 32], sizes = [2, 8, 8], strides = [1, 1, 1]} : vector<2x8x96xf32> to vector<2x8x8xf32>
    %153 = vector.extract_strided_slice %146 {offsets = [0, 0, 40], sizes = [2, 8, 8], strides = [1, 1, 1]} : vector<2x8x96xf32> to vector<2x8x8xf32>
    %154 = vector.extract_strided_slice %146 {offsets = [0, 0, 48], sizes = [2, 8, 8], strides = [1, 1, 1]} : vector<2x8x96xf32> to vector<2x8x8xf32>
    %155 = vector.extract_strided_slice %146 {offsets = [0, 0, 56], sizes = [2, 8, 8], strides = [1, 1, 1]} : vector<2x8x96xf32> to vector<2x8x8xf32>
    %156 = tpu.concatenate %152, %153, %154, %155 in 0 : vector<2x8x8xf32>, vector<2x8x8xf32>, vector<2x8x8xf32>, vector<2x8x8xf32> -> vector<8x8x8xf32>
    %157 = vector.extract_strided_slice %146 {offsets = [0, 0, 64], sizes = [2, 8, 8], strides = [1, 1, 1]} : vector<2x8x96xf32> to vector<2x8x8xf32>
    %158 = vector.extract_strided_slice %146 {offsets = [0, 0, 72], sizes = [2, 8, 8], strides = [1, 1, 1]} : vector<2x8x96xf32> to vector<2x8x8xf32>
    %159 = vector.extract_strided_slice %146 {offsets = [0, 0, 80], sizes = [2, 8, 8], strides = [1, 1, 1]} : vector<2x8x96xf32> to vector<2x8x8xf32>
    %160 = vector.extract_strided_slice %146 {offsets = [0, 0, 88], sizes = [2, 8, 8], strides = [1, 1, 1]} : vector<2x8x96xf32> to vector<2x8x8xf32>
    %161 = tpu.concatenate %157, %158, %159, %160 in 0 : vector<2x8x8xf32>, vector<2x8x8xf32>, vector<2x8x8xf32>, vector<2x8x8xf32> -> vector<8x8x8xf32>
    "tpu.trace_start"() <{level = 10 : i32, message = "nqd,nkd->nqk"}> : () -> ()
    %cst_49 = arith.constant dense<0.000000e+00> : vector<8x8x8xf32>
    %162 = tpu.matmul %151, %156, %cst_49 {dimension_numbers = #tpu.dot_dimension_numbers<[2], [2], [1], [1], [0, 0, 0, 1, 1, 1], [0], [0]>} : vector<8x8x8xf32>, vector<8x8x8xf32>, vector<8x8x8xf32> -> vector<8x8x8xf32>
    "tpu.trace_stop"() : () -> ()
    %163 = vector.broadcast %16 : vector<8x1x8xf32> to vector<8x8x8xf32>
    %164 = arith.addf %162, %163 : vector<8x8x8xf32>
    %cst_50 = arith.constant dense<0xFF800000> : vector<8x8xf32>
    %165 = vector.multi_reduction <maximumf>, %164, %cst_50 [2] : vector<8x8x8xf32> to vector<8x8xf32>
    %166 = vector.shape_cast %165 : vector<8x8xf32> to vector<8x8x1xf32>
    %167 = vector.broadcast %166 : vector<8x8x1xf32> to vector<8x8x8xf32>
    %168 = arith.subf %164, %167 : vector<8x8x8xf32>
    %169 = math.exp %168 : vector<8x8x8xf32>
    %cst_51 = arith.constant dense<0.000000e+00> : vector<8x8xf32>
    %170 = vector.multi_reduction <add>, %169, %cst_51 [2] : vector<8x8x8xf32> to vector<8x8xf32>
    %171 = vector.shape_cast %170 : vector<8x8xf32> to vector<8x8x1xf32>
    %172 = tpu.reciprocal %171 {approx = true} : vector<8x8x1xf32> -> vector<8x8x1xf32>
    %173 = vector.broadcast %172 : vector<8x8x1xf32> to vector<8x8x8xf32>
    %174 = arith.mulf %169, %173 : vector<8x8x8xf32>
    "tpu.trace_start"() <{level = 10 : i32, message = "nqk,nkd->nqd"}> : () -> ()
    %cst_52 = arith.constant dense<0.000000e+00> : vector<8x8x8xf32>
    %175 = tpu.matmul %174, %161, %cst_52 {dimension_numbers = #tpu.dot_dimension_numbers<[2], [1], [1], [2], [0, 0, 0, 1, 1, 2], [0], [0]>} : vector<8x8x8xf32>, vector<8x8x8xf32>, vector<8x8x8xf32> -> vector<8x8x8xf32>
    "tpu.trace_stop"() : () -> ()
    %176 = vector.extract_strided_slice %175 {offsets = [0, 0, 0], sizes = [2, 8, 8], strides = [1, 1, 1]} : vector<8x8x8xf32> to vector<2x8x8xf32>
    %177 = vector.extract_strided_slice %175 {offsets = [2, 0, 0], sizes = [2, 8, 8], strides = [1, 1, 1]} : vector<8x8x8xf32> to vector<2x8x8xf32>
    %178 = vector.extract_strided_slice %175 {offsets = [4, 0, 0], sizes = [2, 8, 8], strides = [1, 1, 1]} : vector<8x8x8xf32> to vector<2x8x8xf32>
    %179 = vector.extract_strided_slice %175 {offsets = [6, 0, 0], sizes = [2, 8, 8], strides = [1, 1, 1]} : vector<8x8x8xf32> to vector<2x8x8xf32>
    %180 = tpu.concatenate %176, %177, %178, %179 in 2 : vector<2x8x8xf32>, vector<2x8x8xf32>, vector<2x8x8xf32>, vector<2x8x8xf32> -> vector<2x8x32xf32>
    %181 = vector.shape_cast %180 : vector<2x8x32xf32> to vector<16x32xf32>
    %c1_53 = arith.constant 1 : index
    %c0_54 = arith.constant 0 : index
    %c0_55 = arith.constant 0 : index
    %182 = vector.load %arg6[%c1_53, %c0_54, %c0_55] : memref<2x32x32xf32, #tpu.memory_space<vmem>>, vector<1x32x32xf32>
    %183 = vector.shape_cast %182 : vector<1x32x32xf32> to vector<32x32xf32>
    %cst_56 = arith.constant dense<0.000000e+00> : vector<16x32xf32>
    %184 = tpu.matmul %181, %183, %cst_56 {dimension_numbers = #tpu.dot_dimension_numbers<[1], [0], [0], [1], [0, 0, 1, 1], [], []>} : vector<16x32xf32>, vector<32x32xf32>, vector<16x32xf32> -> vector<16x32xf32>
    %185 = vector.broadcast %134 : vector<1x32xf32> to vector<16x32xf32>
    %186 = arith.addf %184, %185 : vector<16x32xf32>
    %187 = arith.addf %130, %186 : vector<16x32xf32>
    %cst_57 = arith.constant dense<0.000000e+00> : vector<16xf32>
    %188 = vector.multi_reduction <add>, %187, %cst_57 [1] : vector<16x32xf32> to vector<16xf32>
    %189 = vector.shape_cast %188 : vector<16xf32> to vector<16x1xf32>
    %cst_58 = arith.constant 3.200000e+01 : f32
    %190 = vector.broadcast %cst_58 : f32 to vector<16x1xf32>
    %191 = arith.divf %189, %190 : vector<16x1xf32>
    %192 = vector.broadcast %191 : vector<16x1xf32> to vector<16x32xf32>
    %193 = arith.subf %187, %192 : vector<16x32xf32>
    %194 = arith.mulf %193, %193 : vector<16x32xf32>
    %cst_59 = arith.constant dense<0.000000e+00> : vector<16xf32>
    %195 = vector.multi_reduction <add>, %194, %cst_59 [1] : vector<16x32xf32> to vector<16xf32>
    %196 = vector.shape_cast %195 : vector<16xf32> to vector<16x1xf32>
    %cst_60 = arith.constant 3.200000e+01 : f32
    %197 = vector.broadcast %cst_60 : f32 to vector<16x1xf32>
    %198 = arith.divf %196, %197 : vector<16x1xf32>
    %199 = vector.broadcast %191 : vector<16x1xf32> to vector<16x32xf32>
    %200 = arith.subf %187, %199 : vector<16x32xf32>
    %cst_61 = arith.constant 9.99999974E-6 : f32
    %201 = vector.broadcast %cst_61 : f32 to vector<16x1xf32>
    %202 = arith.addf %198, %201 : vector<16x1xf32>
    %203 = math.rsqrt %202 : vector<16x1xf32>
    %204 = vector.broadcast %203 : vector<16x1xf32> to vector<16x32xf32>
    %205 = arith.mulf %200, %204 : vector<16x32xf32>
    %206 = vector.broadcast %137 : vector<1x32xf32> to vector<16x32xf32>
    %207 = arith.mulf %205, %206 : vector<16x32xf32>
    %208 = vector.broadcast %138 : vector<1x32xf32> to vector<16x32xf32>
    %209 = arith.addf %207, %208 : vector<16x32xf32>
    %c1_62 = arith.constant 1 : index
    %c0_63 = arith.constant 0 : index
    %c0_64 = arith.constant 0 : index
    %210 = vector.load %arg7[%c1_62, %c0_63, %c0_64] : memref<2x32x64xf32, #tpu.memory_space<vmem>>, vector<1x32x64xf32>
    %211 = vector.shape_cast %210 : vector<1x32x64xf32> to vector<32x64xf32>
    %cst_65 = arith.constant dense<0.000000e+00> : vector<16x64xf32>
    %212 = tpu.matmul %209, %211, %cst_65 {dimension_numbers = #tpu.dot_dimension_numbers<[1], [0], [0], [1], [0, 0, 1, 1], [], []>} : vector<16x32xf32>, vector<32x64xf32>, vector<16x64xf32> -> vector<16x64xf32>
    %213 = vector.broadcast %135 : vector<1x64xf32> to vector<16x64xf32>
    %214 = arith.addf %212, %213 : vector<16x64xf32>
    %cst_66 = arith.constant 0.000000e+00 : f32
    %215 = vector.broadcast %cst_66 : f32 to vector<16x64xf32>
    %216 = arith.maximumf %214, %215 : vector<16x64xf32>
    %c1_67 = arith.constant 1 : index
    %c0_68 = arith.constant 0 : index
    %c0_69 = arith.constant 0 : index
    %217 = vector.load %arg8[%c1_67, %c0_68, %c0_69] : memref<2x64x32xf32, #tpu.memory_space<vmem>>, vector<1x64x32xf32>
    %218 = vector.shape_cast %217 : vector<1x64x32xf32> to vector<64x32xf32>
    %cst_70 = arith.constant dense<0.000000e+00> : vector<16x32xf32>
    %219 = tpu.matmul %216, %218, %cst_70 {dimension_numbers = #tpu.dot_dimension_numbers<[1], [0], [0], [1], [0, 0, 1, 1], [], []>} : vector<16x64xf32>, vector<64x32xf32>, vector<16x32xf32> -> vector<16x32xf32>
    %220 = vector.broadcast %136 : vector<1x32xf32> to vector<16x32xf32>
    %221 = arith.addf %219, %220 : vector<16x32xf32>
    %222 = arith.addf %209, %221 : vector<16x32xf32>
    %cst_71 = arith.constant dense<0.000000e+00> : vector<16xf32>
    %223 = vector.multi_reduction <add>, %222, %cst_71 [1] : vector<16x32xf32> to vector<16xf32>
    %224 = vector.shape_cast %223 : vector<16xf32> to vector<16x1xf32>
    %cst_72 = arith.constant 3.200000e+01 : f32
    %225 = vector.broadcast %cst_72 : f32 to vector<16x1xf32>
    %226 = arith.divf %224, %225 : vector<16x1xf32>
    %227 = vector.broadcast %226 : vector<16x1xf32> to vector<16x32xf32>
    %228 = arith.subf %222, %227 : vector<16x32xf32>
    %229 = arith.mulf %228, %228 : vector<16x32xf32>
    %cst_73 = arith.constant dense<0.000000e+00> : vector<16xf32>
    %230 = vector.multi_reduction <add>, %229, %cst_73 [1] : vector<16x32xf32> to vector<16xf32>
    %231 = vector.shape_cast %230 : vector<16xf32> to vector<16x1xf32>
    %cst_74 = arith.constant 3.200000e+01 : f32
    %232 = vector.broadcast %cst_74 : f32 to vector<16x1xf32>
    %233 = arith.divf %231, %232 : vector<16x1xf32>
    %234 = vector.broadcast %226 : vector<16x1xf32> to vector<16x32xf32>
    %235 = arith.subf %222, %234 : vector<16x32xf32>
    %cst_75 = arith.constant 9.99999974E-6 : f32
    %236 = vector.broadcast %cst_75 : f32 to vector<16x1xf32>
    %237 = arith.addf %233, %236 : vector<16x1xf32>
    %238 = math.rsqrt %237 : vector<16x1xf32>
    %239 = vector.broadcast %238 : vector<16x1xf32> to vector<16x32xf32>
    %240 = arith.mulf %235, %239 : vector<16x32xf32>
    %241 = vector.broadcast %139 : vector<1x32xf32> to vector<16x32xf32>
    %242 = arith.mulf %240, %241 : vector<16x32xf32>
    %243 = vector.broadcast %140 : vector<1x32xf32> to vector<16x32xf32>
    %244 = arith.addf %242, %243 : vector<16x32xf32>
    %c0_76 = arith.constant 0 : index
    %c0_77 = arith.constant 0 : index
    %245 = vector.load %arg11[%c0_76, %c0_77] : memref<3x128xf32, #tpu.memory_space<vmem>>, vector<1x32xf32>
    %c1_78 = arith.constant 1 : index
    %c0_79 = arith.constant 0 : index
    %246 = vector.load %arg11[%c1_78, %c0_79] : memref<3x128xf32, #tpu.memory_space<vmem>>, vector<1x32xf32>
    %c2 = arith.constant 2 : index
    %c0_80 = arith.constant 0 : index
    %247 = vector.load %arg11[%c2, %c0_80] : memref<3x128xf32, #tpu.memory_space<vmem>>, vector<1x128xf32>
    %cst_81 = arith.constant dense<0.000000e+00> : vector<16xf32>
    %248 = vector.multi_reduction <add>, %244, %cst_81 [1] : vector<16x32xf32> to vector<16xf32>
    %249 = vector.shape_cast %248 : vector<16xf32> to vector<16x1xf32>
    %cst_82 = arith.constant 3.200000e+01 : f32
    %250 = vector.broadcast %cst_82 : f32 to vector<16x1xf32>
    %251 = arith.divf %249, %250 : vector<16x1xf32>
    %252 = vector.broadcast %251 : vector<16x1xf32> to vector<16x32xf32>
    %253 = arith.subf %244, %252 : vector<16x32xf32>
    %254 = arith.mulf %253, %253 : vector<16x32xf32>
    %cst_83 = arith.constant dense<0.000000e+00> : vector<16xf32>
    %255 = vector.multi_reduction <add>, %254, %cst_83 [1] : vector<16x32xf32> to vector<16xf32>
    %256 = vector.shape_cast %255 : vector<16xf32> to vector<16x1xf32>
    %cst_84 = arith.constant 3.200000e+01 : f32
    %257 = vector.broadcast %cst_84 : f32 to vector<16x1xf32>
    %258 = arith.divf %256, %257 : vector<16x1xf32>
    %259 = vector.broadcast %251 : vector<16x1xf32> to vector<16x32xf32>
    %260 = arith.subf %244, %259 : vector<16x32xf32>
    %cst_85 = arith.constant 9.99999974E-6 : f32
    %261 = vector.broadcast %cst_85 : f32 to vector<16x1xf32>
    %262 = arith.addf %258, %261 : vector<16x1xf32>
    %263 = math.rsqrt %262 : vector<16x1xf32>
    %264 = vector.broadcast %263 : vector<16x1xf32> to vector<16x32xf32>
    %265 = arith.mulf %260, %264 : vector<16x32xf32>
    %266 = vector.broadcast %245 : vector<1x32xf32> to vector<16x32xf32>
    %267 = arith.mulf %265, %266 : vector<16x32xf32>
    %268 = vector.broadcast %246 : vector<1x32xf32> to vector<16x32xf32>
    %269 = arith.addf %267, %268 : vector<16x32xf32>
    %270 = vector.shape_cast %269 : vector<16x32xf32> to vector<2x8x32xf32>
    %cst_86 = arith.constant dense<0.000000e+00> : vector<2x32xf32>
    %271 = vector.multi_reduction <add>, %270, %cst_86 [1] : vector<2x8x32xf32> to vector<2x32xf32>
    %cst_87 = arith.constant 8.000000e+00 : f32
    %272 = vector.broadcast %cst_87 : f32 to vector<2x32xf32>
    %273 = arith.divf %271, %272 : vector<2x32xf32>
    %c0_88 = arith.constant 0 : index
    %c0_89 = arith.constant 0 : index
    %274 = vector.load %arg10[%c0_88, %c0_89] : memref<32x128xf32, #tpu.memory_space<vmem>>, vector<32x128xf32>
    %cst_90 = arith.constant dense<0.000000e+00> : vector<2x128xf32>
    %275 = tpu.matmul %273, %274, %cst_90 {dimension_numbers = #tpu.dot_dimension_numbers<[1], [0], [0], [1], [0, 0, 1, 1], [], []>} : vector<2x32xf32>, vector<32x128xf32>, vector<2x128xf32> -> vector<2x128xf32>
    %276 = vector.broadcast %247 : vector<1x128xf32> to vector<2x128xf32>
    %277 = arith.addf %275, %276 : vector<2x128xf32>
    %278 = vector.shape_cast %277 : vector<2x128xf32> to vector<2x1x128xf32>
    %c0_91 = arith.constant 0 : index
    %c0_92 = arith.constant 0 : index
    %c0_93 = arith.constant 0 : index
    %279 = vector.load %arg12[%c0_91, %c0_92, %c0_93] : memref<2x1x128xf32, #tpu.memory_space<vmem>>, vector<2x1x128xf32>
    tpu.vector_store %arg12[%c0_91, %c0_92, %c0_93], %278 {strides = array<i32>} : memref<2x1x128xf32, #tpu.memory_space<vmem>>, vector<2x1x128xf32>,
    return
  }
  func.func @transform_0(%arg0: i32) -> (i32, i32, i32) {
    %c0_i32 = arith.constant 0 : i32
    %c0_i32_0 = arith.constant 0 : i32
    %c0_i32_1 = arith.constant 0 : i32
    return %arg0, %c0_i32, %c0_i32_0 : i32, i32, i32
  }
  func.func @transform_1(%arg0: i32) -> (i32, i32, i32) {
    %c0_i32 = arith.constant 0 : i32
    %c0_i32_0 = arith.constant 0 : i32
    %c0_i32_1 = arith.constant 0 : i32
    return %arg0, %c0_i32, %c0_i32_0 : i32, i32, i32
  }
  func.func @transform_2(%arg0: i32) -> (i32, i32) {
    %c0_i32 = arith.constant 0 : i32
    %c0_i32_0 = arith.constant 0 : i32
    %c0_i32_1 = arith.constant 0 : i32
    return %c0_i32, %c0_i32_0 : i32, i32
  }
  func.func @transform_3(%arg0: i32) -> (i32, i32) {
    %c0_i32 = arith.constant 0 : i32
    %c0_i32_0 = arith.constant 0 : i32
    %c0_i32_1 = arith.constant 0 : i32
    return %c0_i32, %c0_i32_0 : i32, i32
  }
  func.func @transform_4(%arg0: i32) -> (i32, i32, i32) {
    %c0_i32 = arith.constant 0 : i32
    %c0_i32_0 = arith.constant 0 : i32
    %c0_i32_1 = arith.constant 0 : i32
    %c0_i32_2 = arith.constant 0 : i32
    return %c0_i32, %c0_i32_0, %c0_i32_1 : i32, i32, i32
  }
  func.func @transform_5(%arg0: i32) -> (i32, i32, i32) {
    %c0_i32 = arith.constant 0 : i32
    %c0_i32_0 = arith.constant 0 : i32
    %c0_i32_1 = arith.constant 0 : i32
    %c0_i32_2 = arith.constant 0 : i32
    return %c0_i32, %c0_i32_0, %c0_i32_1 : i32, i32, i32
  }
  func.func @transform_6(%arg0: i32) -> (i32, i32, i32) {
    %c0_i32 = arith.constant 0 : i32
    %c0_i32_0 = arith.constant 0 : i32
    %c0_i32_1 = arith.constant 0 : i32
    %c0_i32_2 = arith.constant 0 : i32
    return %c0_i32, %c0_i32_0, %c0_i32_1 : i32, i32, i32
  }
  func.func @transform_7(%arg0: i32) -> (i32, i32, i32) {
    %c0_i32 = arith.constant 0 : i32
    %c0_i32_0 = arith.constant 0 : i32
    %c0_i32_1 = arith.constant 0 : i32
    %c0_i32_2 = arith.constant 0 : i32
    return %c0_i32, %c0_i32_0, %c0_i32_1 : i32, i32, i32
  }
  func.func @transform_8(%arg0: i32) -> (i32, i32, i32) {
    %c0_i32 = arith.constant 0 : i32
    %c0_i32_0 = arith.constant 0 : i32
    %c0_i32_1 = arith.constant 0 : i32
    %c0_i32_2 = arith.constant 0 : i32
    return %c0_i32, %c0_i32_0, %c0_i32_1 : i32, i32, i32
  }
  func.func @transform_9(%arg0: i32) -> (i32, i32) {
    %c0_i32 = arith.constant 0 : i32
    %c0_i32_0 = arith.constant 0 : i32
    %c0_i32_1 = arith.constant 0 : i32
    return %c0_i32, %c0_i32_0 : i32, i32
  }
  func.func @transform_10(%arg0: i32) -> (i32, i32) {
    %c0_i32 = arith.constant 0 : i32
    %c0_i32_0 = arith.constant 0 : i32
    %c0_i32_1 = arith.constant 0 : i32
    return %c0_i32, %c0_i32_0 : i32, i32
  }
  func.func @transform_11(%arg0: i32) -> (i32, i32, i32) {
    %c0_i32 = arith.constant 0 : i32
    %c0_i32_0 = arith.constant 0 : i32
    %c0_i32_1 = arith.constant 0 : i32
    return %arg0, %c0_i32, %c0_i32_0 : i32, i32, i32
  }
}

</mosaic_0001>

<llo_original>
// kernel: _lambda_.1
$region0: #{_lambda_.1}
  #allocation0 [shape = 'u32[]', space=smem, size = 0x4, offset = 0x4, fixed_abs, tag = 'smem constant byte address 0x4 - core index']
  #allocation1 [shape = 'u32[144,128]{1,0:T(1,128)}', space=vmem, size = 0x12000, scoped, tag = 'internal scratch']
  %s0 = inlined_call_operand.vmem [shape: s32[2,8,1], index: 0, kind: input, shape index: {}]
  %s1 = inlined_call_operand.vmem [shape: f32[2,1,8], index: 1, kind: input, shape index: {}]
  %s2 = inlined_call_operand.vmem [shape: f32[8,32], index: 2, kind: input, shape index: {}]
  %s3 = inlined_call_operand.hbm [shape: f32[56,32], index: 3, kind: input, shape index: {}]
  %s4 = inlined_call_operand.hbm [shape: f32[2,32,96], index: 4, kind: input, shape index: {}]
  %s5 = inlined_call_operand.hbm [shape: f32[2,32,32], index: 5, kind: input, shape index: {}]
  %s6 = inlined_call_operand.hbm [shape: f32[2,32,64], index: 6, kind: input, shape index: {}]
  %s7 = inlined_call_operand.hbm [shape: f32[2,64,32], index: 7, kind: input, shape index: {}]
  %s8 = inlined_call_operand.hbm [shape: f32[2,8,128], index: 8, kind: input, shape index: {}]
  %s9 = inlined_call_operand.vmem [shape: f32[32,128], index: 9, kind: input, shape index: {}]
  %s10 = inlined_call_operand.hbm [shape: f32[3,128], index: 10, kind: input, shape index: {}]
  %s11 = inlined_call_operand.hbm [shape: f32[2,1,128], index: 11, kind: output, shape index: {}]
  %s12 = sld [smem:[#allocation0]]
  $region82: #{_lambda_.1} parent=0
    _
  %s14 = ssub.s32 1, %s12
  %s15 = scalar_select 0, %s14, %s12
  $region1: #{_lambda_.1} parent=0
    #allocation2 [shape = 'u8[28672]{0}', space=vmem, size = 0x7000, scoped, tag = 'input window, operand 3, single buffered']
    #allocation3 [shape = 's32[1]{0}', space=sflag, size = 0x4, scoped, tag = 'scoped memory for _lambda_.1']
    #allocation4 [shape = 's32[1]{0}', space=sflag, size = 0x4, scoped, tag = 'scoped memory for _lambda_.1']
    #allocation5 [shape = 'u8[32768]{0}', space=vmem, size = 0x8000, scoped, tag = 'input window, operand 4, single buffered']
    #allocation6 [shape = 's32[1]{0}', space=sflag, size = 0x4, scoped, tag = 'scoped memory for _lambda_.1']
    #allocation7 [shape = 'u8[32768]{0}', space=vmem, size = 0x8000, scoped, tag = 'input window, operand 5, single buffered']
    #allocation8 [shape = 'u8[32768]{0}', space=vmem, size = 0x8000, scoped, tag = 'input window, operand 6, single buffered']
    #allocation9 [shape = 's32[1]{0}', space=sflag, size = 0x4, scoped, tag = 'scoped memory for _lambda_.1']
    #allocation10 [shape = 'u8[65536]{0}', space=vmem, size = 0x10000, scoped, tag = 'input window, operand 7, single buffered']
    #allocation11 [shape = 'u8[8192]{0}', space=vmem, size = 0x2000, scoped, tag = 'input window, operand 8, single buffered']
    #allocation12 [shape = 's32[1]{0}', space=sflag, size = 0x4, scoped, tag = 'scoped memory for _lambda_.1']
    #allocation13 [shape = 'u8[2048]{0}', space=vmem, size = 0x800, scoped, tag = 'input window, operand 10, single buffered']
    #allocation14 [shape = 'u8[1024]{0}', space=vmem, size = 0x400, scoped, tag = 'output window, operand 0, single buffered']
    %16 = vsyncpa [#allocation3], 0
    %17 = vsyncpa [#allocation6], 0
    %18 = vsyncpa [#allocation9], 0
    %19 = vsyncpa [#allocation12], 0
    %20 = vsyncpa [#allocation4], 0
    // Predicated region
    $region2: #{_lambda_.1} parent=1 // pred_check
      _
    $region3: #{_lambda_.1} parent=1 // pred_check_branch
      %22 = sbr.rel (0) target = $region5
    $region4: #{_lambda_.1} parent=1 // pred_region
      _
    $region5: #{_lambda_.1} parent=1 // pred_fallthru
      _
    // Predicated region
    $region6: #{_lambda_.1} parent=1 // pred_check
      _
    $region7: #{_lambda_.1} parent=1 // pred_check_branch
      %24 = sbr.rel (0) target = $region9
    $region8: #{_lambda_.1} parent=1 // pred_region
      _
    $region9: #{_lambda_.1} parent=1 // pred_fallthru
      _
    // Predicated region
    $region10: #{_lambda_.1} parent=1 // pred_check
      _
    $region11: #{_lambda_.1} parent=1 // pred_check_branch
      %26 = sbr.rel (0) target = $region13
    $region12: #{_lambda_.1} parent=1 // pred_region
      _
    $region13: #{_lambda_.1} parent=1 // pred_fallthru
      _
    // Predicated region
    $region14: #{_lambda_.1} parent=1 // pred_check
      _
    $region15: #{_lambda_.1} parent=1 // pred_check_branch
      %28 = sbr.rel (0) target = $region17
    $region16: #{_lambda_.1} parent=1 // pred_region
      %s30 = ssub.s32 896, 896
      %31 = vsyncadd [#allocation3], %s30
      %s32 = sshll.u32 [#allocation2], 4
      %s33 = int_to_ptr.vmem [resolvable:$true] %s32
      %38 = dma.hbm_to_vmem [thread:$0]  %s3, 896, %s33, [#allocation3], 128, 128, 8
    $region17: #{_lambda_.1} parent=1 // pred_fallthru
      _
    // Predicated region
    $region18: #{_lambda_.1} parent=1 // pred_check
      _
    $region19: #{_lambda_.1} parent=1 // pred_check_branch
      %40 = sbr.rel (0) target = $region21
    $region20: #{_lambda_.1} parent=1 // pred_region
      %s42 = ssub.s32 1024, 1024
      %43 = vsyncadd [#allocation6], %s42
      %s44 = sshll.u32 [#allocation5], 4
      %s45 = int_to_ptr.vmem [resolvable:$true] %s44
      %50 = dma.hbm_to_vmem [thread:$0]  %s4, 1024, %s45, [#allocation6], 128, 128, 8
    $region21: #{_lambda_.1} parent=1 // pred_fallthru
      _
    // Predicated region
    $region22: #{_lambda_.1} parent=1 // pred_check
      _
    $region23: #{_lambda_.1} parent=1 // pred_check_branch
      %52 = sbr.rel (0) target = $region25
    $region24: #{_lambda_.1} parent=1 // pred_region
      %s54 = ssub.s32 1024, 1024
      %55 = vsyncadd [#allocation6], %s54
      %s56 = sshll.u32 [#allocation7], 4
      %s57 = int_to_ptr.vmem [resolvable:$true] %s56
      %62 = dma.hbm_to_vmem [thread:$0]  %s5, 1024, %s57, [#allocation6], 128, 128, 8
    $region25: #{_lambda_.1} parent=1 // pred_fallthru
      _
    // Predicated region
    $region26: #{_lambda_.1} parent=1 // pred_check
      _
    $region27: #{_lambda_.1} parent=1 // pred_check_branch
      %64 = sbr.rel (0) target = $region29
    $region28: #{_lambda_.1} parent=1 // pred_region
      %s66 = ssub.s32 1024, 1024
      %67 = vsyncadd [#allocation9], %s66
      %s68 = sshll.u32 [#allocation8], 4
      %s69 = int_to_ptr.vmem [resolvable:$true] %s68
      %74 = dma.hbm_to_vmem [thread:$0]  %s6, 1024, %s69, [#allocation9], 128, 128, 8
    $region29: #{_lambda_.1} parent=1 // pred_fallthru
      _
    // Predicated region
    $region30: #{_lambda_.1} parent=1 // pred_check
      _
    $region31: #{_lambda_.1} parent=1 // pred_check_branch
      %76 = sbr.rel (0) target = $region33
    $region32: #{_lambda_.1} parent=1 // pred_region
      %s78 = ssub.s32 2048, 2048
      %79 = vsyncadd [#allocation9], %s78
      %s80 = sshll.u32 [#allocation10], 4
      %s81 = int_to_ptr.vmem [resolvable:$true] %s80
      %86 = dma.hbm_to_vmem [thread:$0]  %s7, 2048, %s81, [#allocation9], 128, 128, 8
    $region33: #{_lambda_.1} parent=1 // pred_fallthru
      _
    // Predicated region
    $region34: #{_lambda_.1} parent=1 // pred_check
      _
    $region35: #{_lambda_.1} parent=1 // pred_check_branch
      %88 = sbr.rel (0) target = $region37
    $region36: #{_lambda_.1} parent=1 // pred_region
      %s90 = ssub.s32 256, 256
      %91 = vsyncadd [#allocation12], %s90
      %s92 = sshll.u32 [#allocation11], 4
      %s93 = int_to_ptr.vmem [resolvable:$true] %s92
      %98 = dma.hbm_to_vmem [thread:$0]  %s8, 256, %s93, [#allocation12], 128, 128, 8
    $region37: #{_lambda_.1} parent=1 // pred_fallthru
      _
    // Predicated region
    $region38: #{_lambda_.1} parent=1 // pred_check
      _
    $region39: #{_lambda_.1} parent=1 // pred_check_branch
      %100 = sbr.rel (0) target = $region41
    $region40: #{_lambda_.1} parent=1 // pred_region
      _
    $region41: #{_lambda_.1} parent=1 // pred_fallthru
      _
    // Predicated region
    $region42: #{_lambda_.1} parent=1 // pred_check
      _
    $region43: #{_lambda_.1} parent=1 // pred_check_branch
      %102 = sbr.rel (0) target = $region45
    $region44: #{_lambda_.1} parent=1 // pred_region
      %s104 = ssub.s32 64, 64
      %105 = vsyncadd [#allocation12], %s104
      %s107 = sshll.u32 [#allocation13], 4
      %s108 = int_to_ptr.vmem [resolvable:$true] %s107
      %110 = dma.hbm_to_vmem [thread:$0]  %s10, 64, %s108, [#allocation12]
    $region45: #{_lambda_.1} parent=1 // pred_fallthru
      _
    // Predicated region
    $region46: #{_lambda_.1} parent=1 // pred_check
      _
    $region47: #{_lambda_.1} parent=1 // pred_check_branch
      %112 = sbr.rel (0) target = $region49
    $region48: #{_lambda_.1} parent=1 // pred_region
      %113 = dma.done [#allocation3], 896
    $region49: #{_lambda_.1} parent=1 // pred_fallthru
      _
    // Predicated region
    $region50: #{_lambda_.1} parent=1 // pred_check
      _
    $region51: #{_lambda_.1} parent=1 // pred_check_branch
      %115 = sbr.rel (0) target = $region53
    $region52: #{_lambda_.1} parent=1 // pred_region
      %116 = dma.done [#allocation6], 1024
    $region53: #{_lambda_.1} parent=1 // pred_fallthru
      _
    // Predicated region
    $region54: #{_lambda_.1} parent=1 // pred_check
      _
    $region55: #{_lambda_.1} parent=1 // pred_check_branch
      %118 = sbr.rel (0) target = $region57
    $region56: #{_lambda_.1} parent=1 // pred_region
      %119 = dma.done [#allocation6], 1024
    $region57: #{_lambda_.1} parent=1 // pred_fallthru
      _
    // Predicated region
    $region58: #{_lambda_.1} parent=1 // pred_check
      _
    $region59: #{_lambda_.1} parent=1 // pred_check_branch
      %121 = sbr.rel (0) target = $region61
    $region60: #{_lambda_.1} parent=1 // pred_region
      %122 = dma.done [#allocation9], 1024
    $region61: #{_lambda_.1} parent=1 // pred_fallthru
      _
    // Predicated region
    $region62: #{_lambda_.1} parent=1 // pred_check
      _
    $region63: #{_lambda_.1} parent=1 // pred_check_branch
      %124 = sbr.rel (0) target = $region65
    $region64: #{_lambda_.1} parent=1 // pred_region
      %125 = dma.done [#allocation9], 2048
    $region65: #{_lambda_.1} parent=1 // pred_fallthru
      _
    // Predicated region
    $region66: #{_lambda_.1} parent=1 // pred_check
      _
    $region67: #{_lambda_.1} parent=1 // pred_check_branch
      %127 = sbr.rel (0) target = $region69
    $region68: #{_lambda_.1} parent=1 // pred_region
      %128 = dma.done [#allocation12], 256
    $region69: #{_lambda_.1} parent=1 // pred_fallthru
      _
    // Predicated region
    $region70: #{_lambda_.1} parent=1 // pred_check
      _
    $region71: #{_lambda_.1} parent=1 // pred_check_branch
      %130 = sbr.rel (0) target = $region73
    $region72: #{_lambda_.1} parent=1 // pred_region
      %131 = dma.done [#allocation12], 64
    $region73: #{_lambda_.1} parent=1 // pred_fallthru
      _
    %v132 = vld [vmem:[%s0] sm:$0xff]
    %v133 = vld [vmem:[%s0 + $0x8] sm:$0xff]
    %v134 = vlaneseq
    %v135 = vand.u32 %v134, 127
    %136 = vset.pattern.permute.xlu0 0
    %137 = vperm.xlu0 %136, %v132
    %v138 = vpop.permute.xlu0 %137
    %139 = vset.pattern.permute.xlu0 0
    %140 = vperm.xlu0 %139, %v133
    %v141 = vpop.permute.xlu0 %140
    %vm142 = vcmp.eq.s32.totalorder %v135, %v138
    %vm143 = vcmp.eq.s32.totalorder %v135, %v141
    %v144 = vsel %vm142, 1, 0
    %v145 = vsel %vm143, 1, 0
    %v146 = vcvt.s32.f32 %v144
    %v147 = vcvt.s32.f32 %v145
    %v148 = vld [vmem:[#allocation2] sm:$0xff]
    %v149 = vld [vmem:[#allocation2 + $0x8] sm:$0xff]
    %v150 = vld [vmem:[#allocation2 + $0x10] sm:$0xff]
    %v151 = vld [vmem:[#allocation2 + $0x18] sm:$0xff]
    %v152 = vld [vmem:[#allocation2 + $0x20] sm:$0xff]
    %v153 = vld [vmem:[#allocation2 + $0x28] sm:$0xff]
    %v154 = vld [vmem:[#allocation2 + $0x30] sm:$0xff]
    %vm155 = vcmask 457728
    %v157 = vsel %vm155, %v146, 0
    %v160 = vsel %vm155, %v147, 0
    %162 = vmatprep.subr.mxu0 0.0
    %163 = vmatpush1.msra.mxu0 0.0
    %164 = vmatprep.subr.mxu0 0.0
    %165 = vmatpush1.msra.mxu0 0.0
    %166 = vmatprep.subr.mxu0 0.0
    %167 = vmatpush1.msra.mxu0 0.0
    %168 = vmatprep.subr.mxu0 0.0
    %169 = vmatpush1.msra.mxu0 0.0
    %170 = vmatprep.subr.mxu0 0.0
    %171 = vmatpush1.msra.mxu0 0.0
    %172 = vmatprep.subr.mxu0 0.0
    %173 = vmatpush1.msra.mxu0 0.0
    %174 = vmatprep.subr.mxu0 0.0
    %175 = vmatpush1.msra.mxu0 0.0
    %176 = vmatprep.subr.mxu0 0.0
    %177 = vmatpush1.msra.mxu0 0.0
    %178 = vmatprep.subr.mxu0 0.0
    %179 = vmatpush1.msra.mxu0 0.0
    %180 = vmatprep.subr.mxu0 0.0
    %181 = vmatpush1.msra.mxu0 %v154
    %182 = vmatprep.subr.mxu0 0.0
    %183 = vmatpush1.msra.mxu0 %v153
    %184 = vmatprep.subr.mxu0 0.0
    %185 = vmatpush1.msra.mxu0 %v152
    %186 = vmatprep.subr.mxu0 0.0
    %187 = vmatpush1.msra.mxu0 %v151
    %188 = vmatprep.subr.mxu0 0.0
    %189 = vmatpush1.msra.mxu0 %v150
    %190 = vmatprep.subr.mxu0 0.0
    %191 = vmatpush1.msra.mxu0 %v149
    %192 = vmatprep.subr.mxu0 0.0
    %193 = vmatpush1.msra.mxu0 %v148
    %194 = vmatprep.subr.mxu0 0.0
    %195 = vmatpush2.msra.mxu0 0.0
    %196 = vmatprep.subr.mxu0 0.0
    %197 = vmatpush2.msra.mxu0 0.0
    %198 = vmatprep.subr.mxu0 0.0
    %199 = vmatpush2.msra.mxu0 0.0
    %200 = vmatprep.subr.mxu0 0.0
    %201 = vmatpush2.msra.mxu0 0.0
    %202 = vmatprep.subr.mxu0 0.0
    %203 = vmatpush2.msra.mxu0 0.0
    %204 = vmatprep.subr.mxu0 0.0
    %205 = vmatpush2.msra.mxu0 0.0
    %206 = vmatprep.subr.mxu0 0.0
    %207 = vmatpush2.msra.mxu0 0.0
    %208 = vmatprep.subr.mxu0 0.0
    %209 = vmatpush2.msra.mxu0 0.0
    %210 = vmatprep.subr.mxu0 0.0
    %211 = vmatpush2.msra.mxu0 0.0
    %212 = vmatprep.subr.mxu0 0.0
    %213 = vmatpush2.msra.mxu0 0.0
    %214 = vmatprep.subr.mxu0 0.0
    %215 = vmatpush2.msra.mxu0 0.0
    %216 = vmatprep.subr.mxu0 0.0
    %217 = vmatpush2.msra.mxu0 0.0
    %218 = vmatprep.subr.mxu0 0.0
    %219 = vmatpush2.msra.mxu0 0.0
    %220 = vmatprep.subr.mxu0 0.0
    %221 = vmatpush2.msra.mxu0 0.0
    %222 = vmatprep.subr.mxu0 0.0
    %223 = vmatpush2.msra.mxu0 0.0
    %224 = vmatprep.subr.mxu0 0.0
    %225 = vmatpush2.msra.mxu0 0.0
    %226 = vmatprep.mubr.f32.mxu0 0.0
    %227 = vmatmul.mubr.f32.gmra.mxu0 %v157
    %v228 = vpop.f32.mrf.mxu0
    %v229 = vadd.f32 0.0, %v228
    %v230 = vpop.f32.mrf.mxu0
    %231 = vmatprep.mubr.f32.mxu0 0.0
    %232 = vmatmul.mubr.f32.gmra.mxu0 %v160
    %v233 = vpop.f32.mrf.mxu0
    %v234 = vadd.f32 0.0, %v233
    %v235 = vpop.f32.mrf.mxu0
    %236 = vdwg.mxu0
    %v237 = vld [vmem:[%s2] sm:$0xff]
    %v238 = vadd.f32 %v229, %v237
    %v239 = vadd.f32 %v234, %v237
    %v240 = vld [vmem:[%s1] sm:$0x1]
    %v241 = vld [vmem:[%s1 + $0x1] sm:$0x1]
    %v242 = vld [vmem:[#allocation11] sm:$0xff]
    %v243 = vld [vmem:[#allocation5] sm:$0xff]
    %v244 = vld [vmem:[#allocation5 + $0x8] sm:$0xff]
    %v245 = vld [vmem:[#allocation5 + $0x10] sm:$0xff]
    %v246 = vld [vmem:[#allocation5 + $0x18] sm:$0xff]
    %v247 = vlaneseq
    %v248 = vshrl.u32 %v247, 7
    %v249 = vsub.s32 0, %v248
    %v250 = vrot.slane %v242, %v249
    %vm251 = vcmask 261120
    %v253 = vsel %vm251, %v238, 0
    %v256 = vsel %vm251, %v239, 0
    %258 = vmatprep.subr.mxu0 0.0
    %259 = vmatpush1.msra.mxu0 0.0
    %260 = vmatprep.subr.mxu0 0.0
    %261 = vmatpush1.msra.mxu0 0.0
    %262 = vmatprep.subr.mxu0 0.0
    %263 = vmatpush1.msra.mxu0 0.0
    %264 = vmatprep.subr.mxu0 0.0
    %265 = vmatpush1.msra.mxu0 0.0
    %266 = vmatprep.subr.mxu0 0.0
    %267 = vmatpush1.msra.mxu0 0.0
    %268 = vmatprep.subr.mxu0 0.0
    %269 = vmatpush1.msra.mxu0 0.0
    %270 = vmatprep.subr.mxu0 0.0
    %271 = vmatpush1.msra.mxu0 0.0
    %272 = vmatprep.subr.mxu0 0.0
    %273 = vmatpush1.msra.mxu0 0.0
    %274 = vmatprep.subr.mxu0 0.0
    %275 = vmatpush1.msra.mxu0 0.0
    %276 = vmatprep.subr.mxu0 0.0
    %277 = vmatpush1.msra.mxu0 0.0
    %278 = vmatprep.subr.mxu0 0.0
    %279 = vmatpush1.msra.mxu0 0.0
    %280 = vmatprep.subr.mxu0 0.0
    %281 = vmatpush1.msra.mxu0 0.0
    %282 = vmatprep.subr.mxu0 0.0
    %283 = vmatpush1.msra.mxu0 %v246
    %284 = vmatprep.subr.mxu0 0.0
    %285 = vmatpush1.msra.mxu0 %v245
    %286 = vmatprep.subr.mxu0 0.0
    %287 = vmatpush1.msra.mxu0 %v244
    %288 = vmatprep.subr.mxu0 0.0
    %289 = vmatpush1.msra.mxu0 %v243
    %290 = vmatprep.subr.mxu0 0.0
    %291 = vmatpush2.msra.mxu0 0.0
    %292 = vmatprep.subr.mxu0 0.0
    %293 = vmatpush2.msra.mxu0 0.0
    %294 = vmatprep.subr.mxu0 0.0
    %295 = vmatpush2.msra.mxu0 0.0
    %296 = vmatprep.subr.mxu0 0.0
    %297 = vmatpush2.msra.mxu0 0.0
    %298 = vmatprep.subr.mxu0 0.0
    %299 = vmatpush2.msra.mxu0 0.0
    %300 = vmatprep.subr.mxu0 0.0
    %301 = vmatpush2.msra.mxu0 0.0
    %302 = vmatprep.subr.mxu0 0.0
    %303 = vmatpush2.msra.mxu0 0.0
    %304 = vmatprep.subr.mxu0 0.0
    %305 = vmatpush2.msra.mxu0 0.0
    %306 = vmatprep.subr.mxu0 0.0
    %307 = vmatpush2.msra.mxu0 0.0
    %308 = vmatprep.subr.mxu0 0.0
    %309 = vmatpush2.msra.mxu0 0.0
    %310 = vmatprep.subr.mxu0 0.0
    %311 = vmatpush2.msra.mxu0 0.0
    %312 = vmatprep.subr.mxu0 0.0
    %313 = vmatpush2.msra.mxu0 0.0
    %314 = vmatprep.subr.mxu0 0.0
    %315 = vmatpush2.msra.mxu0 0.0
    %316 = vmatprep.subr.mxu0 0.0
    %317 = vmatpush2.msra.mxu0 0.0
    %318 = vmatprep.subr.mxu0 0.0
    %319 = vmatpush2.msra.mxu0 0.0
    %320 = vmatprep.subr.mxu0 0.0
    %321 = vmatpush2.msra.mxu0 0.0
    %322 = vmatprep.mubr.f32.mxu0 0.0
    %323 = vmatmul.mubr.f32.gmra.mxu0 %v253
    %v324 = vpop.f32.mrf.mxu0
    %v325 = vadd.f32 %v250, %v324
    %v326 = vpop.f32.mrf.mxu0
    %327 = vmatprep.mubr.f32.mxu0 0.0
    %328 = vmatmul.mubr.f32.gmra.mxu0 %v256
    %v329 = vpop.f32.mrf.mxu0
    %v330 = vadd.f32 %v250, %v329
    %v331 = vpop.f32.mrf.mxu0
    %332 = vdwg.mxu0
    %335 = vrot.lane.b32.xlu0 %v325, 120
    %v336 = vpop.permute.xlu0 %335
    %337 = vrot.lane.b32.xlu0 %v330, 120
    %v338 = vpop.permute.xlu0 %337
    %339 = vrot.lane.b32.xlu0 %v325, 112
    %v340 = vpop.permute.xlu0 %339
    %341 = vrot.lane.b32.xlu0 %v330, 112
    %v342 = vpop.permute.xlu0 %341
    %343 = vrot.lane.b32.xlu0 %v325, 104
    %v344 = vpop.permute.xlu0 %343
    %345 = vrot.lane.b32.xlu0 %v330, 104
    %v346 = vpop.permute.xlu0 %345
    %v349 = vlaneseq
    %v350 = vshrl.u32 %v349, 7
    %v351 = vsub.s32 0, %v350
    %v352 = vrot.slane %v240, %v351
    %v353 = vlaneseq
    %v354 = vshrl.u32 %v353, 7
    %v355 = vsub.s32 0, %v354
    %v356 = vrot.slane %v241, %v355
    %359 = vrot.lane.b32.xlu0 %v325, 96
    %v360 = vpop.permute.xlu0 %359
    %vm361 = vcmask 64512
    %v362 = vsel %vm361, %v325, 0
    %v364 = vsel %vm361, %v360, 0
    %366 = vmatprep.subr.mxu0 0.0
    %367 = vmatpush1.xpose.msra.mxu0 0.0
    %368 = vmatprep.subr.mxu0 0.0
    %369 = vmatpush1.xpose.msra.mxu0 0.0
    %370 = vmatprep.subr.mxu0 0.0
    %371 = vmatpush1.xpose.msra.mxu0 0.0
    %372 = vmatprep.subr.mxu0 0.0
    %373 = vmatpush1.xpose.msra.mxu0 0.0
    %374 = vmatprep.subr.mxu0 0.0
    %375 = vmatpush1.xpose.msra.mxu0 0.0
    %376 = vmatprep.subr.mxu0 0.0
    %377 = vmatpush1.xpose.msra.mxu0 0.0
    %378 = vmatprep.subr.mxu0 0.0
    %379 = vmatpush1.xpose.msra.mxu0 0.0
    %380 = vmatprep.subr.mxu0 0.0
    %381 = vmatpush1.xpose.msra.mxu0 0.0
    %382 = vmatprep.subr.mxu0 0.0
    %383 = vmatpush1.xpose.msra.mxu0 0.0
    %384 = vmatprep.subr.mxu0 0.0
    %385 = vmatpush1.xpose.msra.mxu0 0.0
    %386 = vmatprep.subr.mxu0 0.0
    %387 = vmatpush1.xpose.msra.mxu0 0.0
    %388 = vmatprep.subr.mxu0 0.0
    %389 = vmatpush1.xpose.msra.mxu0 0.0
    %390 = vmatprep.subr.mxu0 0.0
    %391 = vmatpush1.xpose.msra.mxu0 0.0
    %392 = vmatprep.subr.mxu0 0.0
    %393 = vmatpush1.xpose.msra.mxu0 0.0
    %394 = vmatprep.subr.mxu0 0.0
    %395 = vmatpush1.xpose.msra.mxu0 0.0
    %396 = vmatprep.subr.mxu0 0.0
    %397 = vmatpush1.xpose.msra.mxu0 %v364
    %398 = vmatprep.subr.mxu0 0.0
    %399 = vmatpush2.xpose.msra.mxu0 0.0
    %400 = vmatprep.subr.mxu0 0.0
    %401 = vmatpush2.xpose.msra.mxu0 0.0
    %402 = vmatprep.subr.mxu0 0.0
    %403 = vmatpush2.xpose.msra.mxu0 0.0
    %404 = vmatprep.subr.mxu0 0.0
    %405 = vmatpush2.xpose.msra.mxu0 0.0
    %406 = vmatprep.subr.mxu0 0.0
    %407 = vmatpush2.xpose.msra.mxu0 0.0
    %408 = vmatprep.subr.mxu0 0.0
    %409 = vmatpush2.xpose.msra.mxu0 0.0
    %410 = vmatprep.subr.mxu0 0.0
    %411 = vmatpush2.xpose.msra.mxu0 0.0
    %412 = vmatprep.subr.mxu0 0.0
    %413 = vmatpush2.xpose.msra.mxu0 0.0
    %414 = vmatprep.subr.mxu0 0.0
    %415 = vmatpush2.xpose.msra.mxu0 0.0
    %416 = vmatprep.subr.mxu0 0.0
    %417 = vmatpush2.xpose.msra.mxu0 0.0
    %418 = vmatprep.subr.mxu0 0.0
    %419 = vmatpush2.xpose.msra.mxu0 0.0
    %420 = vmatprep.subr.mxu0 0.0
    %421 = vmatpush2.xpose.msra.mxu0 0.0
    %422 = vmatprep.subr.mxu0 0.0
    %423 = vmatpush2.xpose.msra.mxu0 0.0
    %424 = vmatprep.subr.mxu0 0.0
    %425 = vmatpush2.xpose.msra.mxu0 0.0
    %426 = vmatprep.subr.mxu0 0.0
    %427 = vmatpush2.xpose.msra.mxu0 0.0
    %428 = vmatprep.subr.mxu0 0.0
    %429 = vmatpush2.xpose.msra.mxu0 0.0
    %430 = vmatprep.mubr.f32.mxu0 0.0
    %431 = vmatmul.mubr.f32.gmra.mxu0 %v362
    %v432 = vpop.f32.mrf.mxu0
    %v433 = vadd.f32 %v352, %v432
    %v434 = vpop.f32.mrf.mxu0
    %435 = vdwg.mxu0
    %436 = vrot.lane.b32.xlu0 %v330, 96
    %v437 = vpop.permute.xlu0 %436
    %v438 = vsel %vm361, %v330, 0
    %v440 = vsel %vm361, %v437, 0
    %442 = vmatprep.subr.mxu0 0.0
    %443 = vmatpush1.xpose.msra.mxu0 0.0
    %444 = vmatprep.subr.mxu0 0.0
    %445 = vmatpush1.xpose.msra.mxu0 0.0
    %446 = vmatprep.subr.mxu0 0.0
    %447 = vmatpush1.xpose.msra.mxu0 0.0
    %448 = vmatprep.subr.mxu0 0.0
    %449 = vmatpush1.xpose.msra.mxu0 0.0
    %450 = vmatprep.subr.mxu0 0.0
    %451 = vmatpush1.xpose.msra.mxu0 0.0
    %452 = vmatprep.subr.mxu0 0.0
    %453 = vmatpush1.xpose.msra.mxu0 0.0
    %454 = vmatprep.subr.mxu0 0.0
    %455 = vmatpush1.xpose.msra.mxu0 0.0
    %456 = vmatprep.subr.mxu0 0.0
    %457 = vmatpush1.xpose.msra.mxu0 0.0
    %458 = vmatprep.subr.mxu0 0.0
    %459 = vmatpush1.xpose.msra.mxu0 0.0
    %460 = vmatprep.subr.mxu0 0.0
    %461 = vmatpush1.xpose.msra.mxu0 0.0
    %462 = vmatprep.subr.mxu0 0.0
    %463 = vmatpush1.xpose.msra.mxu0 0.0
    %464 = vmatprep.subr.mxu0 0.0
    %465 = vmatpush1.xpose.msra.mxu0 0.0
    %466 = vmatprep.subr.mxu0 0.0
    %467 = vmatpush1.xpose.msra.mxu0 0.0
    %468 = vmatprep.subr.mxu0 0.0
    %469 = vmatpush1.xpose.msra.mxu0 0.0
    %470 = vmatprep.subr.mxu0 0.0
    %471 = vmatpush1.xpose.msra.mxu0 0.0
    %472 = vmatprep.subr.mxu0 0.0
    %473 = vmatpush1.xpose.msra.mxu0 %v440
    %474 = vmatprep.subr.mxu0 0.0
    %475 = vmatpush2.xpose.msra.mxu0 0.0
    %476 = vmatprep.subr.mxu0 0.0
    %477 = vmatpush2.xpose.msra.mxu0 0.0
    %478 = vmatprep.subr.mxu0 0.0
    %479 = vmatpush2.xpose.msra.mxu0 0.0
    %480 = vmatprep.subr.mxu0 0.0
    %481 = vmatpush2.xpose.msra.mxu0 0.0
    %482 = vmatprep.subr.mxu0 0.0
    %483 = vmatpush2.xpose.msra.mxu0 0.0
    %484 = vmatprep.subr.mxu0 0.0
    %485 = vmatpush2.xpose.msra.mxu0 0.0
    %486 = vmatprep.subr.mxu0 0.0
    %487 = vmatpush2.xpose.msra.mxu0 0.0
    %488 = vmatprep.subr.mxu0 0.0
    %489 = vmatpush2.xpose.msra.mxu0 0.0
    %490 = vmatprep.subr.mxu0 0.0
    %491 = vmatpush2.xpose.msra.mxu0 0.0
    %492 = vmatprep.subr.mxu0 0.0
    %493 = vmatpush2.xpose.msra.mxu0 0.0
    %494 = vmatprep.subr.mxu0 0.0
    %495 = vmatpush2.xpose.msra.mxu0 0.0
    %496 = vmatprep.subr.mxu0 0.0
    %497 = vmatpush2.xpose.msra.mxu0 0.0
    %498 = vmatprep.subr.mxu0 0.0
    %499 = vmatpush2.xpose.msra.mxu0 0.0
    %500 = vmatprep.subr.mxu0 0.0
    %501 = vmatpush2.xpose.msra.mxu0 0.0
    %502 = vmatprep.subr.mxu0 0.0
    %503 = vmatpush2.xpose.msra.mxu0 0.0
    %504 = vmatprep.subr.mxu0 0.0
    %505 = vmatpush2.xpose.msra.mxu0 0.0
    %506 = vmatprep.mubr.f32.mxu0 0.0
    %507 = vmatmul.mubr.f32.gmra.mxu0 %v438
    %v508 = vpop.f32.mrf.mxu0
    %v509 = vadd.f32 %v356, %v508
    %v510 = vpop.f32.mrf.mxu0
    %511 = vdwg.mxu0
    %512 = vrot.lane.b32.xlu0 %v336, 96
    %v513 = vpop.permute.xlu0 %512
    %v514 = vsel %vm361, %v336, 0
    %v516 = vsel %vm361, %v513, 0
    %518 = vmatprep.subr.mxu0 0.0
    %519 = vmatpush1.xpose.msra.mxu0 0.0
    %520 = vmatprep.subr.mxu0 0.0
    %521 = vmatpush1.xpose.msra.mxu0 0.0
    %522 = vmatprep.subr.mxu0 0.0
    %523 = vmatpush1.xpose.msra.mxu0 0.0
    %524 = vmatprep.subr.mxu0 0.0
    %525 = vmatpush1.xpose.msra.mxu0 0.0
    %526 = vmatprep.subr.mxu0 0.0
    %527 = vmatpush1.xpose.msra.mxu0 0.0
    %528 = vmatprep.subr.mxu0 0.0
    %529 = vmatpush1.xpose.msra.mxu0 0.0
    %530 = vmatprep.subr.mxu0 0.0
    %531 = vmatpush1.xpose.msra.mxu0 0.0
    %532 = vmatprep.subr.mxu0 0.0
    %533 = vmatpush1.xpose.msra.mxu0 0.0
    %534 = vmatprep.subr.mxu0 0.0
    %535 = vmatpush1.xpose.msra.mxu0 0.0
    %536 = vmatprep.subr.mxu0 0.0
    %537 = vmatpush1.xpose.msra.mxu0 0.0
    %538 = vmatprep.subr.mxu0 0.0
    %539 = vmatpush1.xpose.msra.mxu0 0.0
    %540 = vmatprep.subr.mxu0 0.0
    %541 = vmatpush1.xpose.msra.mxu0 0.0
    %542 = vmatprep.subr.mxu0 0.0
    %543 = vmatpush1.xpose.msra.mxu0 0.0
    %544 = vmatprep.subr.mxu0 0.0
    %545 = vmatpush1.xpose.msra.mxu0 0.0
    %546 = vmatprep.subr.mxu0 0.0
    %547 = vmatpush1.xpose.msra.mxu0 0.0
    %548 = vmatprep.subr.mxu0 0.0
    %549 = vmatpush1.xpose.msra.mxu0 %v516
    %550 = vmatprep.subr.mxu0 0.0
    %551 = vmatpush2.xpose.msra.mxu0 0.0
    %552 = vmatprep.subr.mxu0 0.0
    %553 = vmatpush2.xpose.msra.mxu0 0.0
    %554 = vmatprep.subr.mxu0 0.0
    %555 = vmatpush2.xpose.msra.mxu0 0.0
    %556 = vmatprep.subr.mxu0 0.0
    %557 = vmatpush2.xpose.msra.mxu0 0.0
    %558 = vmatprep.subr.mxu0 0.0
    %559 = vmatpush2.xpose.msra.mxu0 0.0
    %560 = vmatprep.subr.mxu0 0.0
    %561 = vmatpush2.xpose.msra.mxu0 0.0
    %562 = vmatprep.subr.mxu0 0.0
    %563 = vmatpush2.xpose.msra.mxu0 0.0
    %564 = vmatprep.subr.mxu0 0.0
    %565 = vmatpush2.xpose.msra.mxu0 0.0
    %566 = vmatprep.subr.mxu0 0.0
    %567 = vmatpush2.xpose.msra.mxu0 0.0
    %568 = vmatprep.subr.mxu0 0.0
    %569 = vmatpush2.xpose.msra.mxu0 0.0
    %570 = vmatprep.subr.mxu0 0.0
    %571 = vmatpush2.xpose.msra.mxu0 0.0
    %572 = vmatprep.subr.mxu0 0.0
    %573 = vmatpush2.xpose.msra.mxu0 0.0
    %574 = vmatprep.subr.mxu0 0.0
    %575 = vmatpush2.xpose.msra.mxu0 0.0
    %576 = vmatprep.subr.mxu0 0.0
    %577 = vmatpush2.xpose.msra.mxu0 0.0
    %578 = vmatprep.subr.mxu0 0.0
    %579 = vmatpush2.xpose.msra.mxu0 0.0
    %580 = vmatprep.subr.mxu0 0.0
    %581 = vmatpush2.xpose.msra.mxu0 0.0
    %582 = vmatprep.mubr.f32.mxu0 0.0
    %583 = vmatmul.mubr.f32.gmra.mxu0 %v514
    %v584 = vpop.f32.mrf.mxu0
    %v585 = vadd.f32 %v352, %v584
    %v586 = vpop.f32.mrf.mxu0
    %587 = vdwg.mxu0
    %588 = vrot.lane.b32.xlu0 %v338, 96
    %v589 = vpop.permute.xlu0 %588
    %v590 = vsel %vm361, %v338, 0
    %v592 = vsel %vm361, %v589, 0
    %594 = vmatprep.subr.mxu0 0.0
    %595 = vmatpush1.xpose.msra.mxu0 0.0
    %596 = vmatprep.subr.mxu0 0.0
    %597 = vmatpush1.xpose.msra.mxu0 0.0
    %598 = vmatprep.subr.mxu0 0.0
    %599 = vmatpush1.xpose.msra.mxu0 0.0
    %600 = vmatprep.subr.mxu0 0.0
    %601 = vmatpush1.xpose.msra.mxu0 0.0
    %602 = vmatprep.subr.mxu0 0.0
    %603 = vmatpush1.xpose.msra.mxu0 0.0
    %604 = vmatprep.subr.mxu0 0.0
    %605 = vmatpush1.xpose.msra.mxu0 0.0
    %606 = vmatprep.subr.mxu0 0.0
    %607 = vmatpush1.xpose.msra.mxu0 0.0
    %608 = vmatprep.subr.mxu0 0.0
    %609 = vmatpush1.xpose.msra.mxu0 0.0
    %610 = vmatprep.subr.mxu0 0.0
    %611 = vmatpush1.xpose.msra.mxu0 0.0
    %612 = vmatprep.subr.mxu0 0.0
    %613 = vmatpush1.xpose.msra.mxu0 0.0
    %614 = vmatprep.subr.mxu0 0.0
    %615 = vmatpush1.xpose.msra.mxu0 0.0
    %616 = vmatprep.subr.mxu0 0.0
    %617 = vmatpush1.xpose.msra.mxu0 0.0
    %618 = vmatprep.subr.mxu0 0.0
    %619 = vmatpush1.xpose.msra.mxu0 0.0
    %620 = vmatprep.subr.mxu0 0.0
    %621 = vmatpush1.xpose.msra.mxu0 0.0
    %622 = vmatprep.subr.mxu0 0.0
    %623 = vmatpush1.xpose.msra.mxu0 0.0
    %624 = vmatprep.subr.mxu0 0.0
    %625 = vmatpush1.xpose.msra.mxu0 %v592
    %626 = vmatprep.subr.mxu0 0.0
    %627 = vmatpush2.xpose.msra.mxu0 0.0
    %628 = vmatprep.subr.mxu0 0.0
    %629 = vmatpush2.xpose.msra.mxu0 0.0
    %630 = vmatprep.subr.mxu0 0.0
    %631 = vmatpush2.xpose.msra.mxu0 0.0
    %632 = vmatprep.subr.mxu0 0.0
    %633 = vmatpush2.xpose.msra.mxu0 0.0
    %634 = vmatprep.subr.mxu0 0.0
    %635 = vmatpush2.xpose.msra.mxu0 0.0
    %636 = vmatprep.subr.mxu0 0.0
    %637 = vmatpush2.xpose.msra.mxu0 0.0
    %638 = vmatprep.subr.mxu0 0.0
    %639 = vmatpush2.xpose.msra.mxu0 0.0
    %640 = vmatprep.subr.mxu0 0.0
    %641 = vmatpush2.xpose.msra.mxu0 0.0
    %642 = vmatprep.subr.mxu0 0.0
    %643 = vmatpush2.xpose.msra.mxu0 0.0
    %644 = vmatprep.subr.mxu0 0.0
    %645 = vmatpush2.xpose.msra.mxu0 0.0
    %646 = vmatprep.subr.mxu0 0.0
    %647 = vmatpush2.xpose.msra.mxu0 0.0
    %648 = vmatprep.subr.mxu0 0.0
    %649 = vmatpush2.xpose.msra.mxu0 0.0
    %650 = vmatprep.subr.mxu0 0.0
    %651 = vmatpush2.xpose.msra.mxu0 0.0
    %652 = vmatprep.subr.mxu0 0.0
    %653 = vmatpush2.xpose.msra.mxu0 0.0
    %654 = vmatprep.subr.mxu0 0.0
    %655 = vmatpush2.xpose.msra.mxu0 0.0
    %656 = vmatprep.subr.mxu0 0.0
    %657 = vmatpush2.xpose.msra.mxu0 0.0
    %658 = vmatprep.mubr.f32.mxu0 0.0
    %659 = vmatmul.mubr.f32.gmra.mxu0 %v590
    %v660 = vpop.f32.mrf.mxu0
    %v661 = vadd.f32 %v356, %v660
    %v662 = vpop.f32.mrf.mxu0
    %663 = vdwg.mxu0
    %664 = vrot.lane.b32.xlu0 %v340, 96
    %v665 = vpop.permute.xlu0 %664
    %v666 = vsel %vm361, %v340, 0
    %v668 = vsel %vm361, %v665, 0
    %670 = vmatprep.subr.mxu0 0.0
    %671 = vmatpush1.xpose.msra.mxu0 0.0
    %672 = vmatprep.subr.mxu0 0.0
    %673 = vmatpush1.xpose.msra.mxu0 0.0
    %674 = vmatprep.subr.mxu0 0.0
    %675 = vmatpush1.xpose.msra.mxu0 0.0
    %676 = vmatprep.subr.mxu0 0.0
    %677 = vmatpush1.xpose.msra.mxu0 0.0
    %678 = vmatprep.subr.mxu0 0.0
    %679 = vmatpush1.xpose.msra.mxu0 0.0
    %680 = vmatprep.subr.mxu0 0.0
    %681 = vmatpush1.xpose.msra.mxu0 0.0
    %682 = vmatprep.subr.mxu0 0.0
    %683 = vmatpush1.xpose.msra.mxu0 0.0
    %684 = vmatprep.subr.mxu0 0.0
    %685 = vmatpush1.xpose.msra.mxu0 0.0
    %686 = vmatprep.subr.mxu0 0.0
    %687 = vmatpush1.xpose.msra.mxu0 0.0
    %688 = vmatprep.subr.mxu0 0.0
    %689 = vmatpush1.xpose.msra.mxu0 0.0
    %690 = vmatprep.subr.mxu0 0.0
    %691 = vmatpush1.xpose.msra.mxu0 0.0
    %692 = vmatprep.subr.mxu0 0.0
    %693 = vmatpush1.xpose.msra.mxu0 0.0
    %694 = vmatprep.subr.mxu0 0.0
    %695 = vmatpush1.xpose.msra.mxu0 0.0
    %696 = vmatprep.subr.mxu0 0.0
    %697 = vmatpush1.xpose.msra.mxu0 0.0
    %698 = vmatprep.subr.mxu0 0.0
    %699 = vmatpush1.xpose.msra.mxu0 0.0
    %700 = vmatprep.subr.mxu0 0.0
    %701 = vmatpush1.xpose.msra.mxu0 %v668
    %702 = vmatprep.subr.mxu0 0.0
    %703 = vmatpush2.xpose.msra.mxu0 0.0
    %704 = vmatprep.subr.mxu0 0.0
    %705 = vmatpush2.xpose.msra.mxu0 0.0
    %706 = vmatprep.subr.mxu0 0.0
    %707 = vmatpush2.xpose.msra.mxu0 0.0
    %708 = vmatprep.subr.mxu0 0.0
    %709 = vmatpush2.xpose.msra.mxu0 0.0
    %710 = vmatprep.subr.mxu0 0.0
    %711 = vmatpush2.xpose.msra.mxu0 0.0
    %712 = vmatprep.subr.mxu0 0.0
    %713 = vmatpush2.xpose.msra.mxu0 0.0
    %714 = vmatprep.subr.mxu0 0.0
    %715 = vmatpush2.xpose.msra.mxu0 0.0
    %716 = vmatprep.subr.mxu0 0.0
    %717 = vmatpush2.xpose.msra.mxu0 0.0
    %718 = vmatprep.subr.mxu0 0.0
    %719 = vmatpush2.xpose.msra.mxu0 0.0
    %720 = vmatprep.subr.mxu0 0.0
    %721 = vmatpush2.xpose.msra.mxu0 0.0
    %722 = vmatprep.subr.mxu0 0.0
    %723 = vmatpush2.xpose.msra.mxu0 0.0
    %724 = vmatprep.subr.mxu0 0.0
    %725 = vmatpush2.xpose.msra.mxu0 0.0
    %726 = vmatprep.subr.mxu0 0.0
    %727 = vmatpush2.xpose.msra.mxu0 0.0
    %728 = vmatprep.subr.mxu0 0.0
    %729 = vmatpush2.xpose.msra.mxu0 0.0
    %730 = vmatprep.subr.mxu0 0.0
    %731 = vmatpush2.xpose.msra.mxu0 0.0
    %732 = vmatprep.subr.mxu0 0.0
    %733 = vmatpush2.xpose.msra.mxu0 0.0
    %734 = vmatprep.mubr.f32.mxu0 0.0
    %735 = vmatmul.mubr.f32.gmra.mxu0 %v666
    %v736 = vpop.f32.mrf.mxu0
    %v737 = vadd.f32 %v352, %v736
    %v738 = vpop.f32.mrf.mxu0
    %739 = vdwg.mxu0
    %740 = vrot.lane.b32.xlu0 %v342, 96
    %v741 = vpop.permute.xlu0 %740
    %v742 = vsel %vm361, %v342, 0
    %v744 = vsel %vm361, %v741, 0
    %746 = vmatprep.subr.mxu0 0.0
    %747 = vmatpush1.xpose.msra.mxu0 0.0
    %748 = vmatprep.subr.mxu0 0.0
    %749 = vmatpush1.xpose.msra.mxu0 0.0
    %750 = vmatprep.subr.mxu0 0.0
    %751 = vmatpush1.xpose.msra.mxu0 0.0
    %752 = vmatprep.subr.mxu0 0.0
    %753 = vmatpush1.xpose.msra.mxu0 0.0
    %754 = vmatprep.subr.mxu0 0.0
    %755 = vmatpush1.xpose.msra.mxu0 0.0
    %756 = vmatprep.subr.mxu0 0.0
    %757 = vmatpush1.xpose.msra.mxu0 0.0
    %758 = vmatprep.subr.mxu0 0.0
    %759 = vmatpush1.xpose.msra.mxu0 0.0
    %760 = vmatprep.subr.mxu0 0.0
    %761 = vmatpush1.xpose.msra.mxu0 0.0
    %762 = vmatprep.subr.mxu0 0.0
    %763 = vmatpush1.xpose.msra.mxu0 0.0
    %764 = vmatprep.subr.mxu0 0.0
    %765 = vmatpush1.xpose.msra.mxu0 0.0
    %766 = vmatprep.subr.mxu0 0.0
    %767 = vmatpush1.xpose.msra.mxu0 0.0
    %768 = vmatprep.subr.mxu0 0.0
    %769 = vmatpush1.xpose.msra.mxu0 0.0
    %770 = vmatprep.subr.mxu0 0.0
    %771 = vmatpush1.xpose.msra.mxu0 0.0
    %772 = vmatprep.subr.mxu0 0.0
    %773 = vmatpush1.xpose.msra.mxu0 0.0
    %774 = vmatprep.subr.mxu0 0.0
    %775 = vmatpush1.xpose.msra.mxu0 0.0
    %776 = vmatprep.subr.mxu0 0.0
    %777 = vmatpush1.xpose.msra.mxu0 %v744
    %778 = vmatprep.subr.mxu0 0.0
    %779 = vmatpush2.xpose.msra.mxu0 0.0
    %780 = vmatprep.subr.mxu0 0.0
    %781 = vmatpush2.xpose.msra.mxu0 0.0
    %782 = vmatprep.subr.mxu0 0.0
    %783 = vmatpush2.xpose.msra.mxu0 0.0
    %784 = vmatprep.subr.mxu0 0.0
    %785 = vmatpush2.xpose.msra.mxu0 0.0
    %786 = vmatprep.subr.mxu0 0.0
    %787 = vmatpush2.xpose.msra.mxu0 0.0
    %788 = vmatprep.subr.mxu0 0.0
    %789 = vmatpush2.xpose.msra.mxu0 0.0
    %790 = vmatprep.subr.mxu0 0.0
    %791 = vmatpush2.xpose.msra.mxu0 0.0
    %792 = vmatprep.subr.mxu0 0.0
    %793 = vmatpush2.xpose.msra.mxu0 0.0
    %794 = vmatprep.subr.mxu0 0.0
    %795 = vmatpush2.xpose.msra.mxu0 0.0
    %796 = vmatprep.subr.mxu0 0.0
    %797 = vmatpush2.xpose.msra.mxu0 0.0
    %798 = vmatprep.subr.mxu0 0.0
    %799 = vmatpush2.xpose.msra.mxu0 0.0
    %800 = vmatprep.subr.mxu0 0.0
    %801 = vmatpush2.xpose.msra.mxu0 0.0
    %802 = vmatprep.subr.mxu0 0.0
    %803 = vmatpush2.xpose.msra.mxu0 0.0
    %804 = vmatprep.subr.mxu0 0.0
    %805 = vmatpush2.xpose.msra.mxu0 0.0
    %806 = vmatprep.subr.mxu0 0.0
    %807 = vmatpush2.xpose.msra.mxu0 0.0
    %808 = vmatprep.subr.mxu0 0.0
    %809 = vmatpush2.xpose.msra.mxu0 0.0
    %810 = vmatprep.mubr.f32.mxu0 0.0
    %811 = vmatmul.mubr.f32.gmra.mxu0 %v742
    %v812 = vpop.f32.mrf.mxu0
    %v813 = vadd.f32 %v356, %v812
    %v814 = vpop.f32.mrf.mxu0
    %815 = vdwg.mxu0
    %816 = vrot.lane.b32.xlu0 %v344, 96
    %v817 = vpop.permute.xlu0 %816
    %v818 = vsel %vm361, %v344, 0
    %v820 = vsel %vm361, %v817, 0
    %822 = vmatprep.subr.mxu0 0.0
    %823 = vmatpush1.xpose.msra.mxu0 0.0
    %824 = vmatprep.subr.mxu0 0.0
    %825 = vmatpush1.xpose.msra.mxu0 0.0
    %826 = vmatprep.subr.mxu0 0.0
    %827 = vmatpush1.xpose.msra.mxu0 0.0
    %828 = vmatprep.subr.mxu0 0.0
    %829 = vmatpush1.xpose.msra.mxu0 0.0
    %830 = vmatprep.subr.mxu0 0.0
    %831 = vmatpush1.xpose.msra.mxu0 0.0
    %832 = vmatprep.subr.mxu0 0.0
    %833 = vmatpush1.xpose.msra.mxu0 0.0
    %834 = vmatprep.subr.mxu0 0.0
    %835 = vmatpush1.xpose.msra.mxu0 0.0
    %836 = vmatprep.subr.mxu0 0.0
    %837 = vmatpush1.xpose.msra.mxu0 0.0
    %838 = vmatprep.subr.mxu0 0.0
    %839 = vmatpush1.xpose.msra.mxu0 0.0
    %840 = vmatprep.subr.mxu0 0.0
    %841 = vmatpush1.xpose.msra.mxu0 0.0
    %842 = vmatprep.subr.mxu0 0.0
    %843 = vmatpush1.xpose.msra.mxu0 0.0
    %844 = vmatprep.subr.mxu0 0.0
    %845 = vmatpush1.xpose.msra.mxu0 0.0
    %846 = vmatprep.subr.mxu0 0.0
    %847 = vmatpush1.xpose.msra.mxu0 0.0
    %848 = vmatprep.subr.mxu0 0.0
    %849 = vmatpush1.xpose.msra.mxu0 0.0
    %850 = vmatprep.subr.mxu0 0.0
    %851 = vmatpush1.xpose.msra.mxu0 0.0
    %852 = vmatprep.subr.mxu0 0.0
    %853 = vmatpush1.xpose.msra.mxu0 %v820
    %854 = vmatprep.subr.mxu0 0.0
    %855 = vmatpush2.xpose.msra.mxu0 0.0
    %856 = vmatprep.subr.mxu0 0.0
    %857 = vmatpush2.xpose.msra.mxu0 0.0
    %858 = vmatprep.subr.mxu0 0.0
    %859 = vmatpush2.xpose.msra.mxu0 0.0
    %860 = vmatprep.subr.mxu0 0.0
    %861 = vmatpush2.xpose.msra.mxu0 0.0
    %862 = vmatprep.subr.mxu0 0.0
    %863 = vmatpush2.xpose.msra.mxu0 0.0
    %864 = vmatprep.subr.mxu0 0.0
    %865 = vmatpush2.xpose.msra.mxu0 0.0
    %866 = vmatprep.subr.mxu0 0.0
    %867 = vmatpush2.xpose.msra.mxu0 0.0
    %868 = vmatprep.subr.mxu0 0.0
    %869 = vmatpush2.xpose.msra.mxu0 0.0
    %870 = vmatprep.subr.mxu0 0.0
    %871 = vmatpush2.xpose.msra.mxu0 0.0
    %872 = vmatprep.subr.mxu0 0.0
    %873 = vmatpush2.xpose.msra.mxu0 0.0
    %874 = vmatprep.subr.mxu0 0.0
    %875 = vmatpush2.xpose.msra.mxu0 0.0
    %876 = vmatprep.subr.mxu0 0.0
    %877 = vmatpush2.xpose.msra.mxu0 0.0
    %878 = vmatprep.subr.mxu0 0.0
    %879 = vmatpush2.xpose.msra.mxu0 0.0
    %880 = vmatprep.subr.mxu0 0.0
    %881 = vmatpush2.xpose.msra.mxu0 0.0
    %882 = vmatprep.subr.mxu0 0.0
    %883 = vmatpush2.xpose.msra.mxu0 0.0
    %884 = vmatprep.subr.mxu0 0.0
    %885 = vmatpush2.xpose.msra.mxu0 0.0
    %886 = vmatprep.mubr.f32.mxu0 0.0
    %887 = vmatmul.mubr.f32.gmra.mxu0 %v818
    %v888 = vpop.f32.mrf.mxu0
    %v889 = vadd.f32 %v352, %v888
    %v890 = vpop.f32.mrf.mxu0
    %891 = vdwg.mxu0
    %892 = vrot.lane.b32.xlu0 %v346, 96
    %v893 = vpop.permute.xlu0 %892
    %v894 = vsel %vm361, %v346, 0
    %v896 = vsel %vm361, %v893, 0
    %898 = vmatprep.subr.mxu0 0.0
    %899 = vmatpush1.xpose.msra.mxu0 0.0
    %900 = vmatprep.subr.mxu0 0.0
    %901 = vmatpush1.xpose.msra.mxu0 0.0
    %902 = vmatprep.subr.mxu0 0.0
    %903 = vmatpush1.xpose.msra.mxu0 0.0
    %904 = vmatprep.subr.mxu0 0.0
    %905 = vmatpush1.xpose.msra.mxu0 0.0
    %906 = vmatprep.subr.mxu0 0.0
    %907 = vmatpush1.xpose.msra.mxu0 0.0
    %908 = vmatprep.subr.mxu0 0.0
    %909 = vmatpush1.xpose.msra.mxu0 0.0
    %910 = vmatprep.subr.mxu0 0.0
    %911 = vmatpush1.xpose.msra.mxu0 0.0
    %912 = vmatprep.subr.mxu0 0.0
    %913 = vmatpush1.xpose.msra.mxu0 0.0
    %914 = vmatprep.subr.mxu0 0.0
    %915 = vmatpush1.xpose.msra.mxu0 0.0
    %916 = vmatprep.subr.mxu0 0.0
    %917 = vmatpush1.xpose.msra.mxu0 0.0
    %918 = vmatprep.subr.mxu0 0.0
    %919 = vmatpush1.xpose.msra.mxu0 0.0
    %920 = vmatprep.subr.mxu0 0.0
    %921 = vmatpush1.xpose.msra.mxu0 0.0
    %922 = vmatprep.subr.mxu0 0.0
    %923 = vmatpush1.xpose.msra.mxu0 0.0
    %924 = vmatprep.subr.mxu0 0.0
    %925 = vmatpush1.xpose.msra.mxu0 0.0
    %926 = vmatprep.subr.mxu0 0.0
    %927 = vmatpush1.xpose.msra.mxu0 0.0
    %928 = vmatprep.subr.mxu0 0.0
    %929 = vmatpush1.xpose.msra.mxu0 %v896
    %930 = vmatprep.subr.mxu0 0.0
    %931 = vmatpush2.xpose.msra.mxu0 0.0
    %932 = vmatprep.subr.mxu0 0.0
    %933 = vmatpush2.xpose.msra.mxu0 0.0
    %934 = vmatprep.subr.mxu0 0.0
    %935 = vmatpush2.xpose.msra.mxu0 0.0
    %936 = vmatprep.subr.mxu0 0.0
    %937 = vmatpush2.xpose.msra.mxu0 0.0
    %938 = vmatprep.subr.mxu0 0.0
    %939 = vmatpush2.xpose.msra.mxu0 0.0
    %940 = vmatprep.subr.mxu0 0.0
    %941 = vmatpush2.xpose.msra.mxu0 0.0
    %942 = vmatprep.subr.mxu0 0.0
    %943 = vmatpush2.xpose.msra.mxu0 0.0
    %944 = vmatprep.subr.mxu0 0.0
    %945 = vmatpush2.xpose.msra.mxu0 0.0
    %946 = vmatprep.subr.mxu0 0.0
    %947 = vmatpush2.xpose.msra.mxu0 0.0
    %948 = vmatprep.subr.mxu0 0.0
    %949 = vmatpush2.xpose.msra.mxu0 0.0
    %950 = vmatprep.subr.mxu0 0.0
    %951 = vmatpush2.xpose.msra.mxu0 0.0
    %952 = vmatprep.subr.mxu0 0.0
    %953 = vmatpush2.xpose.msra.mxu0 0.0
    %954 = vmatprep.subr.mxu0 0.0
    %955 = vmatpush2.xpose.msra.mxu0 0.0
    %956 = vmatprep.subr.mxu0 0.0
    %957 = vmatpush2.xpose.msra.mxu0 0.0
    %958 = vmatprep.subr.mxu0 0.0
    %959 = vmatpush2.xpose.msra.mxu0 0.0
    %960 = vmatprep.subr.mxu0 0.0
    %961 = vmatpush2.xpose.msra.mxu0 0.0
    %962 = vmatprep.mubr.f32.mxu0 0.0
    %963 = vmatmul.mubr.f32.gmra.mxu0 %v894
    %v964 = vpop.f32.mrf.mxu0
    %v965 = vadd.f32 %v356, %v964
    %v966 = vpop.f32.mrf.mxu0
    %967 = vdwg.mxu0
    %v968 = vsel %vm361, %v433, -inf
    %969 = vmax.xlane.f32.xlu0 %v968
    %v970 = vpop.xlane.xlu0 %969
    %v971 = vsel %vm361, %v509, -inf
    %972 = vmax.xlane.f32.xlu0 %v971
    %v973 = vpop.xlane.xlu0 %972
    %v974 = vsel %vm361, %v585, -inf
    %975 = vmax.xlane.f32.xlu0 %v974
    %v976 = vpop.xlane.xlu0 %975
    %v977 = vsel %vm361, %v661, -inf
    %978 = vmax.xlane.f32.xlu0 %v977
    %v979 = vpop.xlane.xlu0 %978
    %v980 = vsel %vm361, %v737, -inf
    %981 = vmax.xlane.f32.xlu0 %v980
    %v982 = vpop.xlane.xlu0 %981
    %v983 = vsel %vm361, %v813, -inf
    %984 = vmax.xlane.f32.xlu0 %v983
    %v985 = vpop.xlane.xlu0 %984
    %v986 = vsel %vm361, %v889, -inf
    %987 = vmax.xlane.f32.xlu0 %v986
    %v988 = vpop.xlane.xlu0 %987
    %v989 = vsel %vm361, %v965, -inf
    %990 = vmax.xlane.f32.xlu0 %v989
    %v991 = vpop.xlane.xlu0 %990
    %v992 = vsub.f32 %v433, %v970
    %v993 = vsub.f32 %v509, %v973
    %v994 = vsub.f32 %v585, %v976
    %v995 = vsub.f32 %v661, %v979
    %v996 = vsub.f32 %v737, %v982
    %v997 = vsub.f32 %v813, %v985
    %v998 = vsub.f32 %v889, %v988
    %v999 = vsub.f32 %v965, %v991
    %v1000 = vmul.f32 %v992, 1.442695
    %v1001 = vpow.pop %v1000
    %v1002 = vmul.f32 %v993, 1.442695
    %v1003 = vpow.pop %v1002
    %v1004 = vmul.f32 %v994, 1.442695
    %v1005 = vpow.pop %v1004
    %v1006 = vmul.f32 %v995, 1.442695
    %v1007 = vpow.pop %v1006
    %v1008 = vmul.f32 %v996, 1.442695
    %v1009 = vpow.pop %v1008
    %v1010 = vmul.f32 %v997, 1.442695
    %v1011 = vpow.pop %v1010
    %v1012 = vmul.f32 %v998, 1.442695
    %v1013 = vpow.pop %v1012
    %v1014 = vmul.f32 %v999, 1.442695
    %v1015 = vpow.pop %v1014
    %v1016 = vsel %vm361, %v1001, 0.0
    %1017 = vadd.xlane.f32.xlu0 %v1016
    %v1018 = vpop.xlane.xlu0 %1017
    %v1019 = vsel %vm361, %v1003, 0.0
    %1020 = vadd.xlane.f32.xlu0 %v1019
    %v1021 = vpop.xlane.xlu0 %1020
    %v1022 = vsel %vm361, %v1005, 0.0
    %1023 = vadd.xlane.f32.xlu0 %v1022
    %v1024 = vpop.xlane.xlu0 %1023
    %v1025 = vsel %vm361, %v1007, 0.0
    %1026 = vadd.xlane.f32.xlu0 %v1025
    %v1027 = vpop.xlane.xlu0 %1026
    %v1028 = vsel %vm361, %v1009, 0.0
    %1029 = vadd.xlane.f32.xlu0 %v1028
    %v1030 = vpop.xlane.xlu0 %1029
    %v1031 = vsel %vm361, %v1011, 0.0
    %1032 = vadd.xlane.f32.xlu0 %v1031
    %v1033 = vpop.xlane.xlu0 %1032
    %v1034 = vsel %vm361, %v1013, 0.0
    %1035 = vadd.xlane.f32.xlu0 %v1034
    %v1036 = vpop.xlane.xlu0 %1035
    %v1037 = vsel %vm361, %v1015, 0.0
    %1038 = vadd.xlane.f32.xlu0 %v1037
    %v1039 = vpop.xlane.xlu0 %1038
    %v1040 = vrcp.pop %v1018
    %v1041 = vrcp.pop %v1021
    %v1042 = vrcp.pop %v1024
    %v1043 = vrcp.pop %v1027
    %v1044 = vrcp.pop %v1030
    %v1045 = vrcp.pop %v1033
    %v1046 = vrcp.pop %v1036
    %v1047 = vrcp.pop %v1039
    %v1048 = vmul.f32 %v1001, %v1040
    %v1049 = vmul.f32 %v1003, %v1041
    %v1050 = vmul.f32 %v1005, %v1042
    %v1051 = vmul.f32 %v1007, %v1043
    %v1052 = vmul.f32 %v1009, %v1044
    %v1053 = vmul.f32 %v1011, %v1045
    %v1054 = vmul.f32 %v1013, %v1046
    %v1055 = vmul.f32 %v1015, %v1047
    %1056 = vrot.lane.b32.xlu0 %v325, 64
    %v1057 = vpop.permute.xlu0 %1056
    %v1060 = vsel %vm361, %v1048, 0
    %1062 = vmatprep.subr.mxu0 0.0
    %1063 = vmatpush1.msra.mxu0 0.0
    %1064 = vmatprep.subr.mxu0 0.0
    %1065 = vmatpush1.msra.mxu0 0.0
    %1066 = vmatprep.subr.mxu0 0.0
    %1067 = vmatpush1.msra.mxu0 0.0
    %1068 = vmatprep.subr.mxu0 0.0
    %1069 = vmatpush1.msra.mxu0 0.0
    %1070 = vmatprep.subr.mxu0 0.0
    %1071 = vmatpush1.msra.mxu0 0.0
    %1072 = vmatprep.subr.mxu0 0.0
    %1073 = vmatpush1.msra.mxu0 0.0
    %1074 = vmatprep.subr.mxu0 0.0
    %1075 = vmatpush1.msra.mxu0 0.0
    %1076 = vmatprep.subr.mxu0 0.0
    %1077 = vmatpush1.msra.mxu0 0.0
    %1078 = vmatprep.subr.mxu0 0.0
    %1079 = vmatpush1.msra.mxu0 0.0
    %1080 = vmatprep.subr.mxu0 0.0
    %1081 = vmatpush1.msra.mxu0 0.0
    %1082 = vmatprep.subr.mxu0 0.0
    %1083 = vmatpush1.msra.mxu0 0.0
    %1084 = vmatprep.subr.mxu0 0.0
    %1085 = vmatpush1.msra.mxu0 0.0
    %1086 = vmatprep.subr.mxu0 0.0
    %1087 = vmatpush1.msra.mxu0 0.0
    %1088 = vmatprep.subr.mxu0 0.0
    %1089 = vmatpush1.msra.mxu0 0.0
    %1090 = vmatprep.subr.mxu0 0.0
    %1091 = vmatpush1.msra.mxu0 0.0
    %1092 = vmatprep.subr.mxu0 0.0
    %1093 = vmatpush1.msra.mxu0 %v1057
    %1094 = vmatprep.subr.mxu0 0.0
    %1095 = vmatpush2.msra.mxu0 0.0
    %1096 = vmatprep.subr.mxu0 0.0
    %1097 = vmatpush2.msra.mxu0 0.0
    %1098 = vmatprep.subr.mxu0 0.0
    %1099 = vmatpush2.msra.mxu0 0.0
    %1100 = vmatprep.subr.mxu0 0.0
    %1101 = vmatpush2.msra.mxu0 0.0
    %1102 = vmatprep.subr.mxu0 0.0
    %1103 = vmatpush2.msra.mxu0 0.0
    %1104 = vmatprep.subr.mxu0 0.0
    %1105 = vmatpush2.msra.mxu0 0.0
    %1106 = vmatprep.subr.mxu0 0.0
    %1107 = vmatpush2.msra.mxu0 0.0
    %1108 = vmatprep.subr.mxu0 0.0
    %1109 = vmatpush2.msra.mxu0 0.0
    %1110 = vmatprep.subr.mxu0 0.0
    %1111 = vmatpush2.msra.mxu0 0.0
    %1112 = vmatprep.subr.mxu0 0.0
    %1113 = vmatpush2.msra.mxu0 0.0
    %1114 = vmatprep.subr.mxu0 0.0
    %1115 = vmatpush2.msra.mxu0 0.0
    %1116 = vmatprep.subr.mxu0 0.0
    %1117 = vmatpush2.msra.mxu0 0.0
    %1118 = vmatprep.subr.mxu0 0.0
    %1119 = vmatpush2.msra.mxu0 0.0
    %1120 = vmatprep.subr.mxu0 0.0
    %1121 = vmatpush2.msra.mxu0 0.0
    %1122 = vmatprep.subr.mxu0 0.0
    %1123 = vmatpush2.msra.mxu0 0.0
    %1124 = vmatprep.subr.mxu0 0.0
    %1125 = vmatpush2.msra.mxu0 0.0
    %1126 = vmatprep.mubr.f32.mxu0 0.0
    %1127 = vmatmul.mubr.f32.gmra.mxu0 %v1060
    %v1128 = vpop.f32.mrf.mxu0
    %v1129 = vadd.f32 0.0, %v1128
    %v1130 = vpop.f32.mrf.mxu0
    %1131 = vdwg.mxu0
    %1132 = vrot.lane.b32.xlu0 %v330, 64
    %v1133 = vpop.permute.xlu0 %1132
    %v1136 = vsel %vm361, %v1049, 0
    %1138 = vmatprep.subr.mxu0 0.0
    %1139 = vmatpush1.msra.mxu0 0.0
    %1140 = vmatprep.subr.mxu0 0.0
    %1141 = vmatpush1.msra.mxu0 0.0
    %1142 = vmatprep.subr.mxu0 0.0
    %1143 = vmatpush1.msra.mxu0 0.0
    %1144 = vmatprep.subr.mxu0 0.0
    %1145 = vmatpush1.msra.mxu0 0.0
    %1146 = vmatprep.subr.mxu0 0.0
    %1147 = vmatpush1.msra.mxu0 0.0
    %1148 = vmatprep.subr.mxu0 0.0
    %1149 = vmatpush1.msra.mxu0 0.0
    %1150 = vmatprep.subr.mxu0 0.0
    %1151 = vmatpush1.msra.mxu0 0.0
    %1152 = vmatprep.subr.mxu0 0.0
    %1153 = vmatpush1.msra.mxu0 0.0
    %1154 = vmatprep.subr.mxu0 0.0
    %1155 = vmatpush1.msra.mxu0 0.0
    %1156 = vmatprep.subr.mxu0 0.0
    %1157 = vmatpush1.msra.mxu0 0.0
    %1158 = vmatprep.subr.mxu0 0.0
    %1159 = vmatpush1.msra.mxu0 0.0
    %1160 = vmatprep.subr.mxu0 0.0
    %1161 = vmatpush1.msra.mxu0 0.0
    %1162 = vmatprep.subr.mxu0 0.0
    %1163 = vmatpush1.msra.mxu0 0.0
    %1164 = vmatprep.subr.mxu0 0.0
    %1165 = vmatpush1.msra.mxu0 0.0
    %1166 = vmatprep.subr.mxu0 0.0
    %1167 = vmatpush1.msra.mxu0 0.0
    %1168 = vmatprep.subr.mxu0 0.0
    %1169 = vmatpush1.msra.mxu0 %v1133
    %1170 = vmatprep.subr.mxu0 0.0
    %1171 = vmatpush2.msra.mxu0 0.0
    %1172 = vmatprep.subr.mxu0 0.0
    %1173 = vmatpush2.msra.mxu0 0.0
    %1174 = vmatprep.subr.mxu0 0.0
    %1175 = vmatpush2.msra.mxu0 0.0
    %1176 = vmatprep.subr.mxu0 0.0
    %1177 = vmatpush2.msra.mxu0 0.0
    %1178 = vmatprep.subr.mxu0 0.0
    %1179 = vmatpush2.msra.mxu0 0.0
    %1180 = vmatprep.subr.mxu0 0.0
    %1181 = vmatpush2.msra.mxu0 0.0
    %1182 = vmatprep.subr.mxu0 0.0
    %1183 = vmatpush2.msra.mxu0 0.0
    %1184 = vmatprep.subr.mxu0 0.0
    %1185 = vmatpush2.msra.mxu0 0.0
    %1186 = vmatprep.subr.mxu0 0.0
    %1187 = vmatpush2.msra.mxu0 0.0
    %1188 = vmatprep.subr.mxu0 0.0
    %1189 = vmatpush2.msra.mxu0 0.0
    %1190 = vmatprep.subr.mxu0 0.0
    %1191 = vmatpush2.msra.mxu0 0.0
    %1192 = vmatprep.subr.mxu0 0.0
    %1193 = vmatpush2.msra.mxu0 0.0
    %1194 = vmatprep.subr.mxu0 0.0
    %1195 = vmatpush2.msra.mxu0 0.0
    %1196 = vmatprep.subr.mxu0 0.0
    %1197 = vmatpush2.msra.mxu0 0.0
    %1198 = vmatprep.subr.mxu0 0.0
    %1199 = vmatpush2.msra.mxu0 0.0
    %1200 = vmatprep.subr.mxu0 0.0
    %1201 = vmatpush2.msra.mxu0 0.0
    %1202 = vmatprep.mubr.f32.mxu0 0.0
    %1203 = vmatmul.mubr.f32.gmra.mxu0 %v1136
    %v1204 = vpop.f32.mrf.mxu0
    %v1205 = vadd.f32 0.0, %v1204
    %v1206 = vpop.f32.mrf.mxu0
    %1207 = vdwg.mxu0
    %1208 = vrot.lane.b32.xlu0 %v336, 64
    %v1209 = vpop.permute.xlu0 %1208
    %v1212 = vsel %vm361, %v1050, 0
    %1214 = vmatprep.subr.mxu0 0.0
    %1215 = vmatpush1.msra.mxu0 0.0
    %1216 = vmatprep.subr.mxu0 0.0
    %1217 = vmatpush1.msra.mxu0 0.0
    %1218 = vmatprep.subr.mxu0 0.0
    %1219 = vmatpush1.msra.mxu0 0.0
    %1220 = vmatprep.subr.mxu0 0.0
    %1221 = vmatpush1.msra.mxu0 0.0
    %1222 = vmatprep.subr.mxu0 0.0
    %1223 = vmatpush1.msra.mxu0 0.0
    %1224 = vmatprep.subr.mxu0 0.0
    %1225 = vmatpush1.msra.mxu0 0.0
    %1226 = vmatprep.subr.mxu0 0.0
    %1227 = vmatpush1.msra.mxu0 0.0
    %1228 = vmatprep.subr.mxu0 0.0
    %1229 = vmatpush1.msra.mxu0 0.0
    %1230 = vmatprep.subr.mxu0 0.0
    %1231 = vmatpush1.msra.mxu0 0.0
    %1232 = vmatprep.subr.mxu0 0.0
    %1233 = vmatpush1.msra.mxu0 0.0
    %1234 = vmatprep.subr.mxu0 0.0
    %1235 = vmatpush1.msra.mxu0 0.0
    %1236 = vmatprep.subr.mxu0 0.0
    %1237 = vmatpush1.msra.mxu0 0.0
    %1238 = vmatprep.subr.mxu0 0.0
    %1239 = vmatpush1.msra.mxu0 0.0
    %1240 = vmatprep.subr.mxu0 0.0
    %1241 = vmatpush1.msra.mxu0 0.0
    %1242 = vmatprep.subr.mxu0 0.0
    %1243 = vmatpush1.msra.mxu0 0.0
    %1244 = vmatprep.subr.mxu0 0.0
    %1245 = vmatpush1.msra.mxu0 %v1209
    %1246 = vmatprep.subr.mxu0 0.0
    %1247 = vmatpush2.msra.mxu0 0.0
    %1248 = vmatprep.subr.mxu0 0.0
    %1249 = vmatpush2.msra.mxu0 0.0
    %1250 = vmatprep.subr.mxu0 0.0
    %1251 = vmatpush2.msra.mxu0 0.0
    %1252 = vmatprep.subr.mxu0 0.0
    %1253 = vmatpush2.msra.mxu0 0.0
    %1254 = vmatprep.subr.mxu0 0.0
    %1255 = vmatpush2.msra.mxu0 0.0
    %1256 = vmatprep.subr.mxu0 0.0
    %1257 = vmatpush2.msra.mxu0 0.0
    %1258 = vmatprep.subr.mxu0 0.0
    %1259 = vmatpush2.msra.mxu0 0.0
    %1260 = vmatprep.subr.mxu0 0.0
    %1261 = vmatpush2.msra.mxu0 0.0
    %1262 = vmatprep.subr.mxu0 0.0
    %1263 = vmatpush2.msra.mxu0 0.0
    %1264 = vmatprep.subr.mxu0 0.0
    %1265 = vmatpush2.msra.mxu0 0.0
    %1266 = vmatprep.subr.mxu0 0.0
    %1267 = vmatpush2.msra.mxu0 0.0
    %1268 = vmatprep.subr.mxu0 0.0
    %1269 = vmatpush2.msra.mxu0 0.0
    %1270 = vmatprep.subr.mxu0 0.0
    %1271 = vmatpush2.msra.mxu0 0.0
    %1272 = vmatprep.subr.mxu0 0.0
    %1273 = vmatpush2.msra.mxu0 0.0
    %1274 = vmatprep.subr.mxu0 0.0
    %1275 = vmatpush2.msra.mxu0 0.0
    %1276 = vmatprep.subr.mxu0 0.0
    %1277 = vmatpush2.msra.mxu0 0.0
    %1278 = vmatprep.mubr.f32.mxu0 0.0
    %1279 = vmatmul.mubr.f32.gmra.mxu0 %v1212
    %v1280 = vpop.f32.mrf.mxu0
    %v1281 = vadd.f32 0.0, %v1280
    %v1282 = vpop.f32.mrf.mxu0
    %1283 = vdwg.mxu0
    %1284 = vrot.lane.b32.xlu0 %v338, 64
    %v1285 = vpop.permute.xlu0 %1284
    %v1288 = vsel %vm361, %v1051, 0
    %1290 = vmatprep.subr.mxu0 0.0
    %1291 = vmatpush1.msra.mxu0 0.0
    %1292 = vmatprep.subr.mxu0 0.0
    %1293 = vmatpush1.msra.mxu0 0.0
    %1294 = vmatprep.subr.mxu0 0.0
    %1295 = vmatpush1.msra.mxu0 0.0
    %1296 = vmatprep.subr.mxu0 0.0
    %1297 = vmatpush1.msra.mxu0 0.0
    %1298 = vmatprep.subr.mxu0 0.0
    %1299 = vmatpush1.msra.mxu0 0.0
    %1300 = vmatprep.subr.mxu0 0.0
    %1301 = vmatpush1.msra.mxu0 0.0
    %1302 = vmatprep.subr.mxu0 0.0
    %1303 = vmatpush1.msra.mxu0 0.0
    %1304 = vmatprep.subr.mxu0 0.0
    %1305 = vmatpush1.msra.mxu0 0.0
    %1306 = vmatprep.subr.mxu0 0.0
    %1307 = vmatpush1.msra.mxu0 0.0
    %1308 = vmatprep.subr.mxu0 0.0
    %1309 = vmatpush1.msra.mxu0 0.0
    %1310 = vmatprep.subr.mxu0 0.0
    %1311 = vmatpush1.msra.mxu0 0.0
    %1312 = vmatprep.subr.mxu0 0.0
    %1313 = vmatpush1.msra.mxu0 0.0
    %1314 = vmatprep.subr.mxu0 0.0
    %1315 = vmatpush1.msra.mxu0 0.0
    %1316 = vmatprep.subr.mxu0 0.0
    %1317 = vmatpush1.msra.mxu0 0.0
    %1318 = vmatprep.subr.mxu0 0.0
    %1319 = vmatpush1.msra.mxu0 0.0
    %1320 = vmatprep.subr.mxu0 0.0
    %1321 = vmatpush1.msra.mxu0 %v1285
    %1322 = vmatprep.subr.mxu0 0.0
    %1323 = vmatpush2.msra.mxu0 0.0
    %1324 = vmatprep.subr.mxu0 0.0
    %1325 = vmatpush2.msra.mxu0 0.0
    %1326 = vmatprep.subr.mxu0 0.0
    %1327 = vmatpush2.msra.mxu0 0.0
    %1328 = vmatprep.subr.mxu0 0.0
    %1329 = vmatpush2.msra.mxu0 0.0
    %1330 = vmatprep.subr.mxu0 0.0
    %1331 = vmatpush2.msra.mxu0 0.0
    %1332 = vmatprep.subr.mxu0 0.0
    %1333 = vmatpush2.msra.mxu0 0.0
    %1334 = vmatprep.subr.mxu0 0.0
    %1335 = vmatpush2.msra.mxu0 0.0
    %1336 = vmatprep.subr.mxu0 0.0
    %1337 = vmatpush2.msra.mxu0 0.0
    %1338 = vmatprep.subr.mxu0 0.0
    %1339 = vmatpush2.msra.mxu0 0.0
    %1340 = vmatprep.subr.mxu0 0.0
    %1341 = vmatpush2.msra.mxu0 0.0
    %1342 = vmatprep.subr.mxu0 0.0
    %1343 = vmatpush2.msra.mxu0 0.0
    %1344 = vmatprep.subr.mxu0 0.0
    %1345 = vmatpush2.msra.mxu0 0.0
    %1346 = vmatprep.subr.mxu0 0.0
    %1347 = vmatpush2.msra.mxu0 0.0
    %1348 = vmatprep.subr.mxu0 0.0
    %1349 = vmatpush2.msra.mxu0 0.0
    %1350 = vmatprep.subr.mxu0 0.0
    %1351 = vmatpush2.msra.mxu0 0.0
    %1352 = vmatprep.subr.mxu0 0.0
    %1353 = vmatpush2.msra.mxu0 0.0
    %1354 = vmatprep.mubr.f32.mxu0 0.0
    %1355 = vmatmul.mubr.f32.gmra.mxu0 %v1288
    %v1356 = vpop.f32.mrf.mxu0
    %v1357 = vadd.f32 0.0, %v1356
    %v1358 = vpop.f32.mrf.mxu0
    %1359 = vdwg.mxu0
    %1360 = vrot.lane.b32.xlu0 %v340, 64
    %v1361 = vpop.permute.xlu0 %1360
    %v1364 = vsel %vm361, %v1052, 0
    %1366 = vmatprep.subr.mxu0 0.0
    %1367 = vmatpush1.msra.mxu0 0.0
    %1368 = vmatprep.subr.mxu0 0.0
    %1369 = vmatpush1.msra.mxu0 0.0
    %1370 = vmatprep.subr.mxu0 0.0
    %1371 = vmatpush1.msra.mxu0 0.0
    %1372 = vmatprep.subr.mxu0 0.0
    %1373 = vmatpush1.msra.mxu0 0.0
    %1374 = vmatprep.subr.mxu0 0.0
    %1375 = vmatpush1.msra.mxu0 0.0
    %1376 = vmatprep.subr.mxu0 0.0
    %1377 = vmatpush1.msra.mxu0 0.0
    %1378 = vmatprep.subr.mxu0 0.0
    %1379 = vmatpush1.msra.mxu0 0.0
    %1380 = vmatprep.subr.mxu0 0.0
    %1381 = vmatpush1.msra.mxu0 0.0
    %1382 = vmatprep.subr.mxu0 0.0
    %1383 = vmatpush1.msra.mxu0 0.0
    %1384 = vmatprep.subr.mxu0 0.0
    %1385 = vmatpush1.msra.mxu0 0.0
    %1386 = vmatprep.subr.mxu0 0.0
    %1387 = vmatpush1.msra.mxu0 0.0
    %1388 = vmatprep.subr.mxu0 0.0
    %1389 = vmatpush1.msra.mxu0 0.0
    %1390 = vmatprep.subr.mxu0 0.0
    %1391 = vmatpush1.msra.mxu0 0.0
    %1392 = vmatprep.subr.mxu0 0.0
    %1393 = vmatpush1.msra.mxu0 0.0
    %1394 = vmatprep.subr.mxu0 0.0
    %1395 = vmatpush1.msra.mxu0 0.0
    %1396 = vmatprep.subr.mxu0 0.0
    %1397 = vmatpush1.msra.mxu0 %v1361
    %1398 = vmatprep.subr.mxu0 0.0
    %1399 = vmatpush2.msra.mxu0 0.0
    %1400 = vmatprep.subr.mxu0 0.0
    %1401 = vmatpush2.msra.mxu0 0.0
    %1402 = vmatprep.subr.mxu0 0.0
    %1403 = vmatpush2.msra.mxu0 0.0
    %1404 = vmatprep.subr.mxu0 0.0
    %1405 = vmatpush2.msra.mxu0 0.0
    %1406 = vmatprep.subr.mxu0 0.0
    %1407 = vmatpush2.msra.mxu0 0.0
    %1408 = vmatprep.subr.mxu0 0.0
    %1409 = vmatpush2.msra.mxu0 0.0
    %1410 = vmatprep.subr.mxu0 0.0
    %1411 = vmatpush2.msra.mxu0 0.0
    %1412 = vmatprep.subr.mxu0 0.0
    %1413 = vmatpush2.msra.mxu0 0.0
    %1414 = vmatprep.subr.mxu0 0.0
    %1415 = vmatpush2.msra.mxu0 0.0
    %1416 = vmatprep.subr.mxu0 0.0
    %1417 = vmatpush2.msra.mxu0 0.0
    %1418 = vmatprep.subr.mxu0 0.0
    %1419 = vmatpush2.msra.mxu0 0.0
    %1420 = vmatprep.subr.mxu0 0.0
    %1421 = vmatpush2.msra.mxu0 0.0
    %1422 = vmatprep.subr.mxu0 0.0
    %1423 = vmatpush2.msra.mxu0 0.0
    %1424 = vmatprep.subr.mxu0 0.0
    %1425 = vmatpush2.msra.mxu0 0.0
    %1426 = vmatprep.subr.mxu0 0.0
    %1427 = vmatpush2.msra.mxu0 0.0
    %1428 = vmatprep.subr.mxu0 0.0
    %1429 = vmatpush2.msra.mxu0 0.0
    %1430 = vmatprep.mubr.f32.mxu0 0.0
    %1431 = vmatmul.mubr.f32.gmra.mxu0 %v1364
    %v1432 = vpop.f32.mrf.mxu0
    %v1433 = vadd.f32 0.0, %v1432
    %v1434 = vpop.f32.mrf.mxu0
    %1435 = vdwg.mxu0
    %1436 = vrot.lane.b32.xlu0 %v342, 64
    %v1437 = vpop.permute.xlu0 %1436
    %v1440 = vsel %vm361, %v1053, 0
    %1442 = vmatprep.subr.mxu0 0.0
    %1443 = vmatpush1.msra.mxu0 0.0
    %1444 = vmatprep.subr.mxu0 0.0
    %1445 = vmatpush1.msra.mxu0 0.0
    %1446 = vmatprep.subr.mxu0 0.0
    %1447 = vmatpush1.msra.mxu0 0.0
    %1448 = vmatprep.subr.mxu0 0.0
    %1449 = vmatpush1.msra.mxu0 0.0
    %1450 = vmatprep.subr.mxu0 0.0
    %1451 = vmatpush1.msra.mxu0 0.0
    %1452 = vmatprep.subr.mxu0 0.0
    %1453 = vmatpush1.msra.mxu0 0.0
    %1454 = vmatprep.subr.mxu0 0.0
    %1455 = vmatpush1.msra.mxu0 0.0
    %1456 = vmatprep.subr.mxu0 0.0
    %1457 = vmatpush1.msra.mxu0 0.0
    %1458 = vmatprep.subr.mxu0 0.0
    %1459 = vmatpush1.msra.mxu0 0.0
    %1460 = vmatprep.subr.mxu0 0.0
    %1461 = vmatpush1.msra.mxu0 0.0
    %1462 = vmatprep.subr.mxu0 0.0
    %1463 = vmatpush1.msra.mxu0 0.0
    %1464 = vmatprep.subr.mxu0 0.0
    %1465 = vmatpush1.msra.mxu0 0.0
    %1466 = vmatprep.subr.mxu0 0.0
    %1467 = vmatpush1.msra.mxu0 0.0
    %1468 = vmatprep.subr.mxu0 0.0
    %1469 = vmatpush1.msra.mxu0 0.0
    %1470 = vmatprep.subr.mxu0 0.0
    %1471 = vmatpush1.msra.mxu0 0.0
    %1472 = vmatprep.subr.mxu0 0.0
    %1473 = vmatpush1.msra.mxu0 %v1437
    %1474 = vmatprep.subr.mxu0 0.0
    %1475 = vmatpush2.msra.mxu0 0.0
    %1476 = vmatprep.subr.mxu0 0.0
    %1477 = vmatpush2.msra.mxu0 0.0
    %1478 = vmatprep.subr.mxu0 0.0
    %1479 = vmatpush2.msra.mxu0 0.0
    %1480 = vmatprep.subr.mxu0 0.0
    %1481 = vmatpush2.msra.mxu0 0.0
    %1482 = vmatprep.subr.mxu0 0.0
    %1483 = vmatpush2.msra.mxu0 0.0
    %1484 = vmatprep.subr.mxu0 0.0
    %1485 = vmatpush2.msra.mxu0 0.0
    %1486 = vmatprep.subr.mxu0 0.0
    %1487 = vmatpush2.msra.mxu0 0.0
    %1488 = vmatprep.subr.mxu0 0.0
    %1489 = vmatpush2.msra.mxu0 0.0
    %1490 = vmatprep.subr.mxu0 0.0
    %1491 = vmatpush2.msra.mxu0 0.0
    %1492 = vmatprep.subr.mxu0 0.0
    %1493 = vmatpush2.msra.mxu0 0.0
    %1494 = vmatprep.subr.mxu0 0.0
    %1495 = vmatpush2.msra.mxu0 0.0
    %1496 = vmatprep.subr.mxu0 0.0
    %1497 = vmatpush2.msra.mxu0 0.0
    %1498 = vmatprep.subr.mxu0 0.0
    %1499 = vmatpush2.msra.mxu0 0.0
    %1500 = vmatprep.subr.mxu0 0.0
    %1501 = vmatpush2.msra.mxu0 0.0
    %1502 = vmatprep.subr.mxu0 0.0
    %1503 = vmatpush2.msra.mxu0 0.0
    %1504 = vmatprep.subr.mxu0 0.0
    %1505 = vmatpush2.msra.mxu0 0.0
    %1506 = vmatprep.mubr.f32.mxu0 0.0
    %1507 = vmatmul.mubr.f32.gmra.mxu0 %v1440
    %v1508 = vpop.f32.mrf.mxu0
    %v1509 = vadd.f32 0.0, %v1508
    %v1510 = vpop.f32.mrf.mxu0
    %1511 = vdwg.mxu0
    %1512 = vrot.lane.b32.xlu0 %v344, 64
    %v1513 = vpop.permute.xlu0 %1512
    %v1516 = vsel %vm361, %v1054, 0
    %1518 = vmatprep.subr.mxu0 0.0
    %1519 = vmatpush1.msra.mxu0 0.0
    %1520 = vmatprep.subr.mxu0 0.0
    %1521 = vmatpush1.msra.mxu0 0.0
    %1522 = vmatprep.subr.mxu0 0.0
    %1523 = vmatpush1.msra.mxu0 0.0
    %1524 = vmatprep.subr.mxu0 0.0
    %1525 = vmatpush1.msra.mxu0 0.0
    %1526 = vmatprep.subr.mxu0 0.0
    %1527 = vmatpush1.msra.mxu0 0.0
    %1528 = vmatprep.subr.mxu0 0.0
    %1529 = vmatpush1.msra.mxu0 0.0
    %1530 = vmatprep.subr.mxu0 0.0
    %1531 = vmatpush1.msra.mxu0 0.0
    %1532 = vmatprep.subr.mxu0 0.0
    %1533 = vmatpush1.msra.mxu0 0.0
    %1534 = vmatprep.subr.mxu0 0.0
    %1535 = vmatpush1.msra.mxu0 0.0
    %1536 = vmatprep.subr.mxu0 0.0
    %1537 = vmatpush1.msra.mxu0 0.0
    %1538 = vmatprep.subr.mxu0 0.0
    %1539 = vmatpush1.msra.mxu0 0.0
    %1540 = vmatprep.subr.mxu0 0.0
    %1541 = vmatpush1.msra.mxu0 0.0
    %1542 = vmatprep.subr.mxu0 0.0
    %1543 = vmatpush1.msra.mxu0 0.0
    %1544 = vmatprep.subr.mxu0 0.0
    %1545 = vmatpush1.msra.mxu0 0.0
    %1546 = vmatprep.subr.mxu0 0.0
    %1547 = vmatpush1.msra.mxu0 0.0
    %1548 = vmatprep.subr.mxu0 0.0
    %1549 = vmatpush1.msra.mxu0 %v1513
    %1550 = vmatprep.subr.mxu0 0.0
    %1551 = vmatpush2.msra.mxu0 0.0
    %1552 = vmatprep.subr.mxu0 0.0
    %1553 = vmatpush2.msra.mxu0 0.0
    %1554 = vmatprep.subr.mxu0 0.0
    %1555 = vmatpush2.msra.mxu0 0.0
    %1556 = vmatprep.subr.mxu0 0.0
    %1557 = vmatpush2.msra.mxu0 0.0
    %1558 = vmatprep.subr.mxu0 0.0
    %1559 = vmatpush2.msra.mxu0 0.0
    %1560 = vmatprep.subr.mxu0 0.0
    %1561 = vmatpush2.msra.mxu0 0.0
    %1562 = vmatprep.subr.mxu0 0.0
    %1563 = vmatpush2.msra.mxu0 0.0
    %1564 = vmatprep.subr.mxu0 0.0
    %1565 = vmatpush2.msra.mxu0 0.0
    %1566 = vmatprep.subr.mxu0 0.0
    %1567 = vmatpush2.msra.mxu0 0.0
    %1568 = vmatprep.subr.mxu0 0.0
    %1569 = vmatpush2.msra.mxu0 0.0
    %1570 = vmatprep.subr.mxu0 0.0
    %1571 = vmatpush2.msra.mxu0 0.0
    %1572 = vmatprep.subr.mxu0 0.0
    %1573 = vmatpush2.msra.mxu0 0.0
    %1574 = vmatprep.subr.mxu0 0.0
    %1575 = vmatpush2.msra.mxu0 0.0
    %1576 = vmatprep.subr.mxu0 0.0
    %1577 = vmatpush2.msra.mxu0 0.0
    %1578 = vmatprep.subr.mxu0 0.0
    %1579 = vmatpush2.msra.mxu0 0.0
    %1580 = vmatprep.subr.mxu0 0.0
    %1581 = vmatpush2.msra.mxu0 0.0
    %1582 = vmatprep.mubr.f32.mxu0 0.0
    %1583 = vmatmul.mubr.f32.gmra.mxu0 %v1516
    %v1584 = vpop.f32.mrf.mxu0
    %v1585 = vadd.f32 0.0, %v1584
    %v1586 = vpop.f32.mrf.mxu0
    %1587 = vdwg.mxu0
    %1588 = vrot.lane.b32.xlu0 %v346, 64
    %v1589 = vpop.permute.xlu0 %1588
    %v1592 = vsel %vm361, %v1055, 0
    %1594 = vmatprep.subr.mxu0 0.0
    %1595 = vmatpush1.msra.mxu0 0.0
    %1596 = vmatprep.subr.mxu0 0.0
    %1597 = vmatpush1.msra.mxu0 0.0
    %1598 = vmatprep.subr.mxu0 0.0
    %1599 = vmatpush1.msra.mxu0 0.0
    %1600 = vmatprep.subr.mxu0 0.0
    %1601 = vmatpush1.msra.mxu0 0.0
    %1602 = vmatprep.subr.mxu0 0.0
    %1603 = vmatpush1.msra.mxu0 0.0
    %1604 = vmatprep.subr.mxu0 0.0
    %1605 = vmatpush1.msra.mxu0 0.0
    %1606 = vmatprep.subr.mxu0 0.0
    %1607 = vmatpush1.msra.mxu0 0.0
    %1608 = vmatprep.subr.mxu0 0.0
    %1609 = vmatpush1.msra.mxu0 0.0
    %1610 = vmatprep.subr.mxu0 0.0
    %1611 = vmatpush1.msra.mxu0 0.0
    %1612 = vmatprep.subr.mxu0 0.0
    %1613 = vmatpush1.msra.mxu0 0.0
    %1614 = vmatprep.subr.mxu0 0.0
    %1615 = vmatpush1.msra.mxu0 0.0
    %1616 = vmatprep.subr.mxu0 0.0
    %1617 = vmatpush1.msra.mxu0 0.0
    %1618 = vmatprep.subr.mxu0 0.0
    %1619 = vmatpush1.msra.mxu0 0.0
    %1620 = vmatprep.subr.mxu0 0.0
    %1621 = vmatpush1.msra.mxu0 0.0
    %1622 = vmatprep.subr.mxu0 0.0
    %1623 = vmatpush1.msra.mxu0 0.0
    %1624 = vmatprep.subr.mxu0 0.0
    %1625 = vmatpush1.msra.mxu0 %v1589
    %1626 = vmatprep.subr.mxu0 0.0
    %1627 = vmatpush2.msra.mxu0 0.0
    %1628 = vmatprep.subr.mxu0 0.0
    %1629 = vmatpush2.msra.mxu0 0.0
    %1630 = vmatprep.subr.mxu0 0.0
    %1631 = vmatpush2.msra.mxu0 0.0
    %1632 = vmatprep.subr.mxu0 0.0
    %1633 = vmatpush2.msra.mxu0 0.0
    %1634 = vmatprep.subr.mxu0 0.0
    %1635 = vmatpush2.msra.mxu0 0.0
    %1636 = vmatprep.subr.mxu0 0.0
    %1637 = vmatpush2.msra.mxu0 0.0
    %1638 = vmatprep.subr.mxu0 0.0
    %1639 = vmatpush2.msra.mxu0 0.0
    %1640 = vmatprep.subr.mxu0 0.0
    %1641 = vmatpush2.msra.mxu0 0.0
    %1642 = vmatprep.subr.mxu0 0.0
    %1643 = vmatpush2.msra.mxu0 0.0
    %1644 = vmatprep.subr.mxu0 0.0
    %1645 = vmatpush2.msra.mxu0 0.0
    %1646 = vmatprep.subr.mxu0 0.0
    %1647 = vmatpush2.msra.mxu0 0.0
    %1648 = vmatprep.subr.mxu0 0.0
    %1649 = vmatpush2.msra.mxu0 0.0
    %1650 = vmatprep.subr.mxu0 0.0
    %1651 = vmatpush2.msra.mxu0 0.0
    %1652 = vmatprep.subr.mxu0 0.0
    %1653 = vmatpush2.msra.mxu0 0.0
    %1654 = vmatprep.subr.mxu0 0.0
    %1655 = vmatpush2.msra.mxu0 0.0
    %1656 = vmatprep.subr.mxu0 0.0
    %1657 = vmatpush2.msra.mxu0 0.0
    %1658 = vmatprep.mubr.f32.mxu0 0.0
    %1659 = vmatmul.mubr.f32.gmra.mxu0 %v1592
    %v1660 = vpop.f32.mrf.mxu0
    %v1661 = vadd.f32 0.0, %v1660
    %v1662 = vpop.f32.mrf.mxu0
    %1663 = vdwg.mxu0
    %1666 = vrot.lane.b32.xlu0 %v1281, 8
    %v1667 = vpop.permute.xlu0 %1666
    %1668 = vrot.lane.b32.xlu0 %v1357, 8
    %v1669 = vpop.permute.xlu0 %1668
    %1674 = vrot.lane.b32.xlu0 %v1433, 16
    %v1675 = vpop.permute.xlu0 %1674
    %1676 = vrot.lane.b32.xlu0 %v1509, 16
    %v1677 = vpop.permute.xlu0 %1676
    %1682 = vrot.lane.b32.xlu0 %v1585, 24
    %v1683 = vpop.permute.xlu0 %1682
    %1684 = vrot.lane.b32.xlu0 %v1661, 24
    %v1685 = vpop.permute.xlu0 %1684
    %v1688 = vsel %vm361, %v1129, %v1667
    %v1689 = vsel %vm361, %v1205, %v1669
    %vm1690 = vcmask 130048
    %v1691 = vsel %vm1690, %v1688, %v1675
    %v1692 = vsel %vm1690, %v1689, %v1677
    %vm1693 = vcmask 195584
    %v1694 = vsel %vm1693, %v1691, %v1683
    %v1695 = vsel %vm1693, %v1692, %v1685
    %v1696 = vld [vmem:[#allocation7] sm:$0xff]
    %v1697 = vld [vmem:[#allocation7 + $0x8] sm:$0xff]
    %v1698 = vld [vmem:[#allocation7 + $0x10] sm:$0xff]
    %v1699 = vld [vmem:[#allocation7 + $0x18] sm:$0xff]
    %v1700 = vlaneseq
    %v1701 = vshrl.u32 %v1700, 7
    %v1702 = vsub.s32 1, %v1701
    %v1703 = vrot.slane %v242, %v1702
    %v1705 = vsel %vm251, %v1694, 0
    %v1708 = vsel %vm251, %v1695, 0
    %1710 = vmatprep.subr.mxu0 0.0
    %1711 = vmatpush1.msra.mxu0 0.0
    %1712 = vmatprep.subr.mxu0 0.0
    %1713 = vmatpush1.msra.mxu0 0.0
    %1714 = vmatprep.subr.mxu0 0.0
    %1715 = vmatpush1.msra.mxu0 0.0
    %1716 = vmatprep.subr.mxu0 0.0
    %1717 = vmatpush1.msra.mxu0 0.0
    %1718 = vmatprep.subr.mxu0 0.0
    %1719 = vmatpush1.msra.mxu0 0.0
    %1720 = vmatprep.subr.mxu0 0.0
    %1721 = vmatpush1.msra.mxu0 0.0
    %1722 = vmatprep.subr.mxu0 0.0
    %1723 = vmatpush1.msra.mxu0 0.0
    %1724 = vmatprep.subr.mxu0 0.0
    %1725 = vmatpush1.msra.mxu0 0.0
    %1726 = vmatprep.subr.mxu0 0.0
    %1727 = vmatpush1.msra.mxu0 0.0
    %1728 = vmatprep.subr.mxu0 0.0
    %1729 = vmatpush1.msra.mxu0 0.0
    %1730 = vmatprep.subr.mxu0 0.0
    %1731 = vmatpush1.msra.mxu0 0.0
    %1732 = vmatprep.subr.mxu0 0.0
    %1733 = vmatpush1.msra.mxu0 0.0
    %1734 = vmatprep.subr.mxu0 0.0
    %1735 = vmatpush1.msra.mxu0 %v1699
    %1736 = vmatprep.subr.mxu0 0.0
    %1737 = vmatpush1.msra.mxu0 %v1698
    %1738 = vmatprep.subr.mxu0 0.0
    %1739 = vmatpush1.msra.mxu0 %v1697
    %1740 = vmatprep.subr.mxu0 0.0
    %1741 = vmatpush1.msra.mxu0 %v1696
    %1742 = vmatprep.subr.mxu0 0.0
    %1743 = vmatpush2.msra.mxu0 0.0
    %1744 = vmatprep.subr.mxu0 0.0
    %1745 = vmatpush2.msra.mxu0 0.0
    %1746 = vmatprep.subr.mxu0 0.0
    %1747 = vmatpush2.msra.mxu0 0.0
    %1748 = vmatprep.subr.mxu0 0.0
    %1749 = vmatpush2.msra.mxu0 0.0
    %1750 = vmatprep.subr.mxu0 0.0
    %1751 = vmatpush2.msra.mxu0 0.0
    %1752 = vmatprep.subr.mxu0 0.0
    %1753 = vmatpush2.msra.mxu0 0.0
    %1754 = vmatprep.subr.mxu0 0.0
    %1755 = vmatpush2.msra.mxu0 0.0
    %1756 = vmatprep.subr.mxu0 0.0
    %1757 = vmatpush2.msra.mxu0 0.0
    %1758 = vmatprep.subr.mxu0 0.0
    %1759 = vmatpush2.msra.mxu0 0.0
    %1760 = vmatprep.subr.mxu0 0.0
    %1761 = vmatpush2.msra.mxu0 0.0
    %1762 = vmatprep.subr.mxu0 0.0
    %1763 = vmatpush2.msra.mxu0 0.0
    %1764 = vmatprep.subr.mxu0 0.0
    %1765 = vmatpush2.msra.mxu0 0.0
    %1766 = vmatprep.subr.mxu0 0.0
    %1767 = vmatpush2.msra.mxu0 0.0
    %1768 = vmatprep.subr.mxu0 0.0
    %1769 = vmatpush2.msra.mxu0 0.0
    %1770 = vmatprep.subr.mxu0 0.0
    %1771 = vmatpush2.msra.mxu0 0.0
    %1772 = vmatprep.subr.mxu0 0.0
    %1773 = vmatpush2.msra.mxu0 0.0
    %1774 = vmatprep.mubr.f32.mxu0 0.0
    %1775 = vmatmul.mubr.f32.gmra.mxu0 %v1705
    %v1776 = vpop.f32.mrf.mxu0
    %v1777 = vadd.f32 %v1703, %v1776
    %v1778 = vpop.f32.mrf.mxu0
    %1779 = vmatprep.mubr.f32.mxu0 0.0
    %1780 = vmatmul.mubr.f32.gmra.mxu0 %v1708
    %v1781 = vpop.f32.mrf.mxu0
    %v1782 = vadd.f32 %v1703, %v1781
    %v1783 = vpop.f32.mrf.mxu0
    %1784 = vdwg.mxu0
    %v1785 = vadd.f32 %v238, %v1777
    %v1786 = vadd.f32 %v239, %v1782
    %v1787 = vsel %vm251, %v1785, 0.0
    %1788 = vadd.xlane.f32.xlu0 %v1787
    %v1789 = vpop.xlane.xlu0 %1788
    %v1790 = vsel %vm251, %v1786, 0.0
    %1791 = vadd.xlane.f32.xlu0 %v1790
    %v1792 = vpop.xlane.xlu0 %1791
    %v1793 = vrcp.pop 32.0
    %v1794 = vmul.f32 %v1789, %v1793
    %v1795 = vmul.f32 %v1792, %v1793
    %v1796 = vsub.f32 %v1785, %v1794
    %v1797 = vsub.f32 %v1786, %v1795
    %v1798 = vmul.f32 %v1796, %v1796
    %v1799 = vmul.f32 %v1797, %v1797
    %v1800 = vsel %vm251, %v1798, 0.0
    %1801 = vadd.xlane.f32.xlu0 %v1800
    %v1802 = vpop.xlane.xlu0 %1801
    %v1803 = vsel %vm251, %v1799, 0.0
    %1804 = vadd.xlane.f32.xlu0 %v1803
    %v1805 = vpop.xlane.xlu0 %1804
    %v1806 = vmul.f32 %v1802, %v1793
    %v1807 = vmul.f32 %v1805, %v1793
    %v1808 = vadd.f32 %v1806, 1e-05
    %v1809 = vadd.f32 %v1807, 1e-05
    %v1810 = vrsqrt.pop %v1808
    %v1811 = vrsqrt.pop %v1809
    %v1812 = vmul.f32 %v1796, %v1810
    %v1813 = vmul.f32 %v1797, %v1811
    %v1814 = vlaneseq
    %v1815 = vshrl.u32 %v1814, 7
    %v1816 = vsub.s32 4, %v1815
    %v1817 = vrot.slane %v242, %v1816
    %v1818 = vmul.f32 %v1812, %v1817
    %v1819 = vmul.f32 %v1813, %v1817
    %v1820 = vlaneseq
    %v1821 = vshrl.u32 %v1820, 7
    %v1822 = vsub.s32 5, %v1821
    %v1823 = vrot.slane %v242, %v1822
    %v1824 = vadd.f32 %v1818, %v1823
    %v1825 = vadd.f32 %v1819, %v1823
    %v1826 = vld [vmem:[#allocation8] sm:$0xff]
    %v1827 = vld [vmem:[#allocation8 + $0x8] sm:$0xff]
    %v1828 = vld [vmem:[#allocation8 + $0x10] sm:$0xff]
    %v1829 = vld [vmem:[#allocation8 + $0x18] sm:$0xff]
    %v1830 = vlaneseq
    %v1831 = vshrl.u32 %v1830, 7
    %v1832 = vsub.s32 2, %v1831
    %v1833 = vrot.slane %v242, %v1832
    %v1835 = vsel %vm251, %v1824, 0
    %v1838 = vsel %vm251, %v1825, 0
    %1840 = vmatprep.subr.mxu0 0.0
    %1841 = vmatpush1.msra.mxu0 0.0
    %1842 = vmatprep.subr.mxu0 0.0
    %1843 = vmatpush1.msra.mxu0 0.0
    %1844 = vmatprep.subr.mxu0 0.0
    %1845 = vmatpush1.msra.mxu0 0.0
    %1846 = vmatprep.subr.mxu0 0.0
    %1847 = vmatpush1.msra.mxu0 0.0
    %1848 = vmatprep.subr.mxu0 0.0
    %1849 = vmatpush1.msra.mxu0 0.0
    %1850 = vmatprep.subr.mxu0 0.0
    %1851 = vmatpush1.msra.mxu0 0.0
    %1852 = vmatprep.subr.mxu0 0.0
    %1853 = vmatpush1.msra.mxu0 0.0
    %1854 = vmatprep.subr.mxu0 0.0
    %1855 = vmatpush1.msra.mxu0 0.0
    %1856 = vmatprep.subr.mxu0 0.0
    %1857 = vmatpush1.msra.mxu0 0.0
    %1858 = vmatprep.subr.mxu0 0.0
    %1859 = vmatpush1.msra.mxu0 0.0
    %1860 = vmatprep.subr.mxu0 0.0
    %1861 = vmatpush1.msra.mxu0 0.0
    %1862 = vmatprep.subr.mxu0 0.0
    %1863 = vmatpush1.msra.mxu0 0.0
    %1864 = vmatprep.subr.mxu0 0.0
    %1865 = vmatpush1.msra.mxu0 %v1829
    %1866 = vmatprep.subr.mxu0 0.0
    %1867 = vmatpush1.msra.mxu0 %v1828
    %1868 = vmatprep.subr.mxu0 0.0
    %1869 = vmatpush1.msra.mxu0 %v1827
    %1870 = vmatprep.subr.mxu0 0.0
    %1871 = vmatpush1.msra.mxu0 %v1826
    %1872 = vmatprep.subr.mxu0 0.0
    %1873 = vmatpush2.msra.mxu0 0.0
    %1874 = vmatprep.subr.mxu0 0.0
    %1875 = vmatpush2.msra.mxu0 0.0
    %1876 = vmatprep.subr.mxu0 0.0
    %1877 = vmatpush2.msra.mxu0 0.0
    %1878 = vmatprep.subr.mxu0 0.0
    %1879 = vmatpush2.msra.mxu0 0.0
    %1880 = vmatprep.subr.mxu0 0.0
    %1881 = vmatpush2.msra.mxu0 0.0
    %1882 = vmatprep.subr.mxu0 0.0
    %1883 = vmatpush2.msra.mxu0 0.0
    %1884 = vmatprep.subr.mxu0 0.0
    %1885 = vmatpush2.msra.mxu0 0.0
    %1886 = vmatprep.subr.mxu0 0.0
    %1887 = vmatpush2.msra.mxu0 0.0
    %1888 = vmatprep.subr.mxu0 0.0
    %1889 = vmatpush2.msra.mxu0 0.0
    %1890 = vmatprep.subr.mxu0 0.0
    %1891 = vmatpush2.msra.mxu0 0.0
    %1892 = vmatprep.subr.mxu0 0.0
    %1893 = vmatpush2.msra.mxu0 0.0
    %1894 = vmatprep.subr.mxu0 0.0
    %1895 = vmatpush2.msra.mxu0 0.0
    %1896 = vmatprep.subr.mxu0 0.0
    %1897 = vmatpush2.msra.mxu0 0.0
    %1898 = vmatprep.subr.mxu0 0.0
    %1899 = vmatpush2.msra.mxu0 0.0
    %1900 = vmatprep.subr.mxu0 0.0
    %1901 = vmatpush2.msra.mxu0 0.0
    %1902 = vmatprep.subr.mxu0 0.0
    %1903 = vmatpush2.msra.mxu0 0.0
    %1904 = vmatprep.mubr.f32.mxu0 0.0
    %1905 = vmatmul.mubr.f32.gmra.mxu0 %v1835
    %v1906 = vpop.f32.mrf.mxu0
    %v1907 = vadd.f32 %v1833, %v1906
    %v1908 = vpop.f32.mrf.mxu0
    %1909 = vmatprep.mubr.f32.mxu0 0.0
    %1910 = vmatmul.mubr.f32.gmra.mxu0 %v1838
    %v1911 = vpop.f32.mrf.mxu0
    %v1912 = vadd.f32 %v1833, %v1911
    %v1913 = vpop.f32.mrf.mxu0
    %1914 = vdwg.mxu0
    %v1915 = vmax.f32 %v1907, 0.0
    %v1916 = vmax.f32 %v1912, 0.0
    %v1917 = vld [vmem:[#allocation10] sm:$0xff]
    %v1918 = vld [vmem:[#allocation10 + $0x8] sm:$0xff]
    %v1919 = vld [vmem:[#allocation10 + $0x10] sm:$0xff]
    %v1920 = vld [vmem:[#allocation10 + $0x18] sm:$0xff]
    %v1921 = vld [vmem:[#allocation10 + $0x20] sm:$0xff]
    %v1922 = vld [vmem:[#allocation10 + $0x28] sm:$0xff]
    %v1923 = vld [vmem:[#allocation10 + $0x30] sm:$0xff]
    %v1924 = vld [vmem:[#allocation10 + $0x38] sm:$0xff]
    %v1925 = vlaneseq
    %v1926 = vshrl.u32 %v1925, 7
    %v1927 = vsub.s32 3, %v1926
    %v1928 = vrot.slane %v242, %v1927
    %vm1929 = vcmask 523264
    %v1931 = vsel %vm1929, %v1915, 0
    %v1934 = vsel %vm1929, %v1916, 0
    %1936 = vmatprep.subr.mxu0 0.0
    %1937 = vmatpush1.msra.mxu0 0.0
    %1938 = vmatprep.subr.mxu0 0.0
    %1939 = vmatpush1.msra.mxu0 0.0
    %1940 = vmatprep.subr.mxu0 0.0
    %1941 = vmatpush1.msra.mxu0 0.0
    %1942 = vmatprep.subr.mxu0 0.0
    %1943 = vmatpush1.msra.mxu0 0.0
    %1944 = vmatprep.subr.mxu0 0.0
    %1945 = vmatpush1.msra.mxu0 0.0
    %1946 = vmatprep.subr.mxu0 0.0
    %1947 = vmatpush1.msra.mxu0 0.0
    %1948 = vmatprep.subr.mxu0 0.0
    %1949 = vmatpush1.msra.mxu0 0.0
    %1950 = vmatprep.subr.mxu0 0.0
    %1951 = vmatpush1.msra.mxu0 0.0
    %1952 = vmatprep.subr.mxu0 0.0
    %1953 = vmatpush1.msra.mxu0 %v1924
    %1954 = vmatprep.subr.mxu0 0.0
    %1955 = vmatpush1.msra.mxu0 %v1923
    %1956 = vmatprep.subr.mxu0 0.0
    %1957 = vmatpush1.msra.mxu0 %v1922
    %1958 = vmatprep.subr.mxu0 0.0
    %1959 = vmatpush1.msra.mxu0 %v1921
    %1960 = vmatprep.subr.mxu0 0.0
    %1961 = vmatpush1.msra.mxu0 %v1920
    %1962 = vmatprep.subr.mxu0 0.0
    %1963 = vmatpush1.msra.mxu0 %v1919
    %1964 = vmatprep.subr.mxu0 0.0
    %1965 = vmatpush1.msra.mxu0 %v1918
    %1966 = vmatprep.subr.mxu0 0.0
    %1967 = vmatpush1.msra.mxu0 %v1917
    %1968 = vmatprep.subr.mxu0 0.0
    %1969 = vmatpush2.msra.mxu0 0.0
    %1970 = vmatprep.subr.mxu0 0.0
    %1971 = vmatpush2.msra.mxu0 0.0
    %1972 = vmatprep.subr.mxu0 0.0
    %1973 = vmatpush2.msra.mxu0 0.0
    %1974 = vmatprep.subr.mxu0 0.0
    %1975 = vmatpush2.msra.mxu0 0.0
    %1976 = vmatprep.subr.mxu0 0.0
    %1977 = vmatpush2.msra.mxu0 0.0
    %1978 = vmatprep.subr.mxu0 0.0
    %1979 = vmatpush2.msra.mxu0 0.0
    %1980 = vmatprep.subr.mxu0 0.0
    %1981 = vmatpush2.msra.mxu0 0.0
    %1982 = vmatprep.subr.mxu0 0.0
    %1983 = vmatpush2.msra.mxu0 0.0
    %1984 = vmatprep.subr.mxu0 0.0
    %1985 = vmatpush2.msra.mxu0 0.0
    %1986 = vmatprep.subr.mxu0 0.0
    %1987 = vmatpush2.msra.mxu0 0.0
    %1988 = vmatprep.subr.mxu0 0.0
    %1989 = vmatpush2.msra.mxu0 0.0
    %1990 = vmatprep.subr.mxu0 0.0
    %1991 = vmatpush2.msra.mxu0 0.0
    %1992 = vmatprep.subr.mxu0 0.0
    %1993 = vmatpush2.msra.mxu0 0.0
    %1994 = vmatprep.subr.mxu0 0.0
    %1995 = vmatpush2.msra.mxu0 0.0
    %1996 = vmatprep.subr.mxu0 0.0
    %1997 = vmatpush2.msra.mxu0 0.0
    %1998 = vmatprep.subr.mxu0 0.0
    %1999 = vmatpush2.msra.mxu0 0.0
    %2000 = vmatprep.mubr.f32.mxu0 0.0
    %2001 = vmatmul.mubr.f32.gmra.mxu0 %v1931
    %v2002 = vpop.f32.mrf.mxu0
    %v2003 = vadd.f32 %v1928, %v2002
    %v2004 = vpop.f32.mrf.mxu0
    %2005 = vmatprep.mubr.f32.mxu0 0.0
    %2006 = vmatmul.mubr.f32.gmra.mxu0 %v1934
    %v2007 = vpop.f32.mrf.mxu0
    %v2008 = vadd.f32 %v1928, %v2007
    %v2009 = vpop.f32.mrf.mxu0
    %2010 = vdwg.mxu0
    %v2011 = vadd.f32 %v1824, %v2003
    %v2012 = vadd.f32 %v1825, %v2008
    %v2013 = vsel %vm251, %v2011, 0.0
    %2014 = vadd.xlane.f32.xlu0 %v2013
    %v2015 = vpop.xlane.xlu0 %2014
    %v2016 = vsel %vm251, %v2012, 0.0
    %2017 = vadd.xlane.f32.xlu0 %v2016
    %v2018 = vpop.xlane.xlu0 %2017
    %v2019 = vmul.f32 %v2015, %v1793
    %v2020 = vmul.f32 %v2018, %v1793
    %v2021 = vsub.f32 %v2011, %v2019
    %v2022 = vsub.f32 %v2012, %v2020
    %v2023 = vmul.f32 %v2021, %v2021
    %v2024 = vmul.f32 %v2022, %v2022
    %v2025 = vsel %vm251, %v2023, 0.0
    %2026 = vadd.xlane.f32.xlu0 %v2025
    %v2027 = vpop.xlane.xlu0 %2026
    %v2028 = vsel %vm251, %v2024, 0.0
    %2029 = vadd.xlane.f32.xlu0 %v2028
    %v2030 = vpop.xlane.xlu0 %2029
    %v2031 = vmul.f32 %v2027, %v1793
    %v2032 = vmul.f32 %v2030, %v1793
    %v2033 = vadd.f32 %v2031, 1e-05
    %v2034 = vadd.f32 %v2032, 1e-05
    %v2035 = vrsqrt.pop %v2033
    %v2036 = vrsqrt.pop %v2034
    %v2037 = vmul.f32 %v2021, %v2035
    %v2038 = vmul.f32 %v2022, %v2036
    %v2039 = vlaneseq
    %v2040 = vshrl.u32 %v2039, 7
    %v2041 = vsub.s32 6, %v2040
    %v2042 = vrot.slane %v242, %v2041
    %v2043 = vmul.f32 %v2037, %v2042
    %v2044 = vmul.f32 %v2038, %v2042
    %v2045 = vlaneseq
    %v2046 = vshrl.u32 %v2045, 7
    %v2047 = vsub.s32 7, %v2046
    %v2048 = vrot.slane %v242, %v2047
    %v2049 = vadd.f32 %v2043, %v2048
    %v2050 = vadd.f32 %v2044, %v2048
    %s2051 = scalar_lea.vmem [#allocation11], 8
    %v2052 = vld [vmem:[%s2051] sm:$0xff]
    %s2053 = scalar_lea.vmem [#allocation5], 32
    %v2054 = vld [vmem:[%s2053] sm:$0xff]
    %v2055 = vld [vmem:[%s2053 + $0x8] sm:$0xff]
    %v2056 = vld [vmem:[%s2053 + $0x10] sm:$0xff]
    %v2057 = vld [vmem:[%s2053 + $0x18] sm:$0xff]
    %v2058 = vlaneseq
    %v2059 = vshrl.u32 %v2058, 7
    %v2060 = vsub.s32 0, %v2059
    %v2061 = vrot.slane %v2052, %v2060
    %v2063 = vsel %vm251, %v2049, 0
    %v2066 = vsel %vm251, %v2050, 0
    %2068 = vmatprep.subr.mxu0 0.0
    %2069 = vmatpush1.msra.mxu0 0.0
    %2070 = vmatprep.subr.mxu0 0.0
    %2071 = vmatpush1.msra.mxu0 0.0
    %2072 = vmatprep.subr.mxu0 0.0
    %2073 = vmatpush1.msra.mxu0 0.0
    %2074 = vmatprep.subr.mxu0 0.0
    %2075 = vmatpush1.msra.mxu0 0.0
    %2076 = vmatprep.subr.mxu0 0.0
    %2077 = vmatpush1.msra.mxu0 0.0
    %2078 = vmatprep.subr.mxu0 0.0
    %2079 = vmatpush1.msra.mxu0 0.0
    %2080 = vmatprep.subr.mxu0 0.0
    %2081 = vmatpush1.msra.mxu0 0.0
    %2082 = vmatprep.subr.mxu0 0.0
    %2083 = vmatpush1.msra.mxu0 0.0
    %2084 = vmatprep.subr.mxu0 0.0
    %2085 = vmatpush1.msra.mxu0 0.0
    %2086 = vmatprep.subr.mxu0 0.0
    %2087 = vmatpush1.msra.mxu0 0.0
    %2088 = vmatprep.subr.mxu0 0.0
    %2089 = vmatpush1.msra.mxu0 0.0
    %2090 = vmatprep.subr.mxu0 0.0
    %2091 = vmatpush1.msra.mxu0 0.0
    %2092 = vmatprep.subr.mxu0 0.0
    %2093 = vmatpush1.msra.mxu0 %v2057
    %2094 = vmatprep.subr.mxu0 0.0
    %2095 = vmatpush1.msra.mxu0 %v2056
    %2096 = vmatprep.subr.mxu0 0.0
    %2097 = vmatpush1.msra.mxu0 %v2055
    %2098 = vmatprep.subr.mxu0 0.0
    %2099 = vmatpush1.msra.mxu0 %v2054
    %2100 = vmatprep.subr.mxu0 0.0
    %2101 = vmatpush2.msra.mxu0 0.0
    %2102 = vmatprep.subr.mxu0 0.0
    %2103 = vmatpush2.msra.mxu0 0.0
    %2104 = vmatprep.subr.mxu0 0.0
    %2105 = vmatpush2.msra.mxu0 0.0
    %2106 = vmatprep.subr.mxu0 0.0
    %2107 = vmatpush2.msra.mxu0 0.0
    %2108 = vmatprep.subr.mxu0 0.0
    %2109 = vmatpush2.msra.mxu0 0.0
    %2110 = vmatprep.subr.mxu0 0.0
    %2111 = vmatpush2.msra.mxu0 0.0
    %2112 = vmatprep.subr.mxu0 0.0
    %2113 = vmatpush2.msra.mxu0 0.0
    %2114 = vmatprep.subr.mxu0 0.0
    %2115 = vmatpush2.msra.mxu0 0.0
    %2116 = vmatprep.subr.mxu0 0.0
    %2117 = vmatpush2.msra.mxu0 0.0
    %2118 = vmatprep.subr.mxu0 0.0
    %2119 = vmatpush2.msra.mxu0 0.0
    %2120 = vmatprep.subr.mxu0 0.0
    %2121 = vmatpush2.msra.mxu0 0.0
    %2122 = vmatprep.subr.mxu0 0.0
    %2123 = vmatpush2.msra.mxu0 0.0
    %2124 = vmatprep.subr.mxu0 0.0
    %2125 = vmatpush2.msra.mxu0 0.0
    %2126 = vmatprep.subr.mxu0 0.0
    %2127 = vmatpush2.msra.mxu0 0.0
    %2128 = vmatprep.subr.mxu0 0.0
    %2129 = vmatpush2.msra.mxu0 0.0
    %2130 = vmatprep.subr.mxu0 0.0
    %2131 = vmatpush2.msra.mxu0 0.0
    %2132 = vmatprep.mubr.f32.mxu0 0.0
    %2133 = vmatmul.mubr.f32.gmra.mxu0 %v2063
    %v2134 = vpop.f32.mrf.mxu0
    %v2135 = vadd.f32 %v2061, %v2134
    %v2136 = vpop.f32.mrf.mxu0
    %2137 = vmatprep.mubr.f32.mxu0 0.0
    %2138 = vmatmul.mubr.f32.gmra.mxu0 %v2066
    %v2139 = vpop.f32.mrf.mxu0
    %v2140 = vadd.f32 %v2061, %v2139
    %v2141 = vpop.f32.mrf.mxu0
    %2142 = vdwg.mxu0
    %2145 = vrot.lane.b32.xlu0 %v2135, 120
    %v2146 = vpop.permute.xlu0 %2145
    %2147 = vrot.lane.b32.xlu0 %v2140, 120
    %v2148 = vpop.permute.xlu0 %2147
    %2149 = vrot.lane.b32.xlu0 %v2135, 112
    %v2150 = vpop.permute.xlu0 %2149
    %2151 = vrot.lane.b32.xlu0 %v2140, 112
    %v2152 = vpop.permute.xlu0 %2151
    %2153 = vrot.lane.b32.xlu0 %v2135, 104
    %v2154 = vpop.permute.xlu0 %2153
    %2155 = vrot.lane.b32.xlu0 %v2140, 104
    %v2156 = vpop.permute.xlu0 %2155
    %2157 = vrot.lane.b32.xlu0 %v2135, 96
    %v2158 = vpop.permute.xlu0 %2157
    %v2159 = vsel %vm361, %v2135, 0
    %v2161 = vsel %vm361, %v2158, 0
    %2163 = vmatprep.subr.mxu0 0.0
    %2164 = vmatpush1.xpose.msra.mxu0 0.0
    %2165 = vmatprep.subr.mxu0 0.0
    %2166 = vmatpush1.xpose.msra.mxu0 0.0
    %2167 = vmatprep.subr.mxu0 0.0
    %2168 = vmatpush1.xpose.msra.mxu0 0.0
    %2169 = vmatprep.subr.mxu0 0.0
    %2170 = vmatpush1.xpose.msra.mxu0 0.0
    %2171 = vmatprep.subr.mxu0 0.0
    %2172 = vmatpush1.xpose.msra.mxu0 0.0
    %2173 = vmatprep.subr.mxu0 0.0
    %2174 = vmatpush1.xpose.msra.mxu0 0.0
    %2175 = vmatprep.subr.mxu0 0.0
    %2176 = vmatpush1.xpose.msra.mxu0 0.0
    %2177 = vmatprep.subr.mxu0 0.0
    %2178 = vmatpush1.xpose.msra.mxu0 0.0
    %2179 = vmatprep.subr.mxu0 0.0
    %2180 = vmatpush1.xpose.msra.mxu0 0.0
    %2181 = vmatprep.subr.mxu0 0.0
    %2182 = vmatpush1.xpose.msra.mxu0 0.0
    %2183 = vmatprep.subr.mxu0 0.0
    %2184 = vmatpush1.xpose.msra.mxu0 0.0
    %2185 = vmatprep.subr.mxu0 0.0
    %2186 = vmatpush1.xpose.msra.mxu0 0.0
    %2187 = vmatprep.subr.mxu0 0.0
    %2188 = vmatpush1.xpose.msra.mxu0 0.0
    %2189 = vmatprep.subr.mxu0 0.0
    %2190 = vmatpush1.xpose.msra.mxu0 0.0
    %2191 = vmatprep.subr.mxu0 0.0
    %2192 = vmatpush1.xpose.msra.mxu0 0.0
    %2193 = vmatprep.subr.mxu0 0.0
    %2194 = vmatpush1.xpose.msra.mxu0 %v2161
    %2195 = vmatprep.subr.mxu0 0.0
    %2196 = vmatpush2.xpose.msra.mxu0 0.0
    %2197 = vmatprep.subr.mxu0 0.0
    %2198 = vmatpush2.xpose.msra.mxu0 0.0
    %2199 = vmatprep.subr.mxu0 0.0
    %2200 = vmatpush2.xpose.msra.mxu0 0.0
    %2201 = vmatprep.subr.mxu0 0.0
    %2202 = vmatpush2.xpose.msra.mxu0 0.0
    %2203 = vmatprep.subr.mxu0 0.0
    %2204 = vmatpush2.xpose.msra.mxu0 0.0
    %2205 = vmatprep.subr.mxu0 0.0
    %2206 = vmatpush2.xpose.msra.mxu0 0.0
    %2207 = vmatprep.subr.mxu0 0.0
    %2208 = vmatpush2.xpose.msra.mxu0 0.0
    %2209 = vmatprep.subr.mxu0 0.0
    %2210 = vmatpush2.xpose.msra.mxu0 0.0
    %2211 = vmatprep.subr.mxu0 0.0
    %2212 = vmatpush2.xpose.msra.mxu0 0.0
    %2213 = vmatprep.subr.mxu0 0.0
    %2214 = vmatpush2.xpose.msra.mxu0 0.0
    %2215 = vmatprep.subr.mxu0 0.0
    %2216 = vmatpush2.xpose.msra.mxu0 0.0
    %2217 = vmatprep.subr.mxu0 0.0
    %2218 = vmatpush2.xpose.msra.mxu0 0.0
    %2219 = vmatprep.subr.mxu0 0.0
    %2220 = vmatpush2.xpose.msra.mxu0 0.0
    %2221 = vmatprep.subr.mxu0 0.0
    %2222 = vmatpush2.xpose.msra.mxu0 0.0
    %2223 = vmatprep.subr.mxu0 0.0
    %2224 = vmatpush2.xpose.msra.mxu0 0.0
    %2225 = vmatprep.subr.mxu0 0.0
    %2226 = vmatpush2.xpose.msra.mxu0 0.0
    %2227 = vmatprep.mubr.f32.mxu0 0.0
    %2228 = vmatmul.mubr.f32.gmra.mxu0 %v2159
    %v2229 = vpop.f32.mrf.mxu0
    %v2230 = vadd.f32 %v352, %v2229
    %v2231 = vpop.f32.mrf.mxu0
    %2232 = vdwg.mxu0
    %2233 = vrot.lane.b32.xlu0 %v2140, 96
    %v2234 = vpop.permute.xlu0 %2233
    %v2235 = vsel %vm361, %v2140, 0
    %v2237 = vsel %vm361, %v2234, 0
    %2239 = vmatprep.subr.mxu0 0.0
    %2240 = vmatpush1.xpose.msra.mxu0 0.0
    %2241 = vmatprep.subr.mxu0 0.0
    %2242 = vmatpush1.xpose.msra.mxu0 0.0
    %2243 = vmatprep.subr.mxu0 0.0
    %2244 = vmatpush1.xpose.msra.mxu0 0.0
    %2245 = vmatprep.subr.mxu0 0.0
    %2246 = vmatpush1.xpose.msra.mxu0 0.0
    %2247 = vmatprep.subr.mxu0 0.0
    %2248 = vmatpush1.xpose.msra.mxu0 0.0
    %2249 = vmatprep.subr.mxu0 0.0
    %2250 = vmatpush1.xpose.msra.mxu0 0.0
    %2251 = vmatprep.subr.mxu0 0.0
    %2252 = vmatpush1.xpose.msra.mxu0 0.0
    %2253 = vmatprep.subr.mxu0 0.0
    %2254 = vmatpush1.xpose.msra.mxu0 0.0
    %2255 = vmatprep.subr.mxu0 0.0
    %2256 = vmatpush1.xpose.msra.mxu0 0.0
    %2257 = vmatprep.subr.mxu0 0.0
    %2258 = vmatpush1.xpose.msra.mxu0 0.0
    %2259 = vmatprep.subr.mxu0 0.0
    %2260 = vmatpush1.xpose.msra.mxu0 0.0
    %2261 = vmatprep.subr.mxu0 0.0
    %2262 = vmatpush1.xpose.msra.mxu0 0.0
    %2263 = vmatprep.subr.mxu0 0.0
    %2264 = vmatpush1.xpose.msra.mxu0 0.0
    %2265 = vmatprep.subr.mxu0 0.0
    %2266 = vmatpush1.xpose.msra.mxu0 0.0
    %2267 = vmatprep.subr.mxu0 0.0
    %2268 = vmatpush1.xpose.msra.mxu0 0.0
    %2269 = vmatprep.subr.mxu0 0.0
    %2270 = vmatpush1.xpose.msra.mxu0 %v2237
    %2271 = vmatprep.subr.mxu0 0.0
    %2272 = vmatpush2.xpose.msra.mxu0 0.0
    %2273 = vmatprep.subr.mxu0 0.0
    %2274 = vmatpush2.xpose.msra.mxu0 0.0
    %2275 = vmatprep.subr.mxu0 0.0
    %2276 = vmatpush2.xpose.msra.mxu0 0.0
    %2277 = vmatprep.subr.mxu0 0.0
    %2278 = vmatpush2.xpose.msra.mxu0 0.0
    %2279 = vmatprep.subr.mxu0 0.0
    %2280 = vmatpush2.xpose.msra.mxu0 0.0
    %2281 = vmatprep.subr.mxu0 0.0
    %2282 = vmatpush2.xpose.msra.mxu0 0.0
    %2283 = vmatprep.subr.mxu0 0.0
    %2284 = vmatpush2.xpose.msra.mxu0 0.0
    %2285 = vmatprep.subr.mxu0 0.0
    %2286 = vmatpush2.xpose.msra.mxu0 0.0
    %2287 = vmatprep.subr.mxu0 0.0
    %2288 = vmatpush2.xpose.msra.mxu0 0.0
    %2289 = vmatprep.subr.mxu0 0.0
    %2290 = vmatpush2.xpose.msra.mxu0 0.0
    %2291 = vmatprep.subr.mxu0 0.0
    %2292 = vmatpush2.xpose.msra.mxu0 0.0
    %2293 = vmatprep.subr.mxu0 0.0
    %2294 = vmatpush2.xpose.msra.mxu0 0.0
    %2295 = vmatprep.subr.mxu0 0.0
    %2296 = vmatpush2.xpose.msra.mxu0 0.0
    %2297 = vmatprep.subr.mxu0 0.0
    %2298 = vmatpush2.xpose.msra.mxu0 0.0
    %2299 = vmatprep.subr.mxu0 0.0
    %2300 = vmatpush2.xpose.msra.mxu0 0.0
    %2301 = vmatprep.subr.mxu0 0.0
    %2302 = vmatpush2.xpose.msra.mxu0 0.0
    %2303 = vmatprep.mubr.f32.mxu0 0.0
    %2304 = vmatmul.mubr.f32.gmra.mxu0 %v2235
    %v2305 = vpop.f32.mrf.mxu0
    %v2306 = vadd.f32 %v356, %v2305
    %v2307 = vpop.f32.mrf.mxu0
    %2308 = vdwg.mxu0
    %2309 = vrot.lane.b32.xlu0 %v2146, 96
    %v2310 = vpop.permute.xlu0 %2309
    %v2311 = vsel %vm361, %v2146, 0
    %v2313 = vsel %vm361, %v2310, 0
    %2315 = vmatprep.subr.mxu0 0.0
    %2316 = vmatpush1.xpose.msra.mxu0 0.0
    %2317 = vmatprep.subr.mxu0 0.0
    %2318 = vmatpush1.xpose.msra.mxu0 0.0
    %2319 = vmatprep.subr.mxu0 0.0
    %2320 = vmatpush1.xpose.msra.mxu0 0.0
    %2321 = vmatprep.subr.mxu0 0.0
    %2322 = vmatpush1.xpose.msra.mxu0 0.0
    %2323 = vmatprep.subr.mxu0 0.0
    %2324 = vmatpush1.xpose.msra.mxu0 0.0
    %2325 = vmatprep.subr.mxu0 0.0
    %2326 = vmatpush1.xpose.msra.mxu0 0.0
    %2327 = vmatprep.subr.mxu0 0.0
    %2328 = vmatpush1.xpose.msra.mxu0 0.0
    %2329 = vmatprep.subr.mxu0 0.0
    %2330 = vmatpush1.xpose.msra.mxu0 0.0
    %2331 = vmatprep.subr.mxu0 0.0
    %2332 = vmatpush1.xpose.msra.mxu0 0.0
    %2333 = vmatprep.subr.mxu0 0.0
    %2334 = vmatpush1.xpose.msra.mxu0 0.0
    %2335 = vmatprep.subr.mxu0 0.0
    %2336 = vmatpush1.xpose.msra.mxu0 0.0
    %2337 = vmatprep.subr.mxu0 0.0
    %2338 = vmatpush1.xpose.msra.mxu0 0.0
    %2339 = vmatprep.subr.mxu0 0.0
    %2340 = vmatpush1.xpose.msra.mxu0 0.0
    %2341 = vmatprep.subr.mxu0 0.0
    %2342 = vmatpush1.xpose.msra.mxu0 0.0
    %2343 = vmatprep.subr.mxu0 0.0
    %2344 = vmatpush1.xpose.msra.mxu0 0.0
    %2345 = vmatprep.subr.mxu0 0.0
    %2346 = vmatpush1.xpose.msra.mxu0 %v2313
    %2347 = vmatprep.subr.mxu0 0.0
    %2348 = vmatpush2.xpose.msra.mxu0 0.0
    %2349 = vmatprep.subr.mxu0 0.0
    %2350 = vmatpush2.xpose.msra.mxu0 0.0
    %2351 = vmatprep.subr.mxu0 0.0
    %2352 = vmatpush2.xpose.msra.mxu0 0.0
    %2353 = vmatprep.subr.mxu0 0.0
    %2354 = vmatpush2.xpose.msra.mxu0 0.0
    %2355 = vmatprep.subr.mxu0 0.0
    %2356 = vmatpush2.xpose.msra.mxu0 0.0
    %2357 = vmatprep.subr.mxu0 0.0
    %2358 = vmatpush2.xpose.msra.mxu0 0.0
    %2359 = vmatprep.subr.mxu0 0.0
    %2360 = vmatpush2.xpose.msra.mxu0 0.0
    %2361 = vmatprep.subr.mxu0 0.0
    %2362 = vmatpush2.xpose.msra.mxu0 0.0
    %2363 = vmatprep.subr.mxu0 0.0
    %2364 = vmatpush2.xpose.msra.mxu0 0.0
    %2365 = vmatprep.subr.mxu0 0.0
    %2366 = vmatpush2.xpose.msra.mxu0 0.0
    %2367 = vmatprep.subr.mxu0 0.0
    %2368 = vmatpush2.xpose.msra.mxu0 0.0
    %2369 = vmatprep.subr.mxu0 0.0
    %2370 = vmatpush2.xpose.msra.mxu0 0.0
    %2371 = vmatprep.subr.mxu0 0.0
    %2372 = vmatpush2.xpose.msra.mxu0 0.0
    %2373 = vmatprep.subr.mxu0 0.0
    %2374 = vmatpush2.xpose.msra.mxu0 0.0
    %2375 = vmatprep.subr.mxu0 0.0
    %2376 = vmatpush2.xpose.msra.mxu0 0.0
    %2377 = vmatprep.subr.mxu0 0.0
    %2378 = vmatpush2.xpose.msra.mxu0 0.0
    %2379 = vmatprep.mubr.f32.mxu0 0.0
    %2380 = vmatmul.mubr.f32.gmra.mxu0 %v2311
    %v2381 = vpop.f32.mrf.mxu0
    %v2382 = vadd.f32 %v352, %v2381
    %v2383 = vpop.f32.mrf.mxu0
    %2384 = vdwg.mxu0
    %2385 = vrot.lane.b32.xlu0 %v2148, 96
    %v2386 = vpop.permute.xlu0 %2385
    %v2387 = vsel %vm361, %v2148, 0
    %v2389 = vsel %vm361, %v2386, 0
    %2391 = vmatprep.subr.mxu0 0.0
    %2392 = vmatpush1.xpose.msra.mxu0 0.0
    %2393 = vmatprep.subr.mxu0 0.0
    %2394 = vmatpush1.xpose.msra.mxu0 0.0
    %2395 = vmatprep.subr.mxu0 0.0
    %2396 = vmatpush1.xpose.msra.mxu0 0.0
    %2397 = vmatprep.subr.mxu0 0.0
    %2398 = vmatpush1.xpose.msra.mxu0 0.0
    %2399 = vmatprep.subr.mxu0 0.0
    %2400 = vmatpush1.xpose.msra.mxu0 0.0
    %2401 = vmatprep.subr.mxu0 0.0
    %2402 = vmatpush1.xpose.msra.mxu0 0.0
    %2403 = vmatprep.subr.mxu0 0.0
    %2404 = vmatpush1.xpose.msra.mxu0 0.0
    %2405 = vmatprep.subr.mxu0 0.0
    %2406 = vmatpush1.xpose.msra.mxu0 0.0
    %2407 = vmatprep.subr.mxu0 0.0
    %2408 = vmatpush1.xpose.msra.mxu0 0.0
    %2409 = vmatprep.subr.mxu0 0.0
    %2410 = vmatpush1.xpose.msra.mxu0 0.0
    %2411 = vmatprep.subr.mxu0 0.0
    %2412 = vmatpush1.xpose.msra.mxu0 0.0
    %2413 = vmatprep.subr.mxu0 0.0
    %2414 = vmatpush1.xpose.msra.mxu0 0.0
    %2415 = vmatprep.subr.mxu0 0.0
    %2416 = vmatpush1.xpose.msra.mxu0 0.0
    %2417 = vmatprep.subr.mxu0 0.0
    %2418 = vmatpush1.xpose.msra.mxu0 0.0
    %2419 = vmatprep.subr.mxu0 0.0
    %2420 = vmatpush1.xpose.msra.mxu0 0.0
    %2421 = vmatprep.subr.mxu0 0.0
    %2422 = vmatpush1.xpose.msra.mxu0 %v2389
    %2423 = vmatprep.subr.mxu0 0.0
    %2424 = vmatpush2.xpose.msra.mxu0 0.0
    %2425 = vmatprep.subr.mxu0 0.0
    %2426 = vmatpush2.xpose.msra.mxu0 0.0
    %2427 = vmatprep.subr.mxu0 0.0
    %2428 = vmatpush2.xpose.msra.mxu0 0.0
    %2429 = vmatprep.subr.mxu0 0.0
    %2430 = vmatpush2.xpose.msra.mxu0 0.0
    %2431 = vmatprep.subr.mxu0 0.0
    %2432 = vmatpush2.xpose.msra.mxu0 0.0
    %2433 = vmatprep.subr.mxu0 0.0
    %2434 = vmatpush2.xpose.msra.mxu0 0.0
    %2435 = vmatprep.subr.mxu0 0.0
    %2436 = vmatpush2.xpose.msra.mxu0 0.0
    %2437 = vmatprep.subr.mxu0 0.0
    %2438 = vmatpush2.xpose.msra.mxu0 0.0
    %2439 = vmatprep.subr.mxu0 0.0
    %2440 = vmatpush2.xpose.msra.mxu0 0.0
    %2441 = vmatprep.subr.mxu0 0.0
    %2442 = vmatpush2.xpose.msra.mxu0 0.0
    %2443 = vmatprep.subr.mxu0 0.0
    %2444 = vmatpush2.xpose.msra.mxu0 0.0
    %2445 = vmatprep.subr.mxu0 0.0
    %2446 = vmatpush2.xpose.msra.mxu0 0.0
    %2447 = vmatprep.subr.mxu0 0.0
    %2448 = vmatpush2.xpose.msra.mxu0 0.0
    %2449 = vmatprep.subr.mxu0 0.0
    %2450 = vmatpush2.xpose.msra.mxu0 0.0
    %2451 = vmatprep.subr.mxu0 0.0
    %2452 = vmatpush2.xpose.msra.mxu0 0.0
    %2453 = vmatprep.subr.mxu0 0.0
    %2454 = vmatpush2.xpose.msra.mxu0 0.0
    %2455 = vmatprep.mubr.f32.mxu0 0.0
    %2456 = vmatmul.mubr.f32.gmra.mxu0 %v2387
    %v2457 = vpop.f32.mrf.mxu0
    %v2458 = vadd.f32 %v356, %v2457
    %v2459 = vpop.f32.mrf.mxu0
    %2460 = vdwg.mxu0
    %2461 = vrot.lane.b32.xlu0 %v2150, 96
    %v2462 = vpop.permute.xlu0 %2461
    %v2463 = vsel %vm361, %v2150, 0
    %v2465 = vsel %vm361, %v2462, 0
    %2467 = vmatprep.subr.mxu0 0.0
    %2468 = vmatpush1.xpose.msra.mxu0 0.0
    %2469 = vmatprep.subr.mxu0 0.0
    %2470 = vmatpush1.xpose.msra.mxu0 0.0
    %2471 = vmatprep.subr.mxu0 0.0
    %2472 = vmatpush1.xpose.msra.mxu0 0.0
    %2473 = vmatprep.subr.mxu0 0.0
    %2474 = vmatpush1.xpose.msra.mxu0 0.0
    %2475 = vmatprep.subr.mxu0 0.0
    %2476 = vmatpush1.xpose.msra.mxu0 0.0
    %2477 = vmatprep.subr.mxu0 0.0
    %2478 = vmatpush1.xpose.msra.mxu0 0.0
    %2479 = vmatprep.subr.mxu0 0.0
    %2480 = vmatpush1.xpose.msra.mxu0 0.0
    %2481 = vmatprep.subr.mxu0 0.0
    %2482 = vmatpush1.xpose.msra.mxu0 0.0
    %2483 = vmatprep.subr.mxu0 0.0
    %2484 = vmatpush1.xpose.msra.mxu0 0.0
    %2485 = vmatprep.subr.mxu0 0.0
    %2486 = vmatpush1.xpose.msra.mxu0 0.0
    %2487 = vmatprep.subr.mxu0 0.0
    %2488 = vmatpush1.xpose.msra.mxu0 0.0
    %2489 = vmatprep.subr.mxu0 0.0
    %2490 = vmatpush1.xpose.msra.mxu0 0.0
    %2491 = vmatprep.subr.mxu0 0.0
    %2492 = vmatpush1.xpose.msra.mxu0 0.0
    %2493 = vmatprep.subr.mxu0 0.0
    %2494 = vmatpush1.xpose.msra.mxu0 0.0
    %2495 = vmatprep.subr.mxu0 0.0
    %2496 = vmatpush1.xpose.msra.mxu0 0.0
    %2497 = vmatprep.subr.mxu0 0.0
    %2498 = vmatpush1.xpose.msra.mxu0 %v2465
    %2499 = vmatprep.subr.mxu0 0.0
    %2500 = vmatpush2.xpose.msra.mxu0 0.0
    %2501 = vmatprep.subr.mxu0 0.0
    %2502 = vmatpush2.xpose.msra.mxu0 0.0
    %2503 = vmatprep.subr.mxu0 0.0
    %2504 = vmatpush2.xpose.msra.mxu0 0.0
    %2505 = vmatprep.subr.mxu0 0.0
    %2506 = vmatpush2.xpose.msra.mxu0 0.0
    %2507 = vmatprep.subr.mxu0 0.0
    %2508 = vmatpush2.xpose.msra.mxu0 0.0
    %2509 = vmatprep.subr.mxu0 0.0
    %2510 = vmatpush2.xpose.msra.mxu0 0.0
    %2511 = vmatprep.subr.mxu0 0.0
    %2512 = vmatpush2.xpose.msra.mxu0 0.0
    %2513 = vmatprep.subr.mxu0 0.0
    %2514 = vmatpush2.xpose.msra.mxu0 0.0
    %2515 = vmatprep.subr.mxu0 0.0
    %2516 = vmatpush2.xpose.msra.mxu0 0.0
    %2517 = vmatprep.subr.mxu0 0.0
    %2518 = vmatpush2.xpose.msra.mxu0 0.0
    %2519 = vmatprep.subr.mxu0 0.0
    %2520 = vmatpush2.xpose.msra.mxu0 0.0
    %2521 = vmatprep.subr.mxu0 0.0
    %2522 = vmatpush2.xpose.msra.mxu0 0.0
    %2523 = vmatprep.subr.mxu0 0.0
    %2524 = vmatpush2.xpose.msra.mxu0 0.0
    %2525 = vmatprep.subr.mxu0 0.0
    %2526 = vmatpush2.xpose.msra.mxu0 0.0
    %2527 = vmatprep.subr.mxu0 0.0
    %2528 = vmatpush2.xpose.msra.mxu0 0.0
    %2529 = vmatprep.subr.mxu0 0.0
    %2530 = vmatpush2.xpose.msra.mxu0 0.0
    %2531 = vmatprep.mubr.f32.mxu0 0.0
    %2532 = vmatmul.mubr.f32.gmra.mxu0 %v2463
    %v2533 = vpop.f32.mrf.mxu0
    %v2534 = vadd.f32 %v352, %v2533
    %v2535 = vpop.f32.mrf.mxu0
    %2536 = vdwg.mxu0
    %2537 = vrot.lane.b32.xlu0 %v2152, 96
    %v2538 = vpop.permute.xlu0 %2537
    %v2539 = vsel %vm361, %v2152, 0
    %v2541 = vsel %vm361, %v2538, 0
    %2543 = vmatprep.subr.mxu0 0.0
    %2544 = vmatpush1.xpose.msra.mxu0 0.0
    %2545 = vmatprep.subr.mxu0 0.0
    %2546 = vmatpush1.xpose.msra.mxu0 0.0
    %2547 = vmatprep.subr.mxu0 0.0
    %2548 = vmatpush1.xpose.msra.mxu0 0.0
    %2549 = vmatprep.subr.mxu0 0.0
    %2550 = vmatpush1.xpose.msra.mxu0 0.0
    %2551 = vmatprep.subr.mxu0 0.0
    %2552 = vmatpush1.xpose.msra.mxu0 0.0
    %2553 = vmatprep.subr.mxu0 0.0
    %2554 = vmatpush1.xpose.msra.mxu0 0.0
    %2555 = vmatprep.subr.mxu0 0.0
    %2556 = vmatpush1.xpose.msra.mxu0 0.0
    %2557 = vmatprep.subr.mxu0 0.0
    %2558 = vmatpush1.xpose.msra.mxu0 0.0
    %2559 = vmatprep.subr.mxu0 0.0
    %2560 = vmatpush1.xpose.msra.mxu0 0.0
    %2561 = vmatprep.subr.mxu0 0.0
    %2562 = vmatpush1.xpose.msra.mxu0 0.0
    %2563 = vmatprep.subr.mxu0 0.0
    %2564 = vmatpush1.xpose.msra.mxu0 0.0
    %2565 = vmatprep.subr.mxu0 0.0
    %2566 = vmatpush1.xpose.msra.mxu0 0.0
    %2567 = vmatprep.subr.mxu0 0.0
    %2568 = vmatpush1.xpose.msra.mxu0 0.0
    %2569 = vmatprep.subr.mxu0 0.0
    %2570 = vmatpush1.xpose.msra.mxu0 0.0
    %2571 = vmatprep.subr.mxu0 0.0
    %2572 = vmatpush1.xpose.msra.mxu0 0.0
    %2573 = vmatprep.subr.mxu0 0.0
    %2574 = vmatpush1.xpose.msra.mxu0 %v2541
    %2575 = vmatprep.subr.mxu0 0.0
    %2576 = vmatpush2.xpose.msra.mxu0 0.0
    %2577 = vmatprep.subr.mxu0 0.0
    %2578 = vmatpush2.xpose.msra.mxu0 0.0
    %2579 = vmatprep.subr.mxu0 0.0
    %2580 = vmatpush2.xpose.msra.mxu0 0.0
    %2581 = vmatprep.subr.mxu0 0.0
    %2582 = vmatpush2.xpose.msra.mxu0 0.0
    %2583 = vmatprep.subr.mxu0 0.0
    %2584 = vmatpush2.xpose.msra.mxu0 0.0
    %2585 = vmatprep.subr.mxu0 0.0
    %2586 = vmatpush2.xpose.msra.mxu0 0.0
    %2587 = vmatprep.subr.mxu0 0.0
    %2588 = vmatpush2.xpose.msra.mxu0 0.0
    %2589 = vmatprep.subr.mxu0 0.0
    %2590 = vmatpush2.xpose.msra.mxu0 0.0
    %2591 = vmatprep.subr.mxu0 0.0
    %2592 = vmatpush2.xpose.msra.mxu0 0.0
    %2593 = vmatprep.subr.mxu0 0.0
    %2594 = vmatpush2.xpose.msra.mxu0 0.0
    %2595 = vmatprep.subr.mxu0 0.0
    %2596 = vmatpush2.xpose.msra.mxu0 0.0
    %2597 = vmatprep.subr.mxu0 0.0
    %2598 = vmatpush2.xpose.msra.mxu0 0.0
    %2599 = vmatprep.subr.mxu0 0.0
    %2600 = vmatpush2.xpose.msra.mxu0 0.0
    %2601 = vmatprep.subr.mxu0 0.0
    %2602 = vmatpush2.xpose.msra.mxu0 0.0
    %2603 = vmatprep.subr.mxu0 0.0
    %2604 = vmatpush2.xpose.msra.mxu0 0.0
    %2605 = vmatprep.subr.mxu0 0.0
    %2606 = vmatpush2.xpose.msra.mxu0 0.0
    %2607 = vmatprep.mubr.f32.mxu0 0.0
    %2608 = vmatmul.mubr.f32.gmra.mxu0 %v2539
    %v2609 = vpop.f32.mrf.mxu0
    %v2610 = vadd.f32 %v356, %v2609
    %v2611 = vpop.f32.mrf.mxu0
    %2612 = vdwg.mxu0
    %2613 = vrot.lane.b32.xlu0 %v2154, 96
    %v2614 = vpop.permute.xlu0 %2613
    %v2615 = vsel %vm361, %v2154, 0
    %v2617 = vsel %vm361, %v2614, 0
    %2619 = vmatprep.subr.mxu0 0.0
    %2620 = vmatpush1.xpose.msra.mxu0 0.0
    %2621 = vmatprep.subr.mxu0 0.0
    %2622 = vmatpush1.xpose.msra.mxu0 0.0
    %2623 = vmatprep.subr.mxu0 0.0
    %2624 = vmatpush1.xpose.msra.mxu0 0.0
    %2625 = vmatprep.subr.mxu0 0.0
    %2626 = vmatpush1.xpose.msra.mxu0 0.0
    %2627 = vmatprep.subr.mxu0 0.0
    %2628 = vmatpush1.xpose.msra.mxu0 0.0
    %2629 = vmatprep.subr.mxu0 0.0
    %2630 = vmatpush1.xpose.msra.mxu0 0.0
    %2631 = vmatprep.subr.mxu0 0.0
    %2632 = vmatpush1.xpose.msra.mxu0 0.0
    %2633 = vmatprep.subr.mxu0 0.0
    %2634 = vmatpush1.xpose.msra.mxu0 0.0
    %2635 = vmatprep.subr.mxu0 0.0
    %2636 = vmatpush1.xpose.msra.mxu0 0.0
    %2637 = vmatprep.subr.mxu0 0.0
    %2638 = vmatpush1.xpose.msra.mxu0 0.0
    %2639 = vmatprep.subr.mxu0 0.0
    %2640 = vmatpush1.xpose.msra.mxu0 0.0
    %2641 = vmatprep.subr.mxu0 0.0
    %2642 = vmatpush1.xpose.msra.mxu0 0.0
    %2643 = vmatprep.subr.mxu0 0.0
    %2644 = vmatpush1.xpose.msra.mxu0 0.0
    %2645 = vmatprep.subr.mxu0 0.0
    %2646 = vmatpush1.xpose.msra.mxu0 0.0
    %2647 = vmatprep.subr.mxu0 0.0
    %2648 = vmatpush1.xpose.msra.mxu0 0.0
    %2649 = vmatprep.subr.mxu0 0.0
    %2650 = vmatpush1.xpose.msra.mxu0 %v2617
    %2651 = vmatprep.subr.mxu0 0.0
    %2652 = vmatpush2.xpose.msra.mxu0 0.0
    %2653 = vmatprep.subr.mxu0 0.0
    %2654 = vmatpush2.xpose.msra.mxu0 0.0
    %2655 = vmatprep.subr.mxu0 0.0
    %2656 = vmatpush2.xpose.msra.mxu0 0.0
    %2657 = vmatprep.subr.mxu0 0.0
    %2658 = vmatpush2.xpose.msra.mxu0 0.0
    %2659 = vmatprep.subr.mxu0 0.0
    %2660 = vmatpush2.xpose.msra.mxu0 0.0
    %2661 = vmatprep.subr.mxu0 0.0
    %2662 = vmatpush2.xpose.msra.mxu0 0.0
    %2663 = vmatprep.subr.mxu0 0.0
    %2664 = vmatpush2.xpose.msra.mxu0 0.0
    %2665 = vmatprep.subr.mxu0 0.0
    %2666 = vmatpush2.xpose.msra.mxu0 0.0
    %2667 = vmatprep.subr.mxu0 0.0
    %2668 = vmatpush2.xpose.msra.mxu0 0.0
    %2669 = vmatprep.subr.mxu0 0.0
    %2670 = vmatpush2.xpose.msra.mxu0 0.0
    %2671 = vmatprep.subr.mxu0 0.0
    %2672 = vmatpush2.xpose.msra.mxu0 0.0
    %2673 = vmatprep.subr.mxu0 0.0
    %2674 = vmatpush2.xpose.msra.mxu0 0.0
    %2675 = vmatprep.subr.mxu0 0.0
    %2676 = vmatpush2.xpose.msra.mxu0 0.0
    %2677 = vmatprep.subr.mxu0 0.0
    %2678 = vmatpush2.xpose.msra.mxu0 0.0
    %2679 = vmatprep.subr.mxu0 0.0
    %2680 = vmatpush2.xpose.msra.mxu0 0.0
    %2681 = vmatprep.subr.mxu0 0.0
    %2682 = vmatpush2.xpose.msra.mxu0 0.0
    %2683 = vmatprep.mubr.f32.mxu0 0.0
    %2684 = vmatmul.mubr.f32.gmra.mxu0 %v2615
    %v2685 = vpop.f32.mrf.mxu0
    %v2686 = vadd.f32 %v352, %v2685
    %v2687 = vpop.f32.mrf.mxu0
    %2688 = vdwg.mxu0
    %2689 = vrot.lane.b32.xlu0 %v2156, 96
    %v2690 = vpop.permute.xlu0 %2689
    %v2691 = vsel %vm361, %v2156, 0
    %v2693 = vsel %vm361, %v2690, 0
    %2695 = vmatprep.subr.mxu0 0.0
    %2696 = vmatpush1.xpose.msra.mxu0 0.0
    %2697 = vmatprep.subr.mxu0 0.0
    %2698 = vmatpush1.xpose.msra.mxu0 0.0
    %2699 = vmatprep.subr.mxu0 0.0
    %2700 = vmatpush1.xpose.msra.mxu0 0.0
    %2701 = vmatprep.subr.mxu0 0.0
    %2702 = vmatpush1.xpose.msra.mxu0 0.0
    %2703 = vmatprep.subr.mxu0 0.0
    %2704 = vmatpush1.xpose.msra.mxu0 0.0
    %2705 = vmatprep.subr.mxu0 0.0
    %2706 = vmatpush1.xpose.msra.mxu0 0.0
    %2707 = vmatprep.subr.mxu0 0.0
    %2708 = vmatpush1.xpose.msra.mxu0 0.0
    %2709 = vmatprep.subr.mxu0 0.0
    %2710 = vmatpush1.xpose.msra.mxu0 0.0
    %2711 = vmatprep.subr.mxu0 0.0
    %2712 = vmatpush1.xpose.msra.mxu0 0.0
    %2713 = vmatprep.subr.mxu0 0.0
    %2714 = vmatpush1.xpose.msra.mxu0 0.0
    %2715 = vmatprep.subr.mxu0 0.0
    %2716 = vmatpush1.xpose.msra.mxu0 0.0
    %2717 = vmatprep.subr.mxu0 0.0
    %2718 = vmatpush1.xpose.msra.mxu0 0.0
    %2719 = vmatprep.subr.mxu0 0.0
    %2720 = vmatpush1.xpose.msra.mxu0 0.0
    %2721 = vmatprep.subr.mxu0 0.0
    %2722 = vmatpush1.xpose.msra.mxu0 0.0
    %2723 = vmatprep.subr.mxu0 0.0
    %2724 = vmatpush1.xpose.msra.mxu0 0.0
    %2725 = vmatprep.subr.mxu0 0.0
    %2726 = vmatpush1.xpose.msra.mxu0 %v2693
    %2727 = vmatprep.subr.mxu0 0.0
    %2728 = vmatpush2.xpose.msra.mxu0 0.0
    %2729 = vmatprep.subr.mxu0 0.0
    %2730 = vmatpush2.xpose.msra.mxu0 0.0
    %2731 = vmatprep.subr.mxu0 0.0
    %2732 = vmatpush2.xpose.msra.mxu0 0.0
    %2733 = vmatprep.subr.mxu0 0.0
    %2734 = vmatpush2.xpose.msra.mxu0 0.0
    %2735 = vmatprep.subr.mxu0 0.0
    %2736 = vmatpush2.xpose.msra.mxu0 0.0
    %2737 = vmatprep.subr.mxu0 0.0
    %2738 = vmatpush2.xpose.msra.mxu0 0.0
    %2739 = vmatprep.subr.mxu0 0.0
    %2740 = vmatpush2.xpose.msra.mxu0 0.0
    %2741 = vmatprep.subr.mxu0 0.0
    %2742 = vmatpush2.xpose.msra.mxu0 0.0
    %2743 = vmatprep.subr.mxu0 0.0
    %2744 = vmatpush2.xpose.msra.mxu0 0.0
    %2745 = vmatprep.subr.mxu0 0.0
    %2746 = vmatpush2.xpose.msra.mxu0 0.0
    %2747 = vmatprep.subr.mxu0 0.0
    %2748 = vmatpush2.xpose.msra.mxu0 0.0
    %2749 = vmatprep.subr.mxu0 0.0
    %2750 = vmatpush2.xpose.msra.mxu0 0.0
    %2751 = vmatprep.subr.mxu0 0.0
    %2752 = vmatpush2.xpose.msra.mxu0 0.0
    %2753 = vmatprep.subr.mxu0 0.0
    %2754 = vmatpush2.xpose.msra.mxu0 0.0
    %2755 = vmatprep.subr.mxu0 0.0
    %2756 = vmatpush2.xpose.msra.mxu0 0.0
    %2757 = vmatprep.subr.mxu0 0.0
    %2758 = vmatpush2.xpose.msra.mxu0 0.0
    %2759 = vmatprep.mubr.f32.mxu0 0.0
    %2760 = vmatmul.mubr.f32.gmra.mxu0 %v2691
    %v2761 = vpop.f32.mrf.mxu0
    %v2762 = vadd.f32 %v356, %v2761
    %v2763 = vpop.f32.mrf.mxu0
    %2764 = vdwg.mxu0
    %v2765 = vsel %vm361, %v2230, -inf
    %2766 = vmax.xlane.f32.xlu0 %v2765
    %v2767 = vpop.xlane.xlu0 %2766
    %v2768 = vsel %vm361, %v2306, -inf
    %2769 = vmax.xlane.f32.xlu0 %v2768
    %v2770 = vpop.xlane.xlu0 %2769
    %v2771 = vsel %vm361, %v2382, -inf
    %2772 = vmax.xlane.f32.xlu0 %v2771
    %v2773 = vpop.xlane.xlu0 %2772
    %v2774 = vsel %vm361, %v2458, -inf
    %2775 = vmax.xlane.f32.xlu0 %v2774
    %v2776 = vpop.xlane.xlu0 %2775
    %v2777 = vsel %vm361, %v2534, -inf
    %2778 = vmax.xlane.f32.xlu0 %v2777
    %v2779 = vpop.xlane.xlu0 %2778
    %v2780 = vsel %vm361, %v2610, -inf
    %2781 = vmax.xlane.f32.xlu0 %v2780
    %v2782 = vpop.xlane.xlu0 %2781
    %v2783 = vsel %vm361, %v2686, -inf
    %2784 = vmax.xlane.f32.xlu0 %v2783
    %v2785 = vpop.xlane.xlu0 %2784
    %v2786 = vsel %vm361, %v2762, -inf
    %2787 = vmax.xlane.f32.xlu0 %v2786
    %v2788 = vpop.xlane.xlu0 %2787
    %v2789 = vsub.f32 %v2230, %v2767
    %v2790 = vsub.f32 %v2306, %v2770
    %v2791 = vsub.f32 %v2382, %v2773
    %v2792 = vsub.f32 %v2458, %v2776
    %v2793 = vsub.f32 %v2534, %v2779
    %v2794 = vsub.f32 %v2610, %v2782
    %v2795 = vsub.f32 %v2686, %v2785
    %v2796 = vsub.f32 %v2762, %v2788
    %v2797 = vmul.f32 %v2789, 1.442695
    %v2798 = vpow.pop %v2797
    %v2799 = vmul.f32 %v2790, 1.442695
    %v2800 = vpow.pop %v2799
    %v2801 = vmul.f32 %v2791, 1.442695
    %v2802 = vpow.pop %v2801
    %v2803 = vmul.f32 %v2792, 1.442695
    %v2804 = vpow.pop %v2803
    %v2805 = vmul.f32 %v2793, 1.442695
    %v2806 = vpow.pop %v2805
    %v2807 = vmul.f32 %v2794, 1.442695
    %v2808 = vpow.pop %v2807
    %v2809 = vmul.f32 %v2795, 1.442695
    %v2810 = vpow.pop %v2809
    %v2811 = vmul.f32 %v2796, 1.442695
    %v2812 = vpow.pop %v2811
    %v2813 = vsel %vm361, %v2798, 0.0
    %2814 = vadd.xlane.f32.xlu0 %v2813
    %v2815 = vpop.xlane.xlu0 %2814
    %v2816 = vsel %vm361, %v2800, 0.0
    %2817 = vadd.xlane.f32.xlu0 %v2816
    %v2818 = vpop.xlane.xlu0 %2817
    %v2819 = vsel %vm361, %v2802, 0.0
    %2820 = vadd.xlane.f32.xlu0 %v2819
    %v2821 = vpop.xlane.xlu0 %2820
    %v2822 = vsel %vm361, %v2804, 0.0
    %2823 = vadd.xlane.f32.xlu0 %v2822
    %v2824 = vpop.xlane.xlu0 %2823
    %v2825 = vsel %vm361, %v2806, 0.0
    %2826 = vadd.xlane.f32.xlu0 %v2825
    %v2827 = vpop.xlane.xlu0 %2826
    %v2828 = vsel %vm361, %v2808, 0.0
    %2829 = vadd.xlane.f32.xlu0 %v2828
    %v2830 = vpop.xlane.xlu0 %2829
    %v2831 = vsel %vm361, %v2810, 0.0
    %2832 = vadd.xlane.f32.xlu0 %v2831
    %v2833 = vpop.xlane.xlu0 %2832
    %v2834 = vsel %vm361, %v2812, 0.0
    %2835 = vadd.xlane.f32.xlu0 %v2834
    %v2836 = vpop.xlane.xlu0 %2835
    %v2837 = vrcp.pop %v2815
    %v2838 = vrcp.pop %v2818
    %v2839 = vrcp.pop %v2821
    %v2840 = vrcp.pop %v2824
    %v2841 = vrcp.pop %v2827
    %v2842 = vrcp.pop %v2830
    %v2843 = vrcp.pop %v2833
    %v2844 = vrcp.pop %v2836
    %v2845 = vmul.f32 %v2798, %v2837
    %v2846 = vmul.f32 %v2800, %v2838
    %v2847 = vmul.f32 %v2802, %v2839
    %v2848 = vmul.f32 %v2804, %v2840
    %v2849 = vmul.f32 %v2806, %v2841
    %v2850 = vmul.f32 %v2808, %v2842
    %v2851 = vmul.f32 %v2810, %v2843
    %v2852 = vmul.f32 %v2812, %v2844
    %2853 = vrot.lane.b32.xlu0 %v2135, 64
    %v2854 = vpop.permute.xlu0 %2853
    %v2857 = vsel %vm361, %v2845, 0
    %2859 = vmatprep.subr.mxu0 0.0
    %2860 = vmatpush1.msra.mxu0 0.0
    %2861 = vmatprep.subr.mxu0 0.0
    %2862 = vmatpush1.msra.mxu0 0.0
    %2863 = vmatprep.subr.mxu0 0.0
    %2864 = vmatpush1.msra.mxu0 0.0
    %2865 = vmatprep.subr.mxu0 0.0
    %2866 = vmatpush1.msra.mxu0 0.0
    %2867 = vmatprep.subr.mxu0 0.0
    %2868 = vmatpush1.msra.mxu0 0.0
    %2869 = vmatprep.subr.mxu0 0.0
    %2870 = vmatpush1.msra.mxu0 0.0
    %2871 = vmatprep.subr.mxu0 0.0
    %2872 = vmatpush1.msra.mxu0 0.0
    %2873 = vmatprep.subr.mxu0 0.0
    %2874 = vmatpush1.msra.mxu0 0.0
    %2875 = vmatprep.subr.mxu0 0.0
    %2876 = vmatpush1.msra.mxu0 0.0
    %2877 = vmatprep.subr.mxu0 0.0
    %2878 = vmatpush1.msra.mxu0 0.0
    %2879 = vmatprep.subr.mxu0 0.0
    %2880 = vmatpush1.msra.mxu0 0.0
    %2881 = vmatprep.subr.mxu0 0.0
    %2882 = vmatpush1.msra.mxu0 0.0
    %2883 = vmatprep.subr.mxu0 0.0
    %2884 = vmatpush1.msra.mxu0 0.0
    %2885 = vmatprep.subr.mxu0 0.0
    %2886 = vmatpush1.msra.mxu0 0.0
    %2887 = vmatprep.subr.mxu0 0.0
    %2888 = vmatpush1.msra.mxu0 0.0
    %2889 = vmatprep.subr.mxu0 0.0
    %2890 = vmatpush1.msra.mxu0 %v2854
    %2891 = vmatprep.subr.mxu0 0.0
    %2892 = vmatpush2.msra.mxu0 0.0
    %2893 = vmatprep.subr.mxu0 0.0
    %2894 = vmatpush2.msra.mxu0 0.0
    %2895 = vmatprep.subr.mxu0 0.0
    %2896 = vmatpush2.msra.mxu0 0.0
    %2897 = vmatprep.subr.mxu0 0.0
    %2898 = vmatpush2.msra.mxu0 0.0
    %2899 = vmatprep.subr.mxu0 0.0
    %2900 = vmatpush2.msra.mxu0 0.0
    %2901 = vmatprep.subr.mxu0 0.0
    %2902 = vmatpush2.msra.mxu0 0.0
    %2903 = vmatprep.subr.mxu0 0.0
    %2904 = vmatpush2.msra.mxu0 0.0
    %2905 = vmatprep.subr.mxu0 0.0
    %2906 = vmatpush2.msra.mxu0 0.0
    %2907 = vmatprep.subr.mxu0 0.0
    %2908 = vmatpush2.msra.mxu0 0.0
    %2909 = vmatprep.subr.mxu0 0.0
    %2910 = vmatpush2.msra.mxu0 0.0
    %2911 = vmatprep.subr.mxu0 0.0
    %2912 = vmatpush2.msra.mxu0 0.0
    %2913 = vmatprep.subr.mxu0 0.0
    %2914 = vmatpush2.msra.mxu0 0.0
    %2915 = vmatprep.subr.mxu0 0.0
    %2916 = vmatpush2.msra.mxu0 0.0
    %2917 = vmatprep.subr.mxu0 0.0
    %2918 = vmatpush2.msra.mxu0 0.0
    %2919 = vmatprep.subr.mxu0 0.0
    %2920 = vmatpush2.msra.mxu0 0.0
    %2921 = vmatprep.subr.mxu0 0.0
    %2922 = vmatpush2.msra.mxu0 0.0
    %2923 = vmatprep.mubr.f32.mxu0 0.0
    %2924 = vmatmul.mubr.f32.gmra.mxu0 %v2857
    %v2925 = vpop.f32.mrf.mxu0
    %v2926 = vadd.f32 0.0, %v2925
    %v2927 = vpop.f32.mrf.mxu0
    %2928 = vdwg.mxu0
    %2929 = vrot.lane.b32.xlu0 %v2140, 64
    %v2930 = vpop.permute.xlu0 %2929
    %v2933 = vsel %vm361, %v2846, 0
    %2935 = vmatprep.subr.mxu0 0.0
    %2936 = vmatpush1.msra.mxu0 0.0
    %2937 = vmatprep.subr.mxu0 0.0
    %2938 = vmatpush1.msra.mxu0 0.0
    %2939 = vmatprep.subr.mxu0 0.0
    %2940 = vmatpush1.msra.mxu0 0.0
    %2941 = vmatprep.subr.mxu0 0.0
    %2942 = vmatpush1.msra.mxu0 0.0
    %2943 = vmatprep.subr.mxu0 0.0
    %2944 = vmatpush1.msra.mxu0 0.0
    %2945 = vmatprep.subr.mxu0 0.0
    %2946 = vmatpush1.msra.mxu0 0.0
    %2947 = vmatprep.subr.mxu0 0.0
    %2948 = vmatpush1.msra.mxu0 0.0
    %2949 = vmatprep.subr.mxu0 0.0
    %2950 = vmatpush1.msra.mxu0 0.0
    %2951 = vmatprep.subr.mxu0 0.0
    %2952 = vmatpush1.msra.mxu0 0.0
    %2953 = vmatprep.subr.mxu0 0.0
    %2954 = vmatpush1.msra.mxu0 0.0
    %2955 = vmatprep.subr.mxu0 0.0
    %2956 = vmatpush1.msra.mxu0 0.0
    %2957 = vmatprep.subr.mxu0 0.0
    %2958 = vmatpush1.msra.mxu0 0.0
    %2959 = vmatprep.subr.mxu0 0.0
    %2960 = vmatpush1.msra.mxu0 0.0
    %2961 = vmatprep.subr.mxu0 0.0
    %2962 = vmatpush1.msra.mxu0 0.0
    %2963 = vmatprep.subr.mxu0 0.0
    %2964 = vmatpush1.msra.mxu0 0.0
    %2965 = vmatprep.subr.mxu0 0.0
    %2966 = vmatpush1.msra.mxu0 %v2930
    %2967 = vmatprep.subr.mxu0 0.0
    %2968 = vmatpush2.msra.mxu0 0.0
    %2969 = vmatprep.subr.mxu0 0.0
    %2970 = vmatpush2.msra.mxu0 0.0
    %2971 = vmatprep.subr.mxu0 0.0
    %2972 = vmatpush2.msra.mxu0 0.0
    %2973 = vmatprep.subr.mxu0 0.0
    %2974 = vmatpush2.msra.mxu0 0.0
    %2975 = vmatprep.subr.mxu0 0.0
    %2976 = vmatpush2.msra.mxu0 0.0
    %2977 = vmatprep.subr.mxu0 0.0
    %2978 = vmatpush2.msra.mxu0 0.0
    %2979 = vmatprep.subr.mxu0 0.0
    %2980 = vmatpush2.msra.mxu0 0.0
    %2981 = vmatprep.subr.mxu0 0.0
    %2982 = vmatpush2.msra.mxu0 0.0
    %2983 = vmatprep.subr.mxu0 0.0
    %2984 = vmatpush2.msra.mxu0 0.0
    %2985 = vmatprep.subr.mxu0 0.0
    %2986 = vmatpush2.msra.mxu0 0.0
    %2987 = vmatprep.subr.mxu0 0.0
    %2988 = vmatpush2.msra.mxu0 0.0
    %2989 = vmatprep.subr.mxu0 0.0
    %2990 = vmatpush2.msra.mxu0 0.0
    %2991 = vmatprep.subr.mxu0 0.0
    %2992 = vmatpush2.msra.mxu0 0.0
    %2993 = vmatprep.subr.mxu0 0.0
    %2994 = vmatpush2.msra.mxu0 0.0
    %2995 = vmatprep.subr.mxu0 0.0
    %2996 = vmatpush2.msra.mxu0 0.0
    %2997 = vmatprep.subr.mxu0 0.0
    %2998 = vmatpush2.msra.mxu0 0.0
    %2999 = vmatprep.mubr.f32.mxu0 0.0
    %3000 = vmatmul.mubr.f32.gmra.mxu0 %v2933
    %v3001 = vpop.f32.mrf.mxu0
    %v3002 = vadd.f32 0.0, %v3001
    %v3003 = vpop.f32.mrf.mxu0
    %3004 = vdwg.mxu0
    %3005 = vrot.lane.b32.xlu0 %v2146, 64
    %v3006 = vpop.permute.xlu0 %3005
    %v3009 = vsel %vm361, %v2847, 0
    %3011 = vmatprep.subr.mxu0 0.0
    %3012 = vmatpush1.msra.mxu0 0.0
    %3013 = vmatprep.subr.mxu0 0.0
    %3014 = vmatpush1.msra.mxu0 0.0
    %3015 = vmatprep.subr.mxu0 0.0
    %3016 = vmatpush1.msra.mxu0 0.0
    %3017 = vmatprep.subr.mxu0 0.0
    %3018 = vmatpush1.msra.mxu0 0.0
    %3019 = vmatprep.subr.mxu0 0.0
    %3020 = vmatpush1.msra.mxu0 0.0
    %3021 = vmatprep.subr.mxu0 0.0
    %3022 = vmatpush1.msra.mxu0 0.0
    %3023 = vmatprep.subr.mxu0 0.0
    %3024 = vmatpush1.msra.mxu0 0.0
    %3025 = vmatprep.subr.mxu0 0.0
    %3026 = vmatpush1.msra.mxu0 0.0
    %3027 = vmatprep.subr.mxu0 0.0
    %3028 = vmatpush1.msra.mxu0 0.0
    %3029 = vmatprep.subr.mxu0 0.0
    %3030 = vmatpush1.msra.mxu0 0.0
    %3031 = vmatprep.subr.mxu0 0.0
    %3032 = vmatpush1.msra.mxu0 0.0
    %3033 = vmatprep.subr.mxu0 0.0
    %3034 = vmatpush1.msra.mxu0 0.0
    %3035 = vmatprep.subr.mxu0 0.0
    %3036 = vmatpush1.msra.mxu0 0.0
    %3037 = vmatprep.subr.mxu0 0.0
    %3038 = vmatpush1.msra.mxu0 0.0
    %3039 = vmatprep.subr.mxu0 0.0
    %3040 = vmatpush1.msra.mxu0 0.0
    %3041 = vmatprep.subr.mxu0 0.0
    %3042 = vmatpush1.msra.mxu0 %v3006
    %3043 = vmatprep.subr.mxu0 0.0
    %3044 = vmatpush2.msra.mxu0 0.0
    %3045 = vmatprep.subr.mxu0 0.0
    %3046 = vmatpush2.msra.mxu0 0.0
    %3047 = vmatprep.subr.mxu0 0.0
    %3048 = vmatpush2.msra.mxu0 0.0
    %3049 = vmatprep.subr.mxu0 0.0
    %3050 = vmatpush2.msra.mxu0 0.0
    %3051 = vmatprep.subr.mxu0 0.0
    %3052 = vmatpush2.msra.mxu0 0.0
    %3053 = vmatprep.subr.mxu0 0.0
    %3054 = vmatpush2.msra.mxu0 0.0
    %3055 = vmatprep.subr.mxu0 0.0
    %3056 = vmatpush2.msra.mxu0 0.0
    %3057 = vmatprep.subr.mxu0 0.0
    %3058 = vmatpush2.msra.mxu0 0.0
    %3059 = vmatprep.subr.mxu0 0.0
    %3060 = vmatpush2.msra.mxu0 0.0
    %3061 = vmatprep.subr.mxu0 0.0
    %3062 = vmatpush2.msra.mxu0 0.0
    %3063 = vmatprep.subr.mxu0 0.0
    %3064 = vmatpush2.msra.mxu0 0.0
    %3065 = vmatprep.subr.mxu0 0.0
    %3066 = vmatpush2.msra.mxu0 0.0
    %3067 = vmatprep.subr.mxu0 0.0
    %3068 = vmatpush2.msra.mxu0 0.0
    %3069 = vmatprep.subr.mxu0 0.0
    %3070 = vmatpush2.msra.mxu0 0.0
    %3071 = vmatprep.subr.mxu0 0.0
    %3072 = vmatpush2.msra.mxu0 0.0
    %3073 = vmatprep.subr.mxu0 0.0
    %3074 = vmatpush2.msra.mxu0 0.0
    %3075 = vmatprep.mubr.f32.mxu0 0.0
    %3076 = vmatmul.mubr.f32.gmra.mxu0 %v3009
    %v3077 = vpop.f32.mrf.mxu0
    %v3078 = vadd.f32 0.0, %v3077
    %v3079 = vpop.f32.mrf.mxu0
    %3080 = vdwg.mxu0
    %3081 = vrot.lane.b32.xlu0 %v2148, 64
    %v3082 = vpop.permute.xlu0 %3081
    %v3085 = vsel %vm361, %v2848, 0
    %3087 = vmatprep.subr.mxu0 0.0
    %3088 = vmatpush1.msra.mxu0 0.0
    %3089 = vmatprep.subr.mxu0 0.0
    %3090 = vmatpush1.msra.mxu0 0.0
    %3091 = vmatprep.subr.mxu0 0.0
    %3092 = vmatpush1.msra.mxu0 0.0
    %3093 = vmatprep.subr.mxu0 0.0
    %3094 = vmatpush1.msra.mxu0 0.0
    %3095 = vmatprep.subr.mxu0 0.0
    %3096 = vmatpush1.msra.mxu0 0.0
    %3097 = vmatprep.subr.mxu0 0.0
    %3098 = vmatpush1.msra.mxu0 0.0
    %3099 = vmatprep.subr.mxu0 0.0
    %3100 = vmatpush1.msra.mxu0 0.0
    %3101 = vmatprep.subr.mxu0 0.0
    %3102 = vmatpush1.msra.mxu0 0.0
    %3103 = vmatprep.subr.mxu0 0.0
    %3104 = vmatpush1.msra.mxu0 0.0
    %3105 = vmatprep.subr.mxu0 0.0
    %3106 = vmatpush1.msra.mxu0 0.0
    %3107 = vmatprep.subr.mxu0 0.0
    %3108 = vmatpush1.msra.mxu0 0.0
    %3109 = vmatprep.subr.mxu0 0.0
    %3110 = vmatpush1.msra.mxu0 0.0
    %3111 = vmatprep.subr.mxu0 0.0
    %3112 = vmatpush1.msra.mxu0 0.0
    %3113 = vmatprep.subr.mxu0 0.0
    %3114 = vmatpush1.msra.mxu0 0.0
    %3115 = vmatprep.subr.mxu0 0.0
    %3116 = vmatpush1.msra.mxu0 0.0
    %3117 = vmatprep.subr.mxu0 0.0
    %3118 = vmatpush1.msra.mxu0 %v3082
    %3119 = vmatprep.subr.mxu0 0.0
    %3120 = vmatpush2.msra.mxu0 0.0
    %3121 = vmatprep.subr.mxu0 0.0
    %3122 = vmatpush2.msra.mxu0 0.0
    %3123 = vmatprep.subr.mxu0 0.0
    %3124 = vmatpush2.msra.mxu0 0.0
    %3125 = vmatprep.subr.mxu0 0.0
    %3126 = vmatpush2.msra.mxu0 0.0
    %3127 = vmatprep.subr.mxu0 0.0
    %3128 = vmatpush2.msra.mxu0 0.0
    %3129 = vmatprep.subr.mxu0 0.0
    %3130 = vmatpush2.msra.mxu0 0.0
    %3131 = vmatprep.subr.mxu0 0.0
    %3132 = vmatpush2.msra.mxu0 0.0
    %3133 = vmatprep.subr.mxu0 0.0
    %3134 = vmatpush2.msra.mxu0 0.0
    %3135 = vmatprep.subr.mxu0 0.0
    %3136 = vmatpush2.msra.mxu0 0.0
    %3137 = vmatprep.subr.mxu0 0.0
    %3138 = vmatpush2.msra.mxu0 0.0
    %3139 = vmatprep.subr.mxu0 0.0
    %3140 = vmatpush2.msra.mxu0 0.0
    %3141 = vmatprep.subr.mxu0 0.0
    %3142 = vmatpush2.msra.mxu0 0.0
    %3143 = vmatprep.subr.mxu0 0.0
    %3144 = vmatpush2.msra.mxu0 0.0
    %3145 = vmatprep.subr.mxu0 0.0
    %3146 = vmatpush2.msra.mxu0 0.0
    %3147 = vmatprep.subr.mxu0 0.0
    %3148 = vmatpush2.msra.mxu0 0.0
    %3149 = vmatprep.subr.mxu0 0.0
    %3150 = vmatpush2.msra.mxu0 0.0
    %3151 = vmatprep.mubr.f32.mxu0 0.0
    %3152 = vmatmul.mubr.f32.gmra.mxu0 %v3085
    %v3153 = vpop.f32.mrf.mxu0
    %v3154 = vadd.f32 0.0, %v3153
    %v3155 = vpop.f32.mrf.mxu0
    %3156 = vdwg.mxu0
    %3157 = vrot.lane.b32.xlu0 %v2150, 64
    %v3158 = vpop.permute.xlu0 %3157
    %v3161 = vsel %vm361, %v2849, 0
    %3163 = vmatprep.subr.mxu0 0.0
    %3164 = vmatpush1.msra.mxu0 0.0
    %3165 = vmatprep.subr.mxu0 0.0
    %3166 = vmatpush1.msra.mxu0 0.0
    %3167 = vmatprep.subr.mxu0 0.0
    %3168 = vmatpush1.msra.mxu0 0.0
    %3169 = vmatprep.subr.mxu0 0.0
    %3170 = vmatpush1.msra.mxu0 0.0
    %3171 = vmatprep.subr.mxu0 0.0
    %3172 = vmatpush1.msra.mxu0 0.0
    %3173 = vmatprep.subr.mxu0 0.0
    %3174 = vmatpush1.msra.mxu0 0.0
    %3175 = vmatprep.subr.mxu0 0.0
    %3176 = vmatpush1.msra.mxu0 0.0
    %3177 = vmatprep.subr.mxu0 0.0
    %3178 = vmatpush1.msra.mxu0 0.0
    %3179 = vmatprep.subr.mxu0 0.0
    %3180 = vmatpush1.msra.mxu0 0.0
    %3181 = vmatprep.subr.mxu0 0.0
    %3182 = vmatpush1.msra.mxu0 0.0
    %3183 = vmatprep.subr.mxu0 0.0
    %3184 = vmatpush1.msra.mxu0 0.0
    %3185 = vmatprep.subr.mxu0 0.0
    %3186 = vmatpush1.msra.mxu0 0.0
    %3187 = vmatprep.subr.mxu0 0.0
    %3188 = vmatpush1.msra.mxu0 0.0
    %3189 = vmatprep.subr.mxu0 0.0
    %3190 = vmatpush1.msra.mxu0 0.0
    %3191 = vmatprep.subr.mxu0 0.0
    %3192 = vmatpush1.msra.mxu0 0.0
    %3193 = vmatprep.subr.mxu0 0.0
    %3194 = vmatpush1.msra.mxu0 %v3158
    %3195 = vmatprep.subr.mxu0 0.0
    %3196 = vmatpush2.msra.mxu0 0.0
    %3197 = vmatprep.subr.mxu0 0.0
    %3198 = vmatpush2.msra.mxu0 0.0
    %3199 = vmatprep.subr.mxu0 0.0
    %3200 = vmatpush2.msra.mxu0 0.0
    %3201 = vmatprep.subr.mxu0 0.0
    %3202 = vmatpush2.msra.mxu0 0.0
    %3203 = vmatprep.subr.mxu0 0.0
    %3204 = vmatpush2.msra.mxu0 0.0
    %3205 = vmatprep.subr.mxu0 0.0
    %3206 = vmatpush2.msra.mxu0 0.0
    %3207 = vmatprep.subr.mxu0 0.0
    %3208 = vmatpush2.msra.mxu0 0.0
    %3209 = vmatprep.subr.mxu0 0.0
    %3210 = vmatpush2.msra.mxu0 0.0
    %3211 = vmatprep.subr.mxu0 0.0
    %3212 = vmatpush2.msra.mxu0 0.0
    %3213 = vmatprep.subr.mxu0 0.0
    %3214 = vmatpush2.msra.mxu0 0.0
    %3215 = vmatprep.subr.mxu0 0.0
    %3216 = vmatpush2.msra.mxu0 0.0
    %3217 = vmatprep.subr.mxu0 0.0
    %3218 = vmatpush2.msra.mxu0 0.0
    %3219 = vmatprep.subr.mxu0 0.0
    %3220 = vmatpush2.msra.mxu0 0.0
    %3221 = vmatprep.subr.mxu0 0.0
    %3222 = vmatpush2.msra.mxu0 0.0
    %3223 = vmatprep.subr.mxu0 0.0
    %3224 = vmatpush2.msra.mxu0 0.0
    %3225 = vmatprep.subr.mxu0 0.0
    %3226 = vmatpush2.msra.mxu0 0.0
    %3227 = vmatprep.mubr.f32.mxu0 0.0
    %3228 = vmatmul.mubr.f32.gmra.mxu0 %v3161
    %v3229 = vpop.f32.mrf.mxu0
    %v3230 = vadd.f32 0.0, %v3229
    %v3231 = vpop.f32.mrf.mxu0
    %3232 = vdwg.mxu0
    %3233 = vrot.lane.b32.xlu0 %v2152, 64
    %v3234 = vpop.permute.xlu0 %3233
    %v3237 = vsel %vm361, %v2850, 0
    %3239 = vmatprep.subr.mxu0 0.0
    %3240 = vmatpush1.msra.mxu0 0.0
    %3241 = vmatprep.subr.mxu0 0.0
    %3242 = vmatpush1.msra.mxu0 0.0
    %3243 = vmatprep.subr.mxu0 0.0
    %3244 = vmatpush1.msra.mxu0 0.0
    %3245 = vmatprep.subr.mxu0 0.0
    %3246 = vmatpush1.msra.mxu0 0.0
    %3247 = vmatprep.subr.mxu0 0.0
    %3248 = vmatpush1.msra.mxu0 0.0
    %3249 = vmatprep.subr.mxu0 0.0
    %3250 = vmatpush1.msra.mxu0 0.0
    %3251 = vmatprep.subr.mxu0 0.0
    %3252 = vmatpush1.msra.mxu0 0.0
    %3253 = vmatprep.subr.mxu0 0.0
    %3254 = vmatpush1.msra.mxu0 0.0
    %3255 = vmatprep.subr.mxu0 0.0
    %3256 = vmatpush1.msra.mxu0 0.0
    %3257 = vmatprep.subr.mxu0 0.0
    %3258 = vmatpush1.msra.mxu0 0.0
    %3259 = vmatprep.subr.mxu0 0.0
    %3260 = vmatpush1.msra.mxu0 0.0
    %3261 = vmatprep.subr.mxu0 0.0
    %3262 = vmatpush1.msra.mxu0 0.0
    %3263 = vmatprep.subr.mxu0 0.0
    %3264 = vmatpush1.msra.mxu0 0.0
    %3265 = vmatprep.subr.mxu0 0.0
    %3266 = vmatpush1.msra.mxu0 0.0
    %3267 = vmatprep.subr.mxu0 0.0
    %3268 = vmatpush1.msra.mxu0 0.0
    %3269 = vmatprep.subr.mxu0 0.0
    %3270 = vmatpush1.msra.mxu0 %v3234
    %3271 = vmatprep.subr.mxu0 0.0
    %3272 = vmatpush2.msra.mxu0 0.0
    %3273 = vmatprep.subr.mxu0 0.0
    %3274 = vmatpush2.msra.mxu0 0.0
    %3275 = vmatprep.subr.mxu0 0.0
    %3276 = vmatpush2.msra.mxu0 0.0
    %3277 = vmatprep.subr.mxu0 0.0
    %3278 = vmatpush2.msra.mxu0 0.0
    %3279 = vmatprep.subr.mxu0 0.0
    %3280 = vmatpush2.msra.mxu0 0.0
    %3281 = vmatprep.subr.mxu0 0.0
    %3282 = vmatpush2.msra.mxu0 0.0
    %3283 = vmatprep.subr.mxu0 0.0
    %3284 = vmatpush2.msra.mxu0 0.0
    %3285 = vmatprep.subr.mxu0 0.0
    %3286 = vmatpush2.msra.mxu0 0.0
    %3287 = vmatprep.subr.mxu0 0.0
    %3288 = vmatpush2.msra.mxu0 0.0
    %3289 = vmatprep.subr.mxu0 0.0
    %3290 = vmatpush2.msra.mxu0 0.0
    %3291 = vmatprep.subr.mxu0 0.0
    %3292 = vmatpush2.msra.mxu0 0.0
    %3293 = vmatprep.subr.mxu0 0.0
    %3294 = vmatpush2.msra.mxu0 0.0
    %3295 = vmatprep.subr.mxu0 0.0
    %3296 = vmatpush2.msra.mxu0 0.0
    %3297 = vmatprep.subr.mxu0 0.0
    %3298 = vmatpush2.msra.mxu0 0.0
    %3299 = vmatprep.subr.mxu0 0.0
    %3300 = vmatpush2.msra.mxu0 0.0
    %3301 = vmatprep.subr.mxu0 0.0
    %3302 = vmatpush2.msra.mxu0 0.0
    %3303 = vmatprep.mubr.f32.mxu0 0.0
    %3304 = vmatmul.mubr.f32.gmra.mxu0 %v3237
    %v3305 = vpop.f32.mrf.mxu0
    %v3306 = vadd.f32 0.0, %v3305
    %v3307 = vpop.f32.mrf.mxu0
    %3308 = vdwg.mxu0
    %3309 = vrot.lane.b32.xlu0 %v2154, 64
    %v3310 = vpop.permute.xlu0 %3309
    %v3313 = vsel %vm361, %v2851, 0
    %3315 = vmatprep.subr.mxu0 0.0
    %3316 = vmatpush1.msra.mxu0 0.0
    %3317 = vmatprep.subr.mxu0 0.0
    %3318 = vmatpush1.msra.mxu0 0.0
    %3319 = vmatprep.subr.mxu0 0.0
    %3320 = vmatpush1.msra.mxu0 0.0
    %3321 = vmatprep.subr.mxu0 0.0
    %3322 = vmatpush1.msra.mxu0 0.0
    %3323 = vmatprep.subr.mxu0 0.0
    %3324 = vmatpush1.msra.mxu0 0.0
    %3325 = vmatprep.subr.mxu0 0.0
    %3326 = vmatpush1.msra.mxu0 0.0
    %3327 = vmatprep.subr.mxu0 0.0
    %3328 = vmatpush1.msra.mxu0 0.0
    %3329 = vmatprep.subr.mxu0 0.0
    %3330 = vmatpush1.msra.mxu0 0.0
    %3331 = vmatprep.subr.mxu0 0.0
    %3332 = vmatpush1.msra.mxu0 0.0
    %3333 = vmatprep.subr.mxu0 0.0
    %3334 = vmatpush1.msra.mxu0 0.0
    %3335 = vmatprep.subr.mxu0 0.0
    %3336 = vmatpush1.msra.mxu0 0.0
    %3337 = vmatprep.subr.mxu0 0.0
    %3338 = vmatpush1.msra.mxu0 0.0
    %3339 = vmatprep.subr.mxu0 0.0
    %3340 = vmatpush1.msra.mxu0 0.0
    %3341 = vmatprep.subr.mxu0 0.0
    %3342 = vmatpush1.msra.mxu0 0.0
    %3343 = vmatprep.subr.mxu0 0.0
    %3344 = vmatpush1.msra.mxu0 0.0
    %3345 = vmatprep.subr.mxu0 0.0
    %3346 = vmatpush1.msra.mxu0 %v3310
    %3347 = vmatprep.subr.mxu0 0.0
    %3348 = vmatpush2.msra.mxu0 0.0
    %3349 = vmatprep.subr.mxu0 0.0
    %3350 = vmatpush2.msra.mxu0 0.0
    %3351 = vmatprep.subr.mxu0 0.0
    %3352 = vmatpush2.msra.mxu0 0.0
    %3353 = vmatprep.subr.mxu0 0.0
    %3354 = vmatpush2.msra.mxu0 0.0
    %3355 = vmatprep.subr.mxu0 0.0
    %3356 = vmatpush2.msra.mxu0 0.0
    %3357 = vmatprep.subr.mxu0 0.0
    %3358 = vmatpush2.msra.mxu0 0.0
    %3359 = vmatprep.subr.mxu0 0.0
    %3360 = vmatpush2.msra.mxu0 0.0
    %3361 = vmatprep.subr.mxu0 0.0
    %3362 = vmatpush2.msra.mxu0 0.0
    %3363 = vmatprep.subr.mxu0 0.0
    %3364 = vmatpush2.msra.mxu0 0.0
    %3365 = vmatprep.subr.mxu0 0.0
    %3366 = vmatpush2.msra.mxu0 0.0
    %3367 = vmatprep.subr.mxu0 0.0
    %3368 = vmatpush2.msra.mxu0 0.0
    %3369 = vmatprep.subr.mxu0 0.0
    %3370 = vmatpush2.msra.mxu0 0.0
    %3371 = vmatprep.subr.mxu0 0.0
    %3372 = vmatpush2.msra.mxu0 0.0
    %3373 = vmatprep.subr.mxu0 0.0
    %3374 = vmatpush2.msra.mxu0 0.0
    %3375 = vmatprep.subr.mxu0 0.0
    %3376 = vmatpush2.msra.mxu0 0.0
    %3377 = vmatprep.subr.mxu0 0.0
    %3378 = vmatpush2.msra.mxu0 0.0
    %3379 = vmatprep.mubr.f32.mxu0 0.0
    %3380 = vmatmul.mubr.f32.gmra.mxu0 %v3313
    %v3381 = vpop.f32.mrf.mxu0
    %v3382 = vadd.f32 0.0, %v3381
    %v3383 = vpop.f32.mrf.mxu0
    %3384 = vdwg.mxu0
    %3385 = vrot.lane.b32.xlu0 %v2156, 64
    %v3386 = vpop.permute.xlu0 %3385
    %v3389 = vsel %vm361, %v2852, 0
    %3391 = vmatprep.subr.mxu0 0.0
    %3392 = vmatpush1.msra.mxu0 0.0
    %3393 = vmatprep.subr.mxu0 0.0
    %3394 = vmatpush1.msra.mxu0 0.0
    %3395 = vmatprep.subr.mxu0 0.0
    %3396 = vmatpush1.msra.mxu0 0.0
    %3397 = vmatprep.subr.mxu0 0.0
    %3398 = vmatpush1.msra.mxu0 0.0
    %3399 = vmatprep.subr.mxu0 0.0
    %3400 = vmatpush1.msra.mxu0 0.0
    %3401 = vmatprep.subr.mxu0 0.0
    %3402 = vmatpush1.msra.mxu0 0.0
    %3403 = vmatprep.subr.mxu0 0.0
    %3404 = vmatpush1.msra.mxu0 0.0
    %3405 = vmatprep.subr.mxu0 0.0
    %3406 = vmatpush1.msra.mxu0 0.0
    %3407 = vmatprep.subr.mxu0 0.0
    %3408 = vmatpush1.msra.mxu0 0.0
    %3409 = vmatprep.subr.mxu0 0.0
    %3410 = vmatpush1.msra.mxu0 0.0
    %3411 = vmatprep.subr.mxu0 0.0
    %3412 = vmatpush1.msra.mxu0 0.0
    %3413 = vmatprep.subr.mxu0 0.0
    %3414 = vmatpush1.msra.mxu0 0.0
    %3415 = vmatprep.subr.mxu0 0.0
    %3416 = vmatpush1.msra.mxu0 0.0
    %3417 = vmatprep.subr.mxu0 0.0
    %3418 = vmatpush1.msra.mxu0 0.0
    %3419 = vmatprep.subr.mxu0 0.0
    %3420 = vmatpush1.msra.mxu0 0.0
    %3421 = vmatprep.subr.mxu0 0.0
    %3422 = vmatpush1.msra.mxu0 %v3386
    %3423 = vmatprep.subr.mxu0 0.0
    %3424 = vmatpush2.msra.mxu0 0.0
    %3425 = vmatprep.subr.mxu0 0.0
    %3426 = vmatpush2.msra.mxu0 0.0
    %3427 = vmatprep.subr.mxu0 0.0
    %3428 = vmatpush2.msra.mxu0 0.0
    %3429 = vmatprep.subr.mxu0 0.0
    %3430 = vmatpush2.msra.mxu0 0.0
    %3431 = vmatprep.subr.mxu0 0.0
    %3432 = vmatpush2.msra.mxu0 0.0
    %3433 = vmatprep.subr.mxu0 0.0
    %3434 = vmatpush2.msra.mxu0 0.0
    %3435 = vmatprep.subr.mxu0 0.0
    %3436 = vmatpush2.msra.mxu0 0.0
    %3437 = vmatprep.subr.mxu0 0.0
    %3438 = vmatpush2.msra.mxu0 0.0
    %3439 = vmatprep.subr.mxu0 0.0
    %3440 = vmatpush2.msra.mxu0 0.0
    %3441 = vmatprep.subr.mxu0 0.0
    %3442 = vmatpush2.msra.mxu0 0.0
    %3443 = vmatprep.subr.mxu0 0.0
    %3444 = vmatpush2.msra.mxu0 0.0
    %3445 = vmatprep.subr.mxu0 0.0
    %3446 = vmatpush2.msra.mxu0 0.0
    %3447 = vmatprep.subr.mxu0 0.0
    %3448 = vmatpush2.msra.mxu0 0.0
    %3449 = vmatprep.subr.mxu0 0.0
    %3450 = vmatpush2.msra.mxu0 0.0
    %3451 = vmatprep.subr.mxu0 0.0
    %3452 = vmatpush2.msra.mxu0 0.0
    %3453 = vmatprep.subr.mxu0 0.0
    %3454 = vmatpush2.msra.mxu0 0.0
    %3455 = vmatprep.mubr.f32.mxu0 0.0
    %3456 = vmatmul.mubr.f32.gmra.mxu0 %v3389
    %v3457 = vpop.f32.mrf.mxu0
    %v3458 = vadd.f32 0.0, %v3457
    %v3459 = vpop.f32.mrf.mxu0
    %3460 = vdwg.mxu0
    %3463 = vrot.lane.b32.xlu0 %v3078, 8
    %v3464 = vpop.permute.xlu0 %3463
    %3465 = vrot.lane.b32.xlu0 %v3154, 8
    %v3466 = vpop.permute.xlu0 %3465
    %3471 = vrot.lane.b32.xlu0 %v3230, 16
    %v3472 = vpop.permute.xlu0 %3471
    %3473 = vrot.lane.b32.xlu0 %v3306, 16
    %v3474 = vpop.permute.xlu0 %3473
    %3479 = vrot.lane.b32.xlu0 %v3382, 24
    %v3480 = vpop.permute.xlu0 %3479
    %3481 = vrot.lane.b32.xlu0 %v3458, 24
    %v3482 = vpop.permute.xlu0 %3481
    %v3485 = vsel %vm361, %v2926, %v3464
    %v3486 = vsel %vm361, %v3002, %v3466
    %v3487 = vsel %vm1690, %v3485, %v3472
    %v3488 = vsel %vm1690, %v3486, %v3474
    %v3489 = vsel %vm1693, %v3487, %v3480
    %v3490 = vsel %vm1693, %v3488, %v3482
    %s3491 = scalar_lea.vmem [#allocation7], 32
    %v3492 = vld [vmem:[%s3491] sm:$0xff]
    %v3493 = vld [vmem:[%s3491 + $0x8] sm:$0xff]
    %v3494 = vld [vmem:[%s3491 + $0x10] sm:$0xff]
    %v3495 = vld [vmem:[%s3491 + $0x18] sm:$0xff]
    %v3496 = vlaneseq
    %v3497 = vshrl.u32 %v3496, 7
    %v3498 = vsub.s32 1, %v3497
    %v3499 = vrot.slane %v2052, %v3498
    %v3501 = vsel %vm251, %v3489, 0
    %v3504 = vsel %vm251, %v3490, 0
    %3506 = vmatprep.subr.mxu0 0.0
    %3507 = vmatpush1.msra.mxu0 0.0
    %3508 = vmatprep.subr.mxu0 0.0
    %3509 = vmatpush1.msra.mxu0 0.0
    %3510 = vmatprep.subr.mxu0 0.0
    %3511 = vmatpush1.msra.mxu0 0.0
    %3512 = vmatprep.subr.mxu0 0.0
    %3513 = vmatpush1.msra.mxu0 0.0
    %3514 = vmatprep.subr.mxu0 0.0
    %3515 = vmatpush1.msra.mxu0 0.0
    %3516 = vmatprep.subr.mxu0 0.0
    %3517 = vmatpush1.msra.mxu0 0.0
    %3518 = vmatprep.subr.mxu0 0.0
    %3519 = vmatpush1.msra.mxu0 0.0
    %3520 = vmatprep.subr.mxu0 0.0
    %3521 = vmatpush1.msra.mxu0 0.0
    %3522 = vmatprep.subr.mxu0 0.0
    %3523 = vmatpush1.msra.mxu0 0.0
    %3524 = vmatprep.subr.mxu0 0.0
    %3525 = vmatpush1.msra.mxu0 0.0
    %3526 = vmatprep.subr.mxu0 0.0
    %3527 = vmatpush1.msra.mxu0 0.0
    %3528 = vmatprep.subr.mxu0 0.0
    %3529 = vmatpush1.msra.mxu0 0.0
    %3530 = vmatprep.subr.mxu0 0.0
    %3531 = vmatpush1.msra.mxu0 %v3495
    %3532 = vmatprep.subr.mxu0 0.0
    %3533 = vmatpush1.msra.mxu0 %v3494
    %3534 = vmatprep.subr.mxu0 0.0
    %3535 = vmatpush1.msra.mxu0 %v3493
    %3536 = vmatprep.subr.mxu0 0.0
    %3537 = vmatpush1.msra.mxu0 %v3492
    %3538 = vmatprep.subr.mxu0 0.0
    %3539 = vmatpush2.msra.mxu0 0.0
    %3540 = vmatprep.subr.mxu0 0.0
    %3541 = vmatpush2.msra.mxu0 0.0
    %3542 = vmatprep.subr.mxu0 0.0
    %3543 = vmatpush2.msra.mxu0 0.0
    %3544 = vmatprep.subr.mxu0 0.0
    %3545 = vmatpush2.msra.mxu0 0.0
    %3546 = vmatprep.subr.mxu0 0.0
    %3547 = vmatpush2.msra.mxu0 0.0
    %3548 = vmatprep.subr.mxu0 0.0
    %3549 = vmatpush2.msra.mxu0 0.0
    %3550 = vmatprep.subr.mxu0 0.0
    %3551 = vmatpush2.msra.mxu0 0.0
    %3552 = vmatprep.subr.mxu0 0.0
    %3553 = vmatpush2.msra.mxu0 0.0
    %3554 = vmatprep.subr.mxu0 0.0
    %3555 = vmatpush2.msra.mxu0 0.0
    %3556 = vmatprep.subr.mxu0 0.0
    %3557 = vmatpush2.msra.mxu0 0.0
    %3558 = vmatprep.subr.mxu0 0.0
    %3559 = vmatpush2.msra.mxu0 0.0
    %3560 = vmatprep.subr.mxu0 0.0
    %3561 = vmatpush2.msra.mxu0 0.0
    %3562 = vmatprep.subr.mxu0 0.0
    %3563 = vmatpush2.msra.mxu0 0.0
    %3564 = vmatprep.subr.mxu0 0.0
    %3565 = vmatpush2.msra.mxu0 0.0
    %3566 = vmatprep.subr.mxu0 0.0
    %3567 = vmatpush2.msra.mxu0 0.0
    %3568 = vmatprep.subr.mxu0 0.0
    %3569 = vmatpush2.msra.mxu0 0.0
    %3570 = vmatprep.mubr.f32.mxu0 0.0
    %3571 = vmatmul.mubr.f32.gmra.mxu0 %v3501
    %v3572 = vpop.f32.mrf.mxu0
    %v3573 = vadd.f32 %v3499, %v3572
    %v3574 = vpop.f32.mrf.mxu0
    %3575 = vmatprep.mubr.f32.mxu0 0.0
    %3576 = vmatmul.mubr.f32.gmra.mxu0 %v3504
    %v3577 = vpop.f32.mrf.mxu0
    %v3578 = vadd.f32 %v3499, %v3577
    %v3579 = vpop.f32.mrf.mxu0
    %3580 = vdwg.mxu0
    %v3581 = vadd.f32 %v2049, %v3573
    %v3582 = vadd.f32 %v2050, %v3578
    %v3583 = vsel %vm251, %v3581, 0.0
    %3584 = vadd.xlane.f32.xlu0 %v3583
    %v3585 = vpop.xlane.xlu0 %3584
    %v3586 = vsel %vm251, %v3582, 0.0
    %3587 = vadd.xlane.f32.xlu0 %v3586
    %v3588 = vpop.xlane.xlu0 %3587
    %v3589 = vmul.f32 %v3585, %v1793
    %v3590 = vmul.f32 %v3588, %v1793
    %v3591 = vsub.f32 %v3581, %v3589
    %v3592 = vsub.f32 %v3582, %v3590
    %v3593 = vmul.f32 %v3591, %v3591
    %v3594 = vmul.f32 %v3592, %v3592
    %v3595 = vsel %vm251, %v3593, 0.0
    %3596 = vadd.xlane.f32.xlu0 %v3595
    %v3597 = vpop.xlane.xlu0 %3596
    %v3598 = vsel %vm251, %v3594, 0.0
    %3599 = vadd.xlane.f32.xlu0 %v3598
    %v3600 = vpop.xlane.xlu0 %3599
    %v3601 = vmul.f32 %v3597, %v1793
    %v3602 = vmul.f32 %v3600, %v1793
    %v3603 = vadd.f32 %v3601, 1e-05
    %v3604 = vadd.f32 %v3602, 1e-05
    %v3605 = vrsqrt.pop %v3603
    %v3606 = vrsqrt.pop %v3604
    %v3607 = vmul.f32 %v3591, %v3605
    %v3608 = vmul.f32 %v3592, %v3606
    %v3609 = vlaneseq
    %v3610 = vshrl.u32 %v3609, 7
    %v3611 = vsub.s32 4, %v3610
    %v3612 = vrot.slane %v2052, %v3611
    %v3613 = vmul.f32 %v3607, %v3612
    %v3614 = vmul.f32 %v3608, %v3612
    %v3615 = vlaneseq
    %v3616 = vshrl.u32 %v3615, 7
    %v3617 = vsub.s32 5, %v3616
    %v3618 = vrot.slane %v2052, %v3617
    %v3619 = vadd.f32 %v3613, %v3618
    %v3620 = vadd.f32 %v3614, %v3618
    %s3621 = scalar_lea.vmem [#allocation8], 32
    %v3622 = vld [vmem:[%s3621] sm:$0xff]
    %v3623 = vld [vmem:[%s3621 + $0x8] sm:$0xff]
    %v3624 = vld [vmem:[%s3621 + $0x10] sm:$0xff]
    %v3625 = vld [vmem:[%s3621 + $0x18] sm:$0xff]
    %v3626 = vlaneseq
    %v3627 = vshrl.u32 %v3626, 7
    %v3628 = vsub.s32 2, %v3627
    %v3629 = vrot.slane %v2052, %v3628
    %v3631 = vsel %vm251, %v3619, 0
    %v3634 = vsel %vm251, %v3620, 0
    %3636 = vmatprep.subr.mxu0 0.0
    %3637 = vmatpush1.msra.mxu0 0.0
    %3638 = vmatprep.subr.mxu0 0.0
    %3639 = vmatpush1.msra.mxu0 0.0
    %3640 = vmatprep.subr.mxu0 0.0
    %3641 = vmatpush1.msra.mxu0 0.0
    %3642 = vmatprep.subr.mxu0 0.0
    %3643 = vmatpush1.msra.mxu0 0.0
    %3644 = vmatprep.subr.mxu0 0.0
    %3645 = vmatpush1.msra.mxu0 0.0
    %3646 = vmatprep.subr.mxu0 0.0
    %3647 = vmatpush1.msra.mxu0 0.0
    %3648 = vmatprep.subr.mxu0 0.0
    %3649 = vmatpush1.msra.mxu0 0.0
    %3650 = vmatprep.subr.mxu0 0.0
    %3651 = vmatpush1.msra.mxu0 0.0
    %3652 = vmatprep.subr.mxu0 0.0
    %3653 = vmatpush1.msra.mxu0 0.0
    %3654 = vmatprep.subr.mxu0 0.0
    %3655 = vmatpush1.msra.mxu0 0.0
    %3656 = vmatprep.subr.mxu0 0.0
    %3657 = vmatpush1.msra.mxu0 0.0
    %3658 = vmatprep.subr.mxu0 0.0
    %3659 = vmatpush1.msra.mxu0 0.0
    %3660 = vmatprep.subr.mxu0 0.0
    %3661 = vmatpush1.msra.mxu0 %v3625
    %3662 = vmatprep.subr.mxu0 0.0
    %3663 = vmatpush1.msra.mxu0 %v3624
    %3664 = vmatprep.subr.mxu0 0.0
    %3665 = vmatpush1.msra.mxu0 %v3623
    %3666 = vmatprep.subr.mxu0 0.0
    %3667 = vmatpush1.msra.mxu0 %v3622
    %3668 = vmatprep.subr.mxu0 0.0
    %3669 = vmatpush2.msra.mxu0 0.0
    %3670 = vmatprep.subr.mxu0 0.0
    %3671 = vmatpush2.msra.mxu0 0.0
    %3672 = vmatprep.subr.mxu0 0.0
    %3673 = vmatpush2.msra.mxu0 0.0
    %3674 = vmatprep.subr.mxu0 0.0
    %3675 = vmatpush2.msra.mxu0 0.0
    %3676 = vmatprep.subr.mxu0 0.0
    %3677 = vmatpush2.msra.mxu0 0.0
    %3678 = vmatprep.subr.mxu0 0.0
    %3679 = vmatpush2.msra.mxu0 0.0
    %3680 = vmatprep.subr.mxu0 0.0
    %3681 = vmatpush2.msra.mxu0 0.0
    %3682 = vmatprep.subr.mxu0 0.0
    %3683 = vmatpush2.msra.mxu0 0.0
    %3684 = vmatprep.subr.mxu0 0.0
    %3685 = vmatpush2.msra.mxu0 0.0
    %3686 = vmatprep.subr.mxu0 0.0
    %3687 = vmatpush2.msra.mxu0 0.0
    %3688 = vmatprep.subr.mxu0 0.0
    %3689 = vmatpush2.msra.mxu0 0.0
    %3690 = vmatprep.subr.mxu0 0.0
    %3691 = vmatpush2.msra.mxu0 0.0
    %3692 = vmatprep.subr.mxu0 0.0
    %3693 = vmatpush2.msra.mxu0 0.0
    %3694 = vmatprep.subr.mxu0 0.0
    %3695 = vmatpush2.msra.mxu0 0.0
    %3696 = vmatprep.subr.mxu0 0.0
    %3697 = vmatpush2.msra.mxu0 0.0
    %3698 = vmatprep.subr.mxu0 0.0
    %3699 = vmatpush2.msra.mxu0 0.0
    %3700 = vmatprep.mubr.f32.mxu0 0.0
    %3701 = vmatmul.mubr.f32.gmra.mxu0 %v3631
    %v3702 = vpop.f32.mrf.mxu0
    %v3703 = vadd.f32 %v3629, %v3702
    %v3704 = vpop.f32.mrf.mxu0
    %3705 = vmatprep.mubr.f32.mxu0 0.0
    %3706 = vmatmul.mubr.f32.gmra.mxu0 %v3634
    %v3707 = vpop.f32.mrf.mxu0
    %v3708 = vadd.f32 %v3629, %v3707
    %v3709 = vpop.f32.mrf.mxu0
    %3710 = vdwg.mxu0
    %v3711 = vmax.f32 %v3703, 0.0
    %v3712 = vmax.f32 %v3708, 0.0
    %s3713 = scalar_lea.vmem [#allocation10], 64
    %v3714 = vld [vmem:[%s3713] sm:$0xff]
    %v3715 = vld [vmem:[%s3713 + $0x8] sm:$0xff]
    %v3716 = vld [vmem:[%s3713 + $0x10] sm:$0xff]
    %v3717 = vld [vmem:[%s3713 + $0x18] sm:$0xff]
    %v3718 = vld [vmem:[%s3713 + $0x20] sm:$0xff]
    %v3719 = vld [vmem:[%s3713 + $0x28] sm:$0xff]
    %v3720 = vld [vmem:[%s3713 + $0x30] sm:$0xff]
    %v3721 = vld [vmem:[%s3713 + $0x38] sm:$0xff]
    %v3722 = vlaneseq
    %v3723 = vshrl.u32 %v3722, 7
    %v3724 = vsub.s32 3, %v3723
    %v3725 = vrot.slane %v2052, %v3724
    %v3727 = vsel %vm1929, %v3711, 0
    %v3730 = vsel %vm1929, %v3712, 0
    %3732 = vmatprep.subr.mxu0 0.0
    %3733 = vmatpush1.msra.mxu0 0.0
    %3734 = vmatprep.subr.mxu0 0.0
    %3735 = vmatpush1.msra.mxu0 0.0
    %3736 = vmatprep.subr.mxu0 0.0
    %3737 = vmatpush1.msra.mxu0 0.0
    %3738 = vmatprep.subr.mxu0 0.0
    %3739 = vmatpush1.msra.mxu0 0.0
    %3740 = vmatprep.subr.mxu0 0.0
    %3741 = vmatpush1.msra.mxu0 0.0
    %3742 = vmatprep.subr.mxu0 0.0
    %3743 = vmatpush1.msra.mxu0 0.0
    %3744 = vmatprep.subr.mxu0 0.0
    %3745 = vmatpush1.msra.mxu0 0.0
    %3746 = vmatprep.subr.mxu0 0.0
    %3747 = vmatpush1.msra.mxu0 0.0
    %3748 = vmatprep.subr.mxu0 0.0
    %3749 = vmatpush1.msra.mxu0 %v3721
    %3750 = vmatprep.subr.mxu0 0.0
    %3751 = vmatpush1.msra.mxu0 %v3720
    %3752 = vmatprep.subr.mxu0 0.0
    %3753 = vmatpush1.msra.mxu0 %v3719
    %3754 = vmatprep.subr.mxu0 0.0
    %3755 = vmatpush1.msra.mxu0 %v3718
    %3756 = vmatprep.subr.mxu0 0.0
    %3757 = vmatpush1.msra.mxu0 %v3717
    %3758 = vmatprep.subr.mxu0 0.0
    %3759 = vmatpush1.msra.mxu0 %v3716
    %3760 = vmatprep.subr.mxu0 0.0
    %3761 = vmatpush1.msra.mxu0 %v3715
    %3762 = vmatprep.subr.mxu0 0.0
    %3763 = vmatpush1.msra.mxu0 %v3714
    %3764 = vmatprep.subr.mxu0 0.0
    %3765 = vmatpush2.msra.mxu0 0.0
    %3766 = vmatprep.subr.mxu0 0.0
    %3767 = vmatpush2.msra.mxu0 0.0
    %3768 = vmatprep.subr.mxu0 0.0
    %3769 = vmatpush2.msra.mxu0 0.0
    %3770 = vmatprep.subr.mxu0 0.0
    %3771 = vmatpush2.msra.mxu0 0.0
    %3772 = vmatprep.subr.mxu0 0.0
    %3773 = vmatpush2.msra.mxu0 0.0
    %3774 = vmatprep.subr.mxu0 0.0
    %3775 = vmatpush2.msra.mxu0 0.0
    %3776 = vmatprep.subr.mxu0 0.0
    %3777 = vmatpush2.msra.mxu0 0.0
    %3778 = vmatprep.subr.mxu0 0.0
    %3779 = vmatpush2.msra.mxu0 0.0
    %3780 = vmatprep.subr.mxu0 0.0
    %3781 = vmatpush2.msra.mxu0 0.0
    %3782 = vmatprep.subr.mxu0 0.0
    %3783 = vmatpush2.msra.mxu0 0.0
    %3784 = vmatprep.subr.mxu0 0.0
    %3785 = vmatpush2.msra.mxu0 0.0
    %3786 = vmatprep.subr.mxu0 0.0
    %3787 = vmatpush2.msra.mxu0 0.0
    %3788 = vmatprep.subr.mxu0 0.0
    %3789 = vmatpush2.msra.mxu0 0.0
    %3790 = vmatprep.subr.mxu0 0.0
    %3791 = vmatpush2.msra.mxu0 0.0
    %3792 = vmatprep.subr.mxu0 0.0
    %3793 = vmatpush2.msra.mxu0 0.0
    %3794 = vmatprep.subr.mxu0 0.0
    %3795 = vmatpush2.msra.mxu0 0.0
    %3796 = vmatprep.mubr.f32.mxu0 0.0
    %3797 = vmatmul.mubr.f32.gmra.mxu0 %v3727
    %v3798 = vpop.f32.mrf.mxu0
    %v3799 = vadd.f32 %v3725, %v3798
    %v3800 = vpop.f32.mrf.mxu0
    %3801 = vmatprep.mubr.f32.mxu0 0.0
    %3802 = vmatmul.mubr.f32.gmra.mxu0 %v3730
    %v3803 = vpop.f32.mrf.mxu0
    %v3804 = vadd.f32 %v3725, %v3803
    %v3805 = vpop.f32.mrf.mxu0
    %3806 = vdwg.mxu0
    %v3807 = vadd.f32 %v3619, %v3799
    %v3808 = vadd.f32 %v3620, %v3804
    %v3809 = vsel %vm251, %v3807, 0.0
    %3810 = vadd.xlane.f32.xlu0 %v3809
    %v3811 = vpop.xlane.xlu0 %3810
    %v3812 = vsel %vm251, %v3808, 0.0
    %3813 = vadd.xlane.f32.xlu0 %v3812
    %v3814 = vpop.xlane.xlu0 %3813
    %v3815 = vmul.f32 %v3811, %v1793
    %v3816 = vmul.f32 %v3814, %v1793
    %v3817 = vsub.f32 %v3807, %v3815
    %v3818 = vsub.f32 %v3808, %v3816
    %v3819 = vmul.f32 %v3817, %v3817
    %v3820 = vmul.f32 %v3818, %v3818
    %v3821 = vsel %vm251, %v3819, 0.0
    %3822 = vadd.xlane.f32.xlu0 %v3821
    %v3823 = vpop.xlane.xlu0 %3822
    %v3824 = vsel %vm251, %v3820, 0.0
    %3825 = vadd.xlane.f32.xlu0 %v3824
    %v3826 = vpop.xlane.xlu0 %3825
    %v3827 = vmul.f32 %v3823, %v1793
    %v3828 = vmul.f32 %v3826, %v1793
    %v3829 = vadd.f32 %v3827, 1e-05
    %v3830 = vadd.f32 %v3828, 1e-05
    %v3831 = vrsqrt.pop %v3829
    %v3832 = vrsqrt.pop %v3830
    %v3833 = vmul.f32 %v3817, %v3831
    %v3834 = vmul.f32 %v3818, %v3832
    %v3835 = vlaneseq
    %v3836 = vshrl.u32 %v3835, 7
    %v3837 = vsub.s32 6, %v3836
    %v3838 = vrot.slane %v2052, %v3837
    %v3839 = vmul.f32 %v3833, %v3838
    %v3840 = vmul.f32 %v3834, %v3838
    %v3841 = vlaneseq
    %v3842 = vshrl.u32 %v3841, 7
    %v3843 = vsub.s32 7, %v3842
    %v3844 = vrot.slane %v2052, %v3843
    %v3845 = vadd.f32 %v3839, %v3844
    %v3846 = vadd.f32 %v3840, %v3844
    %v3847 = vld [vmem:[#allocation13] sm:$0x1]
    %v3848 = vld [vmem:[#allocation13 + $0x1] sm:$0x1]
    %v3849 = vld [vmem:[#allocation13 + $0x2] sm:$0x1]
    %v3850 = vsel %vm251, %v3845, 0.0
    %3851 = vadd.xlane.f32.xlu0 %v3850
    %v3852 = vpop.xlane.xlu0 %3851
    %v3853 = vsel %vm251, %v3846, 0.0
    %3854 = vadd.xlane.f32.xlu0 %v3853
    %v3855 = vpop.xlane.xlu0 %3854
    %v3856 = vmul.f32 %v3852, %v1793
    %v3857 = vmul.f32 %v3855, %v1793
    %v3858 = vsub.f32 %v3845, %v3856
    %v3859 = vsub.f32 %v3846, %v3857
    %v3860 = vmul.f32 %v3858, %v3858
    %v3861 = vmul.f32 %v3859, %v3859
    %v3862 = vsel %vm251, %v3860, 0.0
    %3863 = vadd.xlane.f32.xlu0 %v3862
    %v3864 = vpop.xlane.xlu0 %3863
    %v3865 = vsel %vm251, %v3861, 0.0
    %3866 = vadd.xlane.f32.xlu0 %v3865
    %v3867 = vpop.xlane.xlu0 %3866
    %v3868 = vmul.f32 %v3864, %v1793
    %v3869 = vmul.f32 %v3867, %v1793
    %v3870 = vadd.f32 %v3868, 1e-05
    %v3871 = vadd.f32 %v3869, 1e-05
    %v3872 = vrsqrt.pop %v3870
    %v3873 = vrsqrt.pop %v3871
    %v3874 = vmul.f32 %v3858, %v3872
    %v3875 = vmul.f32 %v3859, %v3873
    %v3876 = vlaneseq
    %v3877 = vshrl.u32 %v3876, 7
    %v3878 = vsub.s32 0, %v3877
    %v3879 = vrot.slane %v3847, %v3878
    %v3880 = vmul.f32 %v3874, %v3879
    %v3881 = vmul.f32 %v3875, %v3879
    %v3882 = vlaneseq
    %v3883 = vshrl.u32 %v3882, 7
    %v3884 = vsub.s32 0, %v3883
    %v3885 = vrot.slane %v3848, %v3884
    %v3886 = vadd.f32 %v3880, %v3885
    %v3887 = vadd.f32 %v3881, %v3885
    %v3888 = vsel %vm251, %v3886, 0.0
    %v3889 = vrot.slane %v3888, 4
    %v3890 = vadd.f32 %v3888, %v3889
    %v3891 = vrot.slane %v3890, 2
    %v3892 = vadd.f32 %v3890, %v3891
    %v3893 = vrot.slane %v3892, 1
    %v3894 = vadd.f32 %v3892, %v3893
    %v3895 = vsel %vm251, %v3887, 0.0
    %v3896 = vrot.slane %v3895, 4
    %v3897 = vadd.f32 %v3895, %v3896
    %v3898 = vrot.slane %v3897, 2
    %v3899 = vadd.f32 %v3897, %v3898
    %v3900 = vrot.slane %v3899, 1
    %v3901 = vadd.f32 %v3899, %v3900
    %v3902 = vrcp.pop 8.0
    %v3903 = vmul.f32 %v3894, %v3902
    %v3904 = vmul.f32 %v3901, %v3902
    %v3905 = vld [vmem:[%s9] sm:$0xff]
    %v3906 = vld [vmem:[%s9 + $0x8] sm:$0xff]
    %v3907 = vld [vmem:[%s9 + $0x10] sm:$0xff]
    %v3908 = vld [vmem:[%s9 + $0x18] sm:$0xff]
    %v3909 = vlaneseq
    %v3910 = vshrl.u32 %v3909, 7
    %v3911 = vsub.s32 0, %v3910
    %v3912 = vrot.slane %v3849, %v3911
    %vm3915 = vcmask 1041409
    %v3916 = vsel %vm3915, %v3904, %v3903
    %v3917 = vsel %vm251, %v3916, 0
    %3919 = vmatprep.subr.mxu0 0.0
    %3920 = vmatpush1.msra.mxu0 0.0
    %3921 = vmatprep.subr.mxu0 0.0
    %3922 = vmatpush1.msra.mxu0 0.0
    %3923 = vmatprep.subr.mxu0 0.0
    %3924 = vmatpush1.msra.mxu0 0.0
    %3925 = vmatprep.subr.mxu0 0.0
    %3926 = vmatpush1.msra.mxu0 0.0
    %3927 = vmatprep.subr.mxu0 0.0
    %3928 = vmatpush1.msra.mxu0 0.0
    %3929 = vmatprep.subr.mxu0 0.0
    %3930 = vmatpush1.msra.mxu0 0.0
    %3931 = vmatprep.subr.mxu0 0.0
    %3932 = vmatpush1.msra.mxu0 0.0
    %3933 = vmatprep.subr.mxu0 0.0
    %3934 = vmatpush1.msra.mxu0 0.0
    %3935 = vmatprep.subr.mxu0 0.0
    %3936 = vmatpush1.msra.mxu0 0.0
    %3937 = vmatprep.subr.mxu0 0.0
    %3938 = vmatpush1.msra.mxu0 0.0
    %3939 = vmatprep.subr.mxu0 0.0
    %3940 = vmatpush1.msra.mxu0 0.0
    %3941 = vmatprep.subr.mxu0 0.0
    %3942 = vmatpush1.msra.mxu0 0.0
    %3943 = vmatprep.subr.mxu0 0.0
    %3944 = vmatpush1.msra.mxu0 %v3908
    %3945 = vmatprep.subr.mxu0 0.0
    %3946 = vmatpush1.msra.mxu0 %v3907
    %3947 = vmatprep.subr.mxu0 0.0
    %3948 = vmatpush1.msra.mxu0 %v3906
    %3949 = vmatprep.subr.mxu0 0.0
    %3950 = vmatpush1.msra.mxu0 %v3905
    %3951 = vmatprep.subr.mxu0 0.0
    %3952 = vmatpush2.msra.mxu0 0.0
    %3953 = vmatprep.subr.mxu0 0.0
    %3954 = vmatpush2.msra.mxu0 0.0
    %3955 = vmatprep.subr.mxu0 0.0
    %3956 = vmatpush2.msra.mxu0 0.0
    %3957 = vmatprep.subr.mxu0 0.0
    %3958 = vmatpush2.msra.mxu0 0.0
    %3959 = vmatprep.subr.mxu0 0.0
    %3960 = vmatpush2.msra.mxu0 0.0
    %3961 = vmatprep.subr.mxu0 0.0
    %3962 = vmatpush2.msra.mxu0 0.0
    %3963 = vmatprep.subr.mxu0 0.0
    %3964 = vmatpush2.msra.mxu0 0.0
    %3965 = vmatprep.subr.mxu0 0.0
    %3966 = vmatpush2.msra.mxu0 0.0
    %3967 = vmatprep.subr.mxu0 0.0
    %3968 = vmatpush2.msra.mxu0 0.0
    %3969 = vmatprep.subr.mxu0 0.0
    %3970 = vmatpush2.msra.mxu0 0.0
    %3971 = vmatprep.subr.mxu0 0.0
    %3972 = vmatpush2.msra.mxu0 0.0
    %3973 = vmatprep.subr.mxu0 0.0
    %3974 = vmatpush2.msra.mxu0 0.0
    %3975 = vmatprep.subr.mxu0 0.0
    %3976 = vmatpush2.msra.mxu0 0.0
    %3977 = vmatprep.subr.mxu0 0.0
    %3978 = vmatpush2.msra.mxu0 0.0
    %3979 = vmatprep.subr.mxu0 0.0
    %3980 = vmatpush2.msra.mxu0 0.0
    %3981 = vmatprep.subr.mxu0 0.0
    %3982 = vmatpush2.msra.mxu0 0.0
    %3983 = vmatprep.mubr.f32.mxu0 0.0
    %3984 = vmatmul.mubr.f32.gmra.mxu0 %v3917
    %v3985 = vpop.f32.mrf.mxu0
    %v3986 = vadd.f32 %v3912, %v3985
    %v3987 = vpop.f32.mrf.mxu0
    %3988 = vdwg.mxu0
    %v3991 = vunpack.c.l.s4 1966171168
    %v3992 = vunpack.c.0.s8 %v3991
    %v3993 = vlaneseq
    %v3994 = vshrl.u32 %v3993, 7
    %v3995 = vsub.s32 %v3992, %v3994
    %v3996 = vrot.slane %v3986, %v3995
    %v3997 = vcombine.high %v3996, %v3996
    %v3999 = vunpack.c.l.s4 1966171168
    %v4000 = vunpack.c.0.s8 %v3999
    %v4001 = vlaneseq
    %v4002 = vshrl.u32 %v4001, 7
    %v4003 = vsub.s32 %v4000, %v4002
    %v4004 = vrot.slane %v3996, %v4003
    %v4006 = vunpack.c.l.s4 1966171168
    %v4007 = vunpack.c.0.s8 %v4006
    %v4008 = vlaneseq
    %v4009 = vshrl.u32 %v4008, 7
    %v4010 = vsub.s32 %v4007, %v4009
    %v4011 = vrot.slane %v3997, %v4010
    %4014 = vst [vmem:[#allocation14] sm:$0x1] %v4004
    %4015 = vst [vmem:[#allocation14 + $0x1] sm:$0x1] %v4011
    // Predicated region
    $region74: #{_lambda_.1} parent=1 // pred_check
      _
    $region75: #{_lambda_.1} parent=1 // pred_check_branch
      %4017 = sbr.rel (0) target = $region77
    $region76: #{_lambda_.1} parent=1 // pred_region
      %s4019 = ssub.s32 32, 32
      %4020 = vsyncadd [#allocation4], %s4019
      %s4021 = sshll.u32 [#allocation14], 4
      %s4022 = int_to_ptr.vmem [resolvable:$true] %s4021
      %4027 = dma.vmem_to_hbm [thread:$0]  %s4022, 32, %s11, [#allocation4], 16, 16, 1
    $region77: #{_lambda_.1} parent=1 // pred_fallthru
      _
    // Predicated region
    $region78: #{_lambda_.1} parent=1 // pred_check
      _
    $region79: #{_lambda_.1} parent=1 // pred_check_branch
      %4029 = sbr.rel (0) target = $region81
    $region80: #{_lambda_.1} parent=1 // pred_region
      %4030 = dma.done [#allocation4], 32
    $region81: #{_lambda_.1} parent=1 // pred_fallthru
      _
    %4031 = vsyncpa [#allocation3], 1
    %4032 = vsyncpa [#allocation6], 1
    %4033 = vsyncpa [#allocation9], 1
    %4034 = vsyncpa [#allocation12], 1
    %4035 = vsyncpa [#allocation4], 1

</llo_original>
